<compile_context>
chip_gen: v7x
topology: tpu7x:2x2x1
jax: 0.10.0
libtpu: 0.0.40
codegen_flags: <defaults>
</compile_context>

<pallas_src>
import functools

import jax
import jax.numpy as jnp
from jax import lax
from jax.experimental import pallas as pl
from jax.experimental.pallas import tpu as pltpu

INPUT_SIZE = 1
HIDDEN = 32          # module default is 128; small size chosen for the demo run
NUM_LAYERS = 3
LEAKY_SLOPE = 0.01   # nn.LeakyReLU default
BN_EPS = 1e-5

VMEM_SPEC = pl.BlockSpec(memory_space=pltpu.MemorySpace.VMEM)


# ----------------------------------------------------------------------------
# Single fused kernel.
#   x_ref   : (T*B, 2H)   time-major flattened input, zero-padded to 2H lanes
#   wih     : (L, 2H, 8H) input->gates, fwd gates in cols [0,4H), bwd in [4H,8H)
#   whh     : (L,  H, 8H) recurrent,  [Whh_f^T | Whh_b^T]  (contraction dim = H)
#   b       : (L, 1, 8H)  (b_ih + b_hh) per direction, fused columns
#   (all three have the i/f/o columns pre-scaled by 0.5 for the single-tanh trick)
#   head    : attention Linear, 2x (Linear + folded-BN affine), final Linear
#   out_ref : (B, 1)
#   scratches: xg_scr (T*2B,4H) staged gate inputs, hseq_scr (T*2B,H) compute-order
#              hidden states, seq_scr (T*B,2H) (t,b)-major bidirectional layer output
# ----------------------------------------------------------------------------
def fused_forward_kernel(x_ref, wih_ref, whh_ref, b_ref,
                         aw_ref, ab_ref,
                         w1_ref, b1_ref, s1_ref, t1_ref,
                         w2_ref, b2_ref, s2_ref, t2_ref,
                         w3_ref, b3_ref,
                         out_ref, xg_scr, hseq_scr, seq_scr, *, T, B):
    num_layers = wih_ref.shape[0]
    H8 = wih_ref.shape[2]
    H = H8 // 8
    H2, H3, H4 = 2 * H, 3 * H, 4 * H
    B2 = 2 * B                       # fwd + bwd stacked on the batch/sublane axis

    # Constant masks / affines, hoisted out of all loops (JAX does not CSE broadcasts).
    grow = lax.broadcasted_iota(jnp.int32, (B2, H4), 0)
    glane = lax.broadcasted_iota(jnp.int32, (B2, H4), 1)
    is_fwd_row = grow < B                                   # fwd rows read gate cols [0,4H)
    is_g_lane = (glane >= H2) & (glane < H3)                # tanh ("g") gate lanes
    post_scale = jnp.where(is_g_lane, 1.0, 0.5).astype(jnp.float32)
    post_shift = jnp.where(is_g_lane, 0.0, 0.5).astype(jnp.float32)

    for layer in range(num_layers):
        inp = x_ref[...] if layer == 0 else seq_scr[...]             # (T*B, 2H)

        # Hoisted input projection: ONE matmul for both directions, bias folded once.
        xp = jnp.dot(inp, wih_ref[layer],
                     preferred_element_type=jnp.float32) + b_ref[layer]   # (T*B, 8H)

        # Stage per-step gate inputs in compute order (off the serial chain):
        # rows [t*2B, t*2B+B) <- fwd gates at time t, rows [t*2B+B, (t+1)*2B) <- bwd
        # gates at time T-1-t.  The recurrence then reads one aligned (8,128) tile.
        for t in range(T):
            xg_scr[t * B2:t * B2 + B, :] = xp[t * B:(t + 1) * B, 0:H4]
            xg_scr[t * B2 + B:(t + 1) * B2, :] = xp[(T - 1 - t) * B:(T - t) * B, H4:H8]

        whh_l = whh_ref[layer]                                # (H, 8H) = [Whh_f^T | Whh_b^T]

        h = jnp.zeros((B2, H), jnp.float32)                   # rows [0,B)=h_f, [B,2B)=h_b
        c = jnp.zeros((B2, H), jnp.float32)
        for t in range(T):                      # static unroll (T small & fixed)
            # One (2B,H)@(H,8H) matmul; fwd rows only read cols [0,4H), bwd rows only
            # cols [4H,8H), so the cross terms are never consumed -> no mask, no concat.
            hw = jnp.dot(h, whh_l, preferred_element_type=jnp.float32)       # (2B, 8H)
            rec = jnp.where(is_fwd_row, hw[:, 0:H4], hw[:, H4:H8])           # (2B, 4H)
            gates = xg_scr[t * B2:(t + 1) * B2, :] + rec
            # Single-tanh trick: i/f/o columns were pre-scaled by 0.5 at pack time,
            # so sigmoid(a) = 0.5*tanh(0.5a)+0.5 and g keeps plain tanh.
            tg = jnp.tanh(gates)
            act = tg * post_scale + post_shift
            # TODO(synk): pack-time gate-column permutation could shave one more
            # lane-align per step; kept in PyTorch i,f,g,o order for clarity.
            i_g = act[:, 0:H]
            f_g = act[:, H:H2]
            g_g = act[:, H2:H3]
            o_g = act[:, H3:H4]
            c = f_g * c + i_g * g_g
            h = o_g * jnp.tanh(c)                                             # (2B, H)
            hseq_scr[t * B2:(t + 1) * B2, :] = h              # one aligned (2B,H) store
        # TODO(synk): inter-layer LSTM dropout (p=0.3) is training-only; identity here.

        # De-interleave + time-reverse once per layer into (t, b)-major bidirectional
        # output (fwd hidden of time t, bwd hidden of time t = compute step T-1-t).
        for t in range(T):
            seq_scr[t * B:(t + 1) * B, 0:H] = hseq_scr[t * B2:t * B2 + B, :]
            seq_scr[t * B:(t + 1) * B, H:H2] = hseq_scr[(T - 1 - t) * B2 + B:(T - t) * B2, :]

    # ------------------- attention pooling + MLP head -------------------
    y = seq_scr[...]                                               # (T*B, 2H)
    s_all = jnp.sum(y * aw_ref[...], axis=-1, keepdims=True) + ab_ref[...]   # (T*B, 1)
    s_t = [s_all[t * B:(t + 1) * B, :] for t in range(T)]          # T x (B, 1)
    m = s_t[0]
    for t in range(1, T):
        m = jnp.maximum(m, s_t[t])
    e_t = [jnp.exp(s - m) for s in s_t]
    denom = e_t[0]
    for t in range(1, T):
        denom = denom + e_t[t]
    num = jnp.zeros((B, H2), jnp.float32)
    for t in range(T):
        num = num + e_t[t] * y[t * B:(t + 1) * B, :]
    context = num / denom                                          # (B, 2H) softmax-pooled

    # fc: Linear -> BN(eval, folded affine) -> LeakyReLU -> [Dropout: identity]
    #     -> Linear -> BN -> LeakyReLU -> Linear
    hh = jnp.dot(context, w1_ref[...], preferred_element_type=jnp.float32) + b1_ref[...]
    hh = hh * s1_ref[...] + t1_ref[...]
    hh = jnp.where(hh >= 0, hh, LEAKY_SLOPE * hh)
    # TODO(synk): Dropout(0.2) is training-only; identity here.
    hh = jnp.dot(hh, w2_ref[...], preferred_element_type=jnp.float32) + b2_ref[...]
    hh = hh * s2_ref[...] + t2_ref[...]
    hh = jnp.where(hh >= 0, hh, LEAKY_SLOPE * hh)
    # (B, 1) epilogue store: masked vst, accepted consciously (single tiny store).
    out_ref[...] = jnp.dot(hh, w3_ref[...], preferred_element_type=jnp.float32) + b3_ref[...]


# ----------------------------------------------------------------------------
# Deterministic parameter construction (shapes from the PyTorch __init__),
# pre-packed into the fused-kernel layout (fwd‖bwd gate columns, 0.5 pre-scale on
# the sigmoid gate columns, recurrent weights with contraction dim H).
# ----------------------------------------------------------------------------
def init_params(key, input_size=INPUT_SIZE, hidden=HIDDEN, num_layers=NUM_LAYERS):
    scale = 0.1
    keys = iter(jax.random.split(key, 256))

    def nrm(shape):
        return jax.random.normal(next(keys), shape, jnp.float32) * scale

    h2, h4, h8 = 2 * hidden, 4 * hidden, 8 * hidden

    # 0.5 pre-scale on i/f/o (sigmoid) gate columns of both direction blocks.
    lane = jnp.arange(h8)
    gate_of_col = (lane % h4) // hidden          # 0=i, 1=f, 2=g, 3=o
    col_scale = jnp.where(gate_of_col == 2, 1.0, 0.5).astype(jnp.float32)[None, :]

    wih, whh, bias = [], [], []
    for layer in range(num_layers):
        din = input_size if layer == 0 else h2
        # W_ih^T padded with zero rows to a uniform (2H, 4H) — exact (padded x lanes are 0).
        wf = jnp.zeros((h2, h4), jnp.float32).at[:din].set(nrm((din, h4)))
        wb = jnp.zeros((h2, h4), jnp.float32).at[:din].set(nrm((din, h4)))
        wih.append(jnp.concatenate([wf, wb], axis=1) * col_scale)            # (2H, 8H)
        whh.append(jnp.concatenate([nrm((hidden, h4)),                       # Whh_f^T
                                    nrm((hidden, h4))], axis=1) * col_scale)  # (H, 8H)
        bf = nrm((1, h4)) + nrm((1, h4))                                      # b_ih + b_hh
        bb = nrm((1, h4)) + nrm((1, h4))
        bias.append(jnp.concatenate([bf, bb], axis=1) * col_scale)            # (1, 8H)

    params = {'wih': jnp.stack(wih), 'whh': jnp.stack(whh), 'b': jnp.stack(bias)}

    aw, ab = nrm((1, h2)), nrm((1, 1))                              # attention Linear(2H, 1)
    w1, b1 = nrm((h2, 64)), nrm((1, 64))
    w2, b2 = nrm((64, 32)), nrm((1, 32))
    w3, b3 = nrm((32, 1)), nrm((1, 1))

    # BatchNorm1d eval: gamma=1, beta=0, running_mean=0, running_var=1 (PyTorch defaults),
    # folded into scale/shift.
    def bn_affine(n):
        gamma = jnp.ones((1, n), jnp.float32)
        beta = jnp.zeros((1, n), jnp.float32)
        rm = jnp.zeros((1, n), jnp.float32)
        rv = jnp.ones((1, n), jnp.float32)
        s = gamma * lax.rsqrt(rv + BN_EPS)
        return s, beta - rm * s

    s1, t1 = bn_affine(64)
    s2, t2 = bn_affine(32)
    params['head'] = (aw, ab, w1, b1, s1, t1, w2, b2, s2, t2, w3, b3)
    return params


# ----------------------------------------------------------------------------
# Full forward pass (mirrors EnhancedLSTMPredictor.forward) — one pallas_call.
# Total VMEM footprint (<0.5 MiB) fits every generation; no grid needed at B=4.
# ----------------------------------------------------------------------------
@jax.jit
def enhanced_lstm_predictor(x, params):
    B, T = x.shape[0], x.shape[1]
    h2 = 2 * HIDDEN
    xt = x.reshape(B, T, INPUT_SIZE).astype(jnp.float32)
    xt = jnp.transpose(xt, (1, 0, 2)).reshape(T * B, INPUT_SIZE)    # time-major, flattened
    x_flat = jnp.pad(xt, ((0, 0), (0, h2 - INPUT_SIZE)))            # zero-pad to 2H lanes

    args = (x_flat, params['wih'], params['whh'], params['b']) + tuple(params['head'])

    kernel = functools.partial(fused_forward_kernel, T=T, B=B)
    return pl.pallas_call(
        kernel,
        out_shape=jax.ShapeDtypeStruct((B, 1), jnp.float32),
        in_specs=[VMEM_SPEC] * len(args),
        out_specs=VMEM_SPEC,
        scratch_shapes=[
            pltpu.VMEM((T * 2 * B, 4 * HIDDEN), jnp.float32),   # xg_scr: staged gate inputs
            pltpu.VMEM((T * 2 * B, HIDDEN), jnp.float32),       # hseq_scr: compute-order h
            pltpu.VMEM((T * B, h2), jnp.float32),               # seq_scr: (t,b)-major output
        ],
    )(*args)


if __name__ == "__main__":
    key = jax.random.PRNGKey(0)
    pkey, xkey = jax.random.split(key)
    params = init_params(pkey)

    B, T = 4, 8
    x = jax.random.normal(xkey, (B, T), jnp.float32)

    out = enhanced_lstm_predictor(x, params)
    jax.block_until_ready(out)
    assert out.shape == (B, 1) and out.dtype == jnp.float32
    print("KERNEL_OK")
</pallas_src>

<mosaic_0001>
module attributes {stable_mosaic.version = 11 : i64} {
  func.func @fused_forward_kernel(%arg0: memref<32x64xf32, #tpu.memory_space<vmem>>, %arg1: memref<3x64x256xf32, #tpu.memory_space<vmem>>, %arg2: memref<3x32x256xf32, #tpu.memory_space<vmem>>, %arg3: memref<3x1x256xf32, #tpu.memory_space<vmem>>, %arg4: memref<1x64xf32, #tpu.memory_space<vmem>>, %arg5: memref<1x1xf32, #tpu.memory_space<vmem>>, %arg6: memref<64x64xf32, #tpu.memory_space<vmem>>, %arg7: memref<1x64xf32, #tpu.memory_space<vmem>>, %arg8: memref<1x64xf32, #tpu.memory_space<vmem>>, %arg9: memref<1x64xf32, #tpu.memory_space<vmem>>, %arg10: memref<64x32xf32, #tpu.memory_space<vmem>>, %arg11: memref<1x32xf32, #tpu.memory_space<vmem>>, %arg12: memref<1x32xf32, #tpu.memory_space<vmem>>, %arg13: memref<1x32xf32, #tpu.memory_space<vmem>>, %arg14: memref<32x1xf32, #tpu.memory_space<vmem>>, %arg15: memref<1x1xf32, #tpu.memory_space<vmem>>, %arg16: memref<4x1xf32, #tpu.memory_space<vmem>>, %arg17: memref<64x128xf32, #tpu.memory_space<vmem>>, %arg18: memref<64x32xf32, #tpu.memory_space<vmem>>, %arg19: memref<32x64xf32, #tpu.memory_space<vmem>>) attributes {dimension_semantics = [], scalar_prefetch = 0 : i64, scratch_operands = 3 : i64, tpu.core_type = #tpu.core_type<tc>} {
    %0 = tpu.iota {dimensions = array<i32: 0>} : vector<8x128xi32>
    %1 = tpu.iota {dimensions = array<i32: 1>} : vector<8x128xi32>
    %c4_i32 = arith.constant 4 : i32
    %2 = vector.broadcast %c4_i32 : i32 to vector<8x128xi32>
    %3 = arith.cmpi slt, %0, %2 : vector<8x128xi32>
    %c64_i32 = arith.constant 64 : i32
    %4 = vector.broadcast %c64_i32 : i32 to vector<8x128xi32>
    %5 = arith.cmpi sge, %1, %4 : vector<8x128xi32>
    %c96_i32 = arith.constant 96 : i32
    %6 = vector.broadcast %c96_i32 : i32 to vector<8x128xi32>
    %7 = arith.cmpi slt, %1, %6 : vector<8x128xi32>
    %8 = arith.andi %5, %7 : vector<8x128xi1>
    %cst = arith.constant 1.000000e+00 : f32
    %cst_0 = arith.constant 5.000000e-01 : f32
    %9 = vector.broadcast %cst : f32 to vector<8x128xf32>
    %10 = vector.broadcast %cst_0 : f32 to vector<8x128xf32>
    %11 = arith.select %8, %9, %10 : vector<8x128xi1>, vector<8x128xf32>
    %cst_1 = arith.constant 0.000000e+00 : f32
    %cst_2 = arith.constant 5.000000e-01 : f32
    %12 = vector.broadcast %cst_1 : f32 to vector<8x128xf32>
    %13 = vector.broadcast %cst_2 : f32 to vector<8x128xf32>
    %14 = arith.select %8, %12, %13 : vector<8x128xi1>, vector<8x128xf32>
    %c0 = arith.constant 0 : index
    %c0_3 = arith.constant 0 : index
    %15 = vector.load %arg0[%c0, %c0_3] : memref<32x64xf32, #tpu.memory_space<vmem>>, vector<32x64xf32>
    %c0_4 = arith.constant 0 : index
    %c0_5 = arith.constant 0 : index
    %c0_6 = arith.constant 0 : index
    %16 = vector.load %arg1[%c0_4, %c0_5, %c0_6] : memref<3x64x256xf32, #tpu.memory_space<vmem>>, vector<1x64x256xf32>
    %17 = vector.shape_cast %16 : vector<1x64x256xf32> to vector<64x256xf32>
    %cst_7 = arith.constant dense<0.000000e+00> : vector<32x256xf32>
    %18 = tpu.matmul %15, %17, %cst_7 {dimension_numbers = #tpu.dot_dimension_numbers<[1], [0], [0], [1], [0, 0, 1, 1], [], []>} : vector<32x64xf32>, vector<64x256xf32>, vector<32x256xf32> -> vector<32x256xf32>
    %c0_8 = arith.constant 0 : index
    %c0_9 = arith.constant 0 : index
    %c0_10 = arith.constant 0 : index
    %19 = vector.load %arg3[%c0_8, %c0_9, %c0_10] : memref<3x1x256xf32, #tpu.memory_space<vmem>>, vector<1x1x256xf32>
    %20 = vector.shape_cast %19 : vector<1x1x256xf32> to vector<1x256xf32>
    %21 = vector.broadcast %20 : vector<1x256xf32> to vector<32x256xf32>
    %22 = arith.addf %18, %21 : vector<32x256xf32>
    %23 = vector.extract_strided_slice %22 {offsets = [0, 0], sizes = [4, 128], strides = [1, 1]} : vector<32x256xf32> to vector<4x128xf32>
    %c0_11 = arith.constant 0 : index
    %c0_12 = arith.constant 0 : index
    %24 = vector.load %arg17[%c0_11, %c0_12] : memref<64x128xf32, #tpu.memory_space<vmem>>, vector<4x128xf32>
    tpu.vector_store %arg17[%c0_11, %c0_12], %23 {strides = array<i32>} : memref<64x128xf32, #tpu.memory_space<vmem>>, vector<4x128xf32>,
    %25 = vector.extract_strided_slice %22 {offsets = [28, 128], sizes = [4, 128], strides = [1, 1]} : vector<32x256xf32> to vector<4x128xf32>
    %c4 = arith.constant 4 : index
    %c0_13 = arith.constant 0 : index
    %26 = vector.load %arg17[%c4, %c0_13] : memref<64x128xf32, #tpu.memory_space<vmem>>, vector<4x128xf32>
    tpu.vector_store %arg17[%c4, %c0_13], %25 {strides = array<i32>} : memref<64x128xf32, #tpu.memory_space<vmem>>, vector<4x128xf32>,
    %27 = vector.extract_strided_slice %22 {offsets = [4, 0], sizes = [4, 128], strides = [1, 1]} : vector<32x256xf32> to vector<4x128xf32>
    %c8 = arith.constant 8 : index
    %c0_14 = arith.constant 0 : index
    %28 = vector.load %arg17[%c8, %c0_14] : memref<64x128xf32, #tpu.memory_space<vmem>>, vector<4x128xf32>
    tpu.vector_store %arg17[%c8, %c0_14], %27 {strides = array<i32>} : memref<64x128xf32, #tpu.memory_space<vmem>>, vector<4x128xf32>,
    %29 = vector.extract_strided_slice %22 {offsets = [24, 128], sizes = [4, 128], strides = [1, 1]} : vector<32x256xf32> to vector<4x128xf32>
    %c12 = arith.constant 12 : index
    %c0_15 = arith.constant 0 : index
    %30 = vector.load %arg17[%c12, %c0_15] : memref<64x128xf32, #tpu.memory_space<vmem>>, vector<4x128xf32>
    tpu.vector_store %arg17[%c12, %c0_15], %29 {strides = array<i32>} : memref<64x128xf32, #tpu.memory_space<vmem>>, vector<4x128xf32>,
    %31 = vector.extract_strided_slice %22 {offsets = [8, 0], sizes = [4, 128], strides = [1, 1]} : vector<32x256xf32> to vector<4x128xf32>
    %c16 = arith.constant 16 : index
    %c0_16 = arith.constant 0 : index
    %32 = vector.load %arg17[%c16, %c0_16] : memref<64x128xf32, #tpu.memory_space<vmem>>, vector<4x128xf32>
    tpu.vector_store %arg17[%c16, %c0_16], %31 {strides = array<i32>} : memref<64x128xf32, #tpu.memory_space<vmem>>, vector<4x128xf32>,
    %33 = vector.extract_strided_slice %22 {offsets = [20, 128], sizes = [4, 128], strides = [1, 1]} : vector<32x256xf32> to vector<4x128xf32>
    %c20 = arith.constant 20 : index
    %c0_17 = arith.constant 0 : index
    %34 = vector.load %arg17[%c20, %c0_17] : memref<64x128xf32, #tpu.memory_space<vmem>>, vector<4x128xf32>
    tpu.vector_store %arg17[%c20, %c0_17], %33 {strides = array<i32>} : memref<64x128xf32, #tpu.memory_space<vmem>>, vector<4x128xf32>,
    %35 = vector.extract_strided_slice %22 {offsets = [12, 0], sizes = [4, 128], strides = [1, 1]} : vector<32x256xf32> to vector<4x128xf32>
    %c24 = arith.constant 24 : index
    %c0_18 = arith.constant 0 : index
    %36 = vector.load %arg17[%c24, %c0_18] : memref<64x128xf32, #tpu.memory_space<vmem>>, vector<4x128xf32>
    tpu.vector_store %arg17[%c24, %c0_18], %35 {strides = array<i32>} : memref<64x128xf32, #tpu.memory_space<vmem>>, vector<4x128xf32>,
    %37 = vector.extract_strided_slice %22 {offsets = [16, 128], sizes = [4, 128], strides = [1, 1]} : vector<32x256xf32> to vector<4x128xf32>
    %c28 = arith.constant 28 : index
    %c0_19 = arith.constant 0 : index
    %38 = vector.load %arg17[%c28, %c0_19] : memref<64x128xf32, #tpu.memory_space<vmem>>, vector<4x128xf32>
    tpu.vector_store %arg17[%c28, %c0_19], %37 {strides = array<i32>} : memref<64x128xf32, #tpu.memory_space<vmem>>, vector<4x128xf32>,
    %39 = vector.extract_strided_slice %22 {offsets = [16, 0], sizes = [4, 128], strides = [1, 1]} : vector<32x256xf32> to vector<4x128xf32>
    %c32 = arith.constant 32 : index
    %c0_20 = arith.constant 0 : index
    %40 = vector.load %arg17[%c32, %c0_20] : memref<64x128xf32, #tpu.memory_space<vmem>>, vector<4x128xf32>
    tpu.vector_store %arg17[%c32, %c0_20], %39 {strides = array<i32>} : memref<64x128xf32, #tpu.memory_space<vmem>>, vector<4x128xf32>,
    %41 = vector.extract_strided_slice %22 {offsets = [12, 128], sizes = [4, 128], strides = [1, 1]} : vector<32x256xf32> to vector<4x128xf32>
    %c36 = arith.constant 36 : index
    %c0_21 = arith.constant 0 : index
    %42 = vector.load %arg17[%c36, %c0_21] : memref<64x128xf32, #tpu.memory_space<vmem>>, vector<4x128xf32>
    tpu.vector_store %arg17[%c36, %c0_21], %41 {strides = array<i32>} : memref<64x128xf32, #tpu.memory_space<vmem>>, vector<4x128xf32>,
    %43 = vector.extract_strided_slice %22 {offsets = [20, 0], sizes = [4, 128], strides = [1, 1]} : vector<32x256xf32> to vector<4x128xf32>
    %c40 = arith.constant 40 : index
    %c0_22 = arith.constant 0 : index
    %44 = vector.load %arg17[%c40, %c0_22] : memref<64x128xf32, #tpu.memory_space<vmem>>, vector<4x128xf32>
    tpu.vector_store %arg17[%c40, %c0_22], %43 {strides = array<i32>} : memref<64x128xf32, #tpu.memory_space<vmem>>, vector<4x128xf32>,
    %45 = vector.extract_strided_slice %22 {offsets = [8, 128], sizes = [4, 128], strides = [1, 1]} : vector<32x256xf32> to vector<4x128xf32>
    %c44 = arith.constant 44 : index
    %c0_23 = arith.constant 0 : index
    %46 = vector.load %arg17[%c44, %c0_23] : memref<64x128xf32, #tpu.memory_space<vmem>>, vector<4x128xf32>
    tpu.vector_store %arg17[%c44, %c0_23], %45 {strides = array<i32>} : memref<64x128xf32, #tpu.memory_space<vmem>>, vector<4x128xf32>,
    %47 = vector.extract_strided_slice %22 {offsets = [24, 0], sizes = [4, 128], strides = [1, 1]} : vector<32x256xf32> to vector<4x128xf32>
    %c48 = arith.constant 48 : index
    %c0_24 = arith.constant 0 : index
    %48 = vector.load %arg17[%c48, %c0_24] : memref<64x128xf32, #tpu.memory_space<vmem>>, vector<4x128xf32>
    tpu.vector_store %arg17[%c48, %c0_24], %47 {strides = array<i32>} : memref<64x128xf32, #tpu.memory_space<vmem>>, vector<4x128xf32>,
    %49 = vector.extract_strided_slice %22 {offsets = [4, 128], sizes = [4, 128], strides = [1, 1]} : vector<32x256xf32> to vector<4x128xf32>
    %c52 = arith.constant 52 : index
    %c0_25 = arith.constant 0 : index
    %50 = vector.load %arg17[%c52, %c0_25] : memref<64x128xf32, #tpu.memory_space<vmem>>, vector<4x128xf32>
    tpu.vector_store %arg17[%c52, %c0_25], %49 {strides = array<i32>} : memref<64x128xf32, #tpu.memory_space<vmem>>, vector<4x128xf32>,
    %51 = vector.extract_strided_slice %22 {offsets = [28, 0], sizes = [4, 128], strides = [1, 1]} : vector<32x256xf32> to vector<4x128xf32>
    %c56 = arith.constant 56 : index
    %c0_26 = arith.constant 0 : index
    %52 = vector.load %arg17[%c56, %c0_26] : memref<64x128xf32, #tpu.memory_space<vmem>>, vector<4x128xf32>
    tpu.vector_store %arg17[%c56, %c0_26], %51 {strides = array<i32>} : memref<64x128xf32, #tpu.memory_space<vmem>>, vector<4x128xf32>,
    %53 = vector.extract_strided_slice %22 {offsets = [0, 128], sizes = [4, 128], strides = [1, 1]} : vector<32x256xf32> to vector<4x128xf32>
    %c60 = arith.constant 60 : index
    %c0_27 = arith.constant 0 : index
    %54 = vector.load %arg17[%c60, %c0_27] : memref<64x128xf32, #tpu.memory_space<vmem>>, vector<4x128xf32>
    tpu.vector_store %arg17[%c60, %c0_27], %53 {strides = array<i32>} : memref<64x128xf32, #tpu.memory_space<vmem>>, vector<4x128xf32>,
    %c0_28 = arith.constant 0 : index
    %c0_29 = arith.constant 0 : index
    %c0_30 = arith.constant 0 : index
    %55 = vector.load %arg2[%c0_28, %c0_29, %c0_30] : memref<3x32x256xf32, #tpu.memory_space<vmem>>, vector<1x32x256xf32>
    %56 = vector.shape_cast %55 : vector<1x32x256xf32> to vector<32x256xf32>
    %cst_31 = arith.constant 0.000000e+00 : f32
    %57 = vector.broadcast %cst_31 : f32 to vector<8x32xf32>
    %cst_32 = arith.constant 0.000000e+00 : f32
    %58 = vector.broadcast %cst_32 : f32 to vector<8x32xf32>
    %cst_33 = arith.constant dense<0.000000e+00> : vector<8x256xf32>
    %59 = tpu.matmul %57, %56, %cst_33 {dimension_numbers = #tpu.dot_dimension_numbers<[1], [0], [0], [1], [0, 0, 1, 1], [], []>} : vector<8x32xf32>, vector<32x256xf32>, vector<8x256xf32> -> vector<8x256xf32>
    %60 = vector.extract_strided_slice %59 {offsets = [0, 0], sizes = [8, 128], strides = [1, 1]} : vector<8x256xf32> to vector<8x128xf32>
    %61 = vector.extract_strided_slice %59 {offsets = [0, 128], sizes = [8, 128], strides = [1, 1]} : vector<8x256xf32> to vector<8x128xf32>
    %62 = arith.select %3, %60, %61 : vector<8x128xi1>, vector<8x128xf32>
    %c0_34 = arith.constant 0 : index
    %c0_35 = arith.constant 0 : index
    %63 = vector.load %arg17[%c0_34, %c0_35] : memref<64x128xf32, #tpu.memory_space<vmem>>, vector<8x128xf32>
    %64 = arith.addf %63, %62 : vector<8x128xf32>
    %65 = math.tanh %64 : vector<8x128xf32>
    %66 = arith.mulf %65, %11 : vector<8x128xf32>
    %67 = arith.addf %66, %14 : vector<8x128xf32>
    %68 = vector.extract_strided_slice %67 {offsets = [0, 0], sizes = [8, 32], strides = [1, 1]} : vector<8x128xf32> to vector<8x32xf32>
    %69 = vector.extract_strided_slice %67 {offsets = [0, 32], sizes = [8, 32], strides = [1, 1]} : vector<8x128xf32> to vector<8x32xf32>
    %70 = vector.extract_strided_slice %67 {offsets = [0, 64], sizes = [8, 32], strides = [1, 1]} : vector<8x128xf32> to vector<8x32xf32>
    %71 = vector.extract_strided_slice %67 {offsets = [0, 96], sizes = [8, 32], strides = [1, 1]} : vector<8x128xf32> to vector<8x32xf32>
    %72 = arith.mulf %69, %58 : vector<8x32xf32>
    %73 = arith.mulf %68, %70 : vector<8x32xf32>
    %74 = arith.addf %72, %73 : vector<8x32xf32>
    %75 = math.tanh %74 : vector<8x32xf32>
    %76 = arith.mulf %71, %75 : vector<8x32xf32>
    %c0_36 = arith.constant 0 : index
    %c0_37 = arith.constant 0 : index
    %77 = vector.load %arg18[%c0_36, %c0_37] : memref<64x32xf32, #tpu.memory_space<vmem>>, vector<8x32xf32>
    tpu.vector_store %arg18[%c0_36, %c0_37], %76 {strides = array<i32>} : memref<64x32xf32, #tpu.memory_space<vmem>>, vector<8x32xf32>,
    %cst_38 = arith.constant dense<0.000000e+00> : vector<8x256xf32>
    %78 = tpu.matmul %76, %56, %cst_38 {dimension_numbers = #tpu.dot_dimension_numbers<[1], [0], [0], [1], [0, 0, 1, 1], [], []>} : vector<8x32xf32>, vector<32x256xf32>, vector<8x256xf32> -> vector<8x256xf32>
    %79 = vector.extract_strided_slice %78 {offsets = [0, 0], sizes = [8, 128], strides = [1, 1]} : vector<8x256xf32> to vector<8x128xf32>
    %80 = vector.extract_strided_slice %78 {offsets = [0, 128], sizes = [8, 128], strides = [1, 1]} : vector<8x256xf32> to vector<8x128xf32>
    %81 = arith.select %3, %79, %80 : vector<8x128xi1>, vector<8x128xf32>
    %c8_39 = arith.constant 8 : index
    %c0_40 = arith.constant 0 : index
    %82 = vector.load %arg17[%c8_39, %c0_40] : memref<64x128xf32, #tpu.memory_space<vmem>>, vector<8x128xf32>
    %83 = arith.addf %82, %81 : vector<8x128xf32>
    %84 = math.tanh %83 : vector<8x128xf32>
    %85 = arith.mulf %84, %11 : vector<8x128xf32>
    %86 = arith.addf %85, %14 : vector<8x128xf32>
    %87 = vector.extract_strided_slice %86 {offsets = [0, 0], sizes = [8, 32], strides = [1, 1]} : vector<8x128xf32> to vector<8x32xf32>
    %88 = vector.extract_strided_slice %86 {offsets = [0, 32], sizes = [8, 32], strides = [1, 1]} : vector<8x128xf32> to vector<8x32xf32>
    %89 = vector.extract_strided_slice %86 {offsets = [0, 64], sizes = [8, 32], strides = [1, 1]} : vector<8x128xf32> to vector<8x32xf32>
    %90 = vector.extract_strided_slice %86 {offsets = [0, 96], sizes = [8, 32], strides = [1, 1]} : vector<8x128xf32> to vector<8x32xf32>
    %91 = arith.mulf %88, %74 : vector<8x32xf32>
    %92 = arith.mulf %87, %89 : vector<8x32xf32>
    %93 = arith.addf %91, %92 : vector<8x32xf32>
    %94 = math.tanh %93 : vector<8x32xf32>
    %95 = arith.mulf %90, %94 : vector<8x32xf32>
    %c8_41 = arith.constant 8 : index
    %c0_42 = arith.constant 0 : index
    %96 = vector.load %arg18[%c8_41, %c0_42] : memref<64x32xf32, #tpu.memory_space<vmem>>, vector<8x32xf32>
    tpu.vector_store %arg18[%c8_41, %c0_42], %95 {strides = array<i32>} : memref<64x32xf32, #tpu.memory_space<vmem>>, vector<8x32xf32>,
    %cst_43 = arith.constant dense<0.000000e+00> : vector<8x256xf32>
    %97 = tpu.matmul %95, %56, %cst_43 {dimension_numbers = #tpu.dot_dimension_numbers<[1], [0], [0], [1], [0, 0, 1, 1], [], []>} : vector<8x32xf32>, vector<32x256xf32>, vector<8x256xf32> -> vector<8x256xf32>
    %98 = vector.extract_strided_slice %97 {offsets = [0, 0], sizes = [8, 128], strides = [1, 1]} : vector<8x256xf32> to vector<8x128xf32>
    %99 = vector.extract_strided_slice %97 {offsets = [0, 128], sizes = [8, 128], strides = [1, 1]} : vector<8x256xf32> to vector<8x128xf32>
    %100 = arith.select %3, %98, %99 : vector<8x128xi1>, vector<8x128xf32>
    %c16_44 = arith.constant 16 : index
    %c0_45 = arith.constant 0 : index
    %101 = vector.load %arg17[%c16_44, %c0_45] : memref<64x128xf32, #tpu.memory_space<vmem>>, vector<8x128xf32>
    %102 = arith.addf %101, %100 : vector<8x128xf32>
    %103 = math.tanh %102 : vector<8x128xf32>
    %104 = arith.mulf %103, %11 : vector<8x128xf32>
    %105 = arith.addf %104, %14 : vector<8x128xf32>
    %106 = vector.extract_strided_slice %105 {offsets = [0, 0], sizes = [8, 32], strides = [1, 1]} : vector<8x128xf32> to vector<8x32xf32>
    %107 = vector.extract_strided_slice %105 {offsets = [0, 32], sizes = [8, 32], strides = [1, 1]} : vector<8x128xf32> to vector<8x32xf32>
    %108 = vector.extract_strided_slice %105 {offsets = [0, 64], sizes = [8, 32], strides = [1, 1]} : vector<8x128xf32> to vector<8x32xf32>
    %109 = vector.extract_strided_slice %105 {offsets = [0, 96], sizes = [8, 32], strides = [1, 1]} : vector<8x128xf32> to vector<8x32xf32>
    %110 = arith.mulf %107, %93 : vector<8x32xf32>
    %111 = arith.mulf %106, %108 : vector<8x32xf32>
    %112 = arith.addf %110, %111 : vector<8x32xf32>
    %113 = math.tanh %112 : vector<8x32xf32>
    %114 = arith.mulf %109, %113 : vector<8x32xf32>
    %c16_46 = arith.constant 16 : index
    %c0_47 = arith.constant 0 : index
    %115 = vector.load %arg18[%c16_46, %c0_47] : memref<64x32xf32, #tpu.memory_space<vmem>>, vector<8x32xf32>
    tpu.vector_store %arg18[%c16_46, %c0_47], %114 {strides = array<i32>} : memref<64x32xf32, #tpu.memory_space<vmem>>, vector<8x32xf32>,
    %cst_48 = arith.constant dense<0.000000e+00> : vector<8x256xf32>
    %116 = tpu.matmul %114, %56, %cst_48 {dimension_numbers = #tpu.dot_dimension_numbers<[1], [0], [0], [1], [0, 0, 1, 1], [], []>} : vector<8x32xf32>, vector<32x256xf32>, vector<8x256xf32> -> vector<8x256xf32>
    %117 = vector.extract_strided_slice %116 {offsets = [0, 0], sizes = [8, 128], strides = [1, 1]} : vector<8x256xf32> to vector<8x128xf32>
    %118 = vector.extract_strided_slice %116 {offsets = [0, 128], sizes = [8, 128], strides = [1, 1]} : vector<8x256xf32> to vector<8x128xf32>
    %119 = arith.select %3, %117, %118 : vector<8x128xi1>, vector<8x128xf32>
    %c24_49 = arith.constant 24 : index
    %c0_50 = arith.constant 0 : index
    %120 = vector.load %arg17[%c24_49, %c0_50] : memref<64x128xf32, #tpu.memory_space<vmem>>, vector<8x128xf32>
    %121 = arith.addf %120, %119 : vector<8x128xf32>
    %122 = math.tanh %121 : vector<8x128xf32>
    %123 = arith.mulf %122, %11 : vector<8x128xf32>
    %124 = arith.addf %123, %14 : vector<8x128xf32>
    %125 = vector.extract_strided_slice %124 {offsets = [0, 0], sizes = [8, 32], strides = [1, 1]} : vector<8x128xf32> to vector<8x32xf32>
    %126 = vector.extract_strided_slice %124 {offsets = [0, 32], sizes = [8, 32], strides = [1, 1]} : vector<8x128xf32> to vector<8x32xf32>
    %127 = vector.extract_strided_slice %124 {offsets = [0, 64], sizes = [8, 32], strides = [1, 1]} : vector<8x128xf32> to vector<8x32xf32>
    %128 = vector.extract_strided_slice %124 {offsets = [0, 96], sizes = [8, 32], strides = [1, 1]} : vector<8x128xf32> to vector<8x32xf32>
    %129 = arith.mulf %126, %112 : vector<8x32xf32>
    %130 = arith.mulf %125, %127 : vector<8x32xf32>
    %131 = arith.addf %129, %130 : vector<8x32xf32>
    %132 = math.tanh %131 : vector<8x32xf32>
    %133 = arith.mulf %128, %132 : vector<8x32xf32>
    %c24_51 = arith.constant 24 : index
    %c0_52 = arith.constant 0 : index
    %134 = vector.load %arg18[%c24_51, %c0_52] : memref<64x32xf32, #tpu.memory_space<vmem>>, vector<8x32xf32>
    tpu.vector_store %arg18[%c24_51, %c0_52], %133 {strides = array<i32>} : memref<64x32xf32, #tpu.memory_space<vmem>>, vector<8x32xf32>,
    %cst_53 = arith.constant dense<0.000000e+00> : vector<8x256xf32>
    %135 = tpu.matmul %133, %56, %cst_53 {dimension_numbers = #tpu.dot_dimension_numbers<[1], [0], [0], [1], [0, 0, 1, 1], [], []>} : vector<8x32xf32>, vector<32x256xf32>, vector<8x256xf32> -> vector<8x256xf32>
    %136 = vector.extract_strided_slice %135 {offsets = [0, 0], sizes = [8, 128], strides = [1, 1]} : vector<8x256xf32> to vector<8x128xf32>
    %137 = vector.extract_strided_slice %135 {offsets = [0, 128], sizes = [8, 128], strides = [1, 1]} : vector<8x256xf32> to vector<8x128xf32>
    %138 = arith.select %3, %136, %137 : vector<8x128xi1>, vector<8x128xf32>
    %c32_54 = arith.constant 32 : index
    %c0_55 = arith.constant 0 : index
    %139 = vector.load %arg17[%c32_54, %c0_55] : memref<64x128xf32, #tpu.memory_space<vmem>>, vector<8x128xf32>
    %140 = arith.addf %139, %138 : vector<8x128xf32>
    %141 = math.tanh %140 : vector<8x128xf32>
    %142 = arith.mulf %141, %11 : vector<8x128xf32>
    %143 = arith.addf %142, %14 : vector<8x128xf32>
    %144 = vector.extract_strided_slice %143 {offsets = [0, 0], sizes = [8, 32], strides = [1, 1]} : vector<8x128xf32> to vector<8x32xf32>
    %145 = vector.extract_strided_slice %143 {offsets = [0, 32], sizes = [8, 32], strides = [1, 1]} : vector<8x128xf32> to vector<8x32xf32>
    %146 = vector.extract_strided_slice %143 {offsets = [0, 64], sizes = [8, 32], strides = [1, 1]} : vector<8x128xf32> to vector<8x32xf32>
    %147 = vector.extract_strided_slice %143 {offsets = [0, 96], sizes = [8, 32], strides = [1, 1]} : vector<8x128xf32> to vector<8x32xf32>
    %148 = arith.mulf %145, %131 : vector<8x32xf32>
    %149 = arith.mulf %144, %146 : vector<8x32xf32>
    %150 = arith.addf %148, %149 : vector<8x32xf32>
    %151 = math.tanh %150 : vector<8x32xf32>
    %152 = arith.mulf %147, %151 : vector<8x32xf32>
    %c32_56 = arith.constant 32 : index
    %c0_57 = arith.constant 0 : index
    %153 = vector.load %arg18[%c32_56, %c0_57] : memref<64x32xf32, #tpu.memory_space<vmem>>, vector<8x32xf32>
    tpu.vector_store %arg18[%c32_56, %c0_57], %152 {strides = array<i32>} : memref<64x32xf32, #tpu.memory_space<vmem>>, vector<8x32xf32>,
    %cst_58 = arith.constant dense<0.000000e+00> : vector<8x256xf32>
    %154 = tpu.matmul %152, %56, %cst_58 {dimension_numbers = #tpu.dot_dimension_numbers<[1], [0], [0], [1], [0, 0, 1, 1], [], []>} : vector<8x32xf32>, vector<32x256xf32>, vector<8x256xf32> -> vector<8x256xf32>
    %155 = vector.extract_strided_slice %154 {offsets = [0, 0], sizes = [8, 128], strides = [1, 1]} : vector<8x256xf32> to vector<8x128xf32>
    %156 = vector.extract_strided_slice %154 {offsets = [0, 128], sizes = [8, 128], strides = [1, 1]} : vector<8x256xf32> to vector<8x128xf32>
    %157 = arith.select %3, %155, %156 : vector<8x128xi1>, vector<8x128xf32>
    %c40_59 = arith.constant 40 : index
    %c0_60 = arith.constant 0 : index
    %158 = vector.load %arg17[%c40_59, %c0_60] : memref<64x128xf32, #tpu.memory_space<vmem>>, vector<8x128xf32>
    %159 = arith.addf %158, %157 : vector<8x128xf32>
    %160 = math.tanh %159 : vector<8x128xf32>
    %161 = arith.mulf %160, %11 : vector<8x128xf32>
    %162 = arith.addf %161, %14 : vector<8x128xf32>
    %163 = vector.extract_strided_slice %162 {offsets = [0, 0], sizes = [8, 32], strides = [1, 1]} : vector<8x128xf32> to vector<8x32xf32>
    %164 = vector.extract_strided_slice %162 {offsets = [0, 32], sizes = [8, 32], strides = [1, 1]} : vector<8x128xf32> to vector<8x32xf32>
    %165 = vector.extract_strided_slice %162 {offsets = [0, 64], sizes = [8, 32], strides = [1, 1]} : vector<8x128xf32> to vector<8x32xf32>
    %166 = vector.extract_strided_slice %162 {offsets = [0, 96], sizes = [8, 32], strides = [1, 1]} : vector<8x128xf32> to vector<8x32xf32>
    %167 = arith.mulf %164, %150 : vector<8x32xf32>
    %168 = arith.mulf %163, %165 : vector<8x32xf32>
    %169 = arith.addf %167, %168 : vector<8x32xf32>
    %170 = math.tanh %169 : vector<8x32xf32>
    %171 = arith.mulf %166, %170 : vector<8x32xf32>
    %c40_61 = arith.constant 40 : index
    %c0_62 = arith.constant 0 : index
    %172 = vector.load %arg18[%c40_61, %c0_62] : memref<64x32xf32, #tpu.memory_space<vmem>>, vector<8x32xf32>
    tpu.vector_store %arg18[%c40_61, %c0_62], %171 {strides = array<i32>} : memref<64x32xf32, #tpu.memory_space<vmem>>, vector<8x32xf32>,
    %cst_63 = arith.constant dense<0.000000e+00> : vector<8x256xf32>
    %173 = tpu.matmul %171, %56, %cst_63 {dimension_numbers = #tpu.dot_dimension_numbers<[1], [0], [0], [1], [0, 0, 1, 1], [], []>} : vector<8x32xf32>, vector<32x256xf32>, vector<8x256xf32> -> vector<8x256xf32>
    %174 = vector.extract_strided_slice %173 {offsets = [0, 0], sizes = [8, 128], strides = [1, 1]} : vector<8x256xf32> to vector<8x128xf32>
    %175 = vector.extract_strided_slice %173 {offsets = [0, 128], sizes = [8, 128], strides = [1, 1]} : vector<8x256xf32> to vector<8x128xf32>
    %176 = arith.select %3, %174, %175 : vector<8x128xi1>, vector<8x128xf32>
    %c48_64 = arith.constant 48 : index
    %c0_65 = arith.constant 0 : index
    %177 = vector.load %arg17[%c48_64, %c0_65] : memref<64x128xf32, #tpu.memory_space<vmem>>, vector<8x128xf32>
    %178 = arith.addf %177, %176 : vector<8x128xf32>
    %179 = math.tanh %178 : vector<8x128xf32>
    %180 = arith.mulf %179, %11 : vector<8x128xf32>
    %181 = arith.addf %180, %14 : vector<8x128xf32>
    %182 = vector.extract_strided_slice %181 {offsets = [0, 0], sizes = [8, 32], strides = [1, 1]} : vector<8x128xf32> to vector<8x32xf32>
    %183 = vector.extract_strided_slice %181 {offsets = [0, 32], sizes = [8, 32], strides = [1, 1]} : vector<8x128xf32> to vector<8x32xf32>
    %184 = vector.extract_strided_slice %181 {offsets = [0, 64], sizes = [8, 32], strides = [1, 1]} : vector<8x128xf32> to vector<8x32xf32>
    %185 = vector.extract_strided_slice %181 {offsets = [0, 96], sizes = [8, 32], strides = [1, 1]} : vector<8x128xf32> to vector<8x32xf32>
    %186 = arith.mulf %183, %169 : vector<8x32xf32>
    %187 = arith.mulf %182, %184 : vector<8x32xf32>
    %188 = arith.addf %186, %187 : vector<8x32xf32>
    %189 = math.tanh %188 : vector<8x32xf32>
    %190 = arith.mulf %185, %189 : vector<8x32xf32>
    %c48_66 = arith.constant 48 : index
    %c0_67 = arith.constant 0 : index
    %191 = vector.load %arg18[%c48_66, %c0_67] : memref<64x32xf32, #tpu.memory_space<vmem>>, vector<8x32xf32>
    tpu.vector_store %arg18[%c48_66, %c0_67], %190 {strides = array<i32>} : memref<64x32xf32, #tpu.memory_space<vmem>>, vector<8x32xf32>,
    %cst_68 = arith.constant dense<0.000000e+00> : vector<8x256xf32>
    %192 = tpu.matmul %190, %56, %cst_68 {dimension_numbers = #tpu.dot_dimension_numbers<[1], [0], [0], [1], [0, 0, 1, 1], [], []>} : vector<8x32xf32>, vector<32x256xf32>, vector<8x256xf32> -> vector<8x256xf32>
    %193 = vector.extract_strided_slice %192 {offsets = [0, 0], sizes = [8, 128], strides = [1, 1]} : vector<8x256xf32> to vector<8x128xf32>
    %194 = vector.extract_strided_slice %192 {offsets = [0, 128], sizes = [8, 128], strides = [1, 1]} : vector<8x256xf32> to vector<8x128xf32>
    %195 = arith.select %3, %193, %194 : vector<8x128xi1>, vector<8x128xf32>
    %c56_69 = arith.constant 56 : index
    %c0_70 = arith.constant 0 : index
    %196 = vector.load %arg17[%c56_69, %c0_70] : memref<64x128xf32, #tpu.memory_space<vmem>>, vector<8x128xf32>
    %197 = arith.addf %196, %195 : vector<8x128xf32>
    %198 = math.tanh %197 : vector<8x128xf32>
    %199 = arith.mulf %198, %11 : vector<8x128xf32>
    %200 = arith.addf %199, %14 : vector<8x128xf32>
    %201 = vector.extract_strided_slice %200 {offsets = [0, 0], sizes = [8, 32], strides = [1, 1]} : vector<8x128xf32> to vector<8x32xf32>
    %202 = vector.extract_strided_slice %200 {offsets = [0, 32], sizes = [8, 32], strides = [1, 1]} : vector<8x128xf32> to vector<8x32xf32>
    %203 = vector.extract_strided_slice %200 {offsets = [0, 64], sizes = [8, 32], strides = [1, 1]} : vector<8x128xf32> to vector<8x32xf32>
    %204 = vector.extract_strided_slice %200 {offsets = [0, 96], sizes = [8, 32], strides = [1, 1]} : vector<8x128xf32> to vector<8x32xf32>
    %205 = arith.mulf %202, %188 : vector<8x32xf32>
    %206 = arith.mulf %201, %203 : vector<8x32xf32>
    %207 = arith.addf %205, %206 : vector<8x32xf32>
    %208 = math.tanh %207 : vector<8x32xf32>
    %209 = arith.mulf %204, %208 : vector<8x32xf32>
    %c56_71 = arith.constant 56 : index
    %c0_72 = arith.constant 0 : index
    %210 = vector.load %arg18[%c56_71, %c0_72] : memref<64x32xf32, #tpu.memory_space<vmem>>, vector<8x32xf32>
    tpu.vector_store %arg18[%c56_71, %c0_72], %209 {strides = array<i32>} : memref<64x32xf32, #tpu.memory_space<vmem>>, vector<8x32xf32>,
    %c0_73 = arith.constant 0 : index
    %c0_74 = arith.constant 0 : index
    %211 = vector.load %arg18[%c0_73, %c0_74] : memref<64x32xf32, #tpu.memory_space<vmem>>, vector<4x32xf32>
    %c0_75 = arith.constant 0 : index
    %c0_76 = arith.constant 0 : index
    %212 = vector.load %arg19[%c0_75, %c0_76] : memref<32x64xf32, #tpu.memory_space<vmem>>, vector<4x32xf32>
    tpu.vector_store %arg19[%c0_75, %c0_76], %211 {strides = array<i32>} : memref<32x64xf32, #tpu.memory_space<vmem>>, vector<4x32xf32>,
    %c60_77 = arith.constant 60 : index
    %c0_78 = arith.constant 0 : index
    %213 = vector.load %arg18[%c60_77, %c0_78] : memref<64x32xf32, #tpu.memory_space<vmem>>, vector<4x32xf32>
    %c0_79 = arith.constant 0 : index
    %c32_80 = arith.constant 32 : index
    %214 = vector.load %arg19[%c0_79, %c32_80] : memref<32x64xf32, #tpu.memory_space<vmem>>, vector<4x32xf32>
    tpu.vector_store %arg19[%c0_79, %c32_80], %213 {strides = array<i32>} : memref<32x64xf32, #tpu.memory_space<vmem>>, vector<4x32xf32>,
    %c8_81 = arith.constant 8 : index
    %c0_82 = arith.constant 0 : index
    %215 = vector.load %arg18[%c8_81, %c0_82] : memref<64x32xf32, #tpu.memory_space<vmem>>, vector<4x32xf32>
    %c4_83 = arith.constant 4 : index
    %c0_84 = arith.constant 0 : index
    %216 = vector.load %arg19[%c4_83, %c0_84] : memref<32x64xf32, #tpu.memory_space<vmem>>, vector<4x32xf32>
    tpu.vector_store %arg19[%c4_83, %c0_84], %215 {strides = array<i32>} : memref<32x64xf32, #tpu.memory_space<vmem>>, vector<4x32xf32>,
    %c52_85 = arith.constant 52 : index
    %c0_86 = arith.constant 0 : index
    %217 = vector.load %arg18[%c52_85, %c0_86] : memref<64x32xf32, #tpu.memory_space<vmem>>, vector<4x32xf32>
    %c4_87 = arith.constant 4 : index
    %c32_88 = arith.constant 32 : index
    %218 = vector.load %arg19[%c4_87, %c32_88] : memref<32x64xf32, #tpu.memory_space<vmem>>, vector<4x32xf32>
    tpu.vector_store %arg19[%c4_87, %c32_88], %217 {strides = array<i32>} : memref<32x64xf32, #tpu.memory_space<vmem>>, vector<4x32xf32>,
    %c16_89 = arith.constant 16 : index
    %c0_90 = arith.constant 0 : index
    %219 = vector.load %arg18[%c16_89, %c0_90] : memref<64x32xf32, #tpu.memory_space<vmem>>, vector<4x32xf32>
    %c8_91 = arith.constant 8 : index
    %c0_92 = arith.constant 0 : index
    %220 = vector.load %arg19[%c8_91, %c0_92] : memref<32x64xf32, #tpu.memory_space<vmem>>, vector<4x32xf32>
    tpu.vector_store %arg19[%c8_91, %c0_92], %219 {strides = array<i32>} : memref<32x64xf32, #tpu.memory_space<vmem>>, vector<4x32xf32>,
    %c44_93 = arith.constant 44 : index
    %c0_94 = arith.constant 0 : index
    %221 = vector.load %arg18[%c44_93, %c0_94] : memref<64x32xf32, #tpu.memory_space<vmem>>, vector<4x32xf32>
    %c8_95 = arith.constant 8 : index
    %c32_96 = arith.constant 32 : index
    %222 = vector.load %arg19[%c8_95, %c32_96] : memref<32x64xf32, #tpu.memory_space<vmem>>, vector<4x32xf32>
    tpu.vector_store %arg19[%c8_95, %c32_96], %221 {strides = array<i32>} : memref<32x64xf32, #tpu.memory_space<vmem>>, vector<4x32xf32>,
    %c24_97 = arith.constant 24 : index
    %c0_98 = arith.constant 0 : index
    %223 = vector.load %arg18[%c24_97, %c0_98] : memref<64x32xf32, #tpu.memory_space<vmem>>, vector<4x32xf32>
    %c12_99 = arith.constant 12 : index
    %c0_100 = arith.constant 0 : index
    %224 = vector.load %arg19[%c12_99, %c0_100] : memref<32x64xf32, #tpu.memory_space<vmem>>, vector<4x32xf32>
    tpu.vector_store %arg19[%c12_99, %c0_100], %223 {strides = array<i32>} : memref<32x64xf32, #tpu.memory_space<vmem>>, vector<4x32xf32>,
    %c36_101 = arith.constant 36 : index
    %c0_102 = arith.constant 0 : index
    %225 = vector.load %arg18[%c36_101, %c0_102] : memref<64x32xf32, #tpu.memory_space<vmem>>, vector<4x32xf32>
    %c12_103 = arith.constant 12 : index
    %c32_104 = arith.constant 32 : index
    %226 = vector.load %arg19[%c12_103, %c32_104] : memref<32x64xf32, #tpu.memory_space<vmem>>, vector<4x32xf32>
    tpu.vector_store %arg19[%c12_103, %c32_104], %225 {strides = array<i32>} : memref<32x64xf32, #tpu.memory_space<vmem>>, vector<4x32xf32>,
    %c32_105 = arith.constant 32 : index
    %c0_106 = arith.constant 0 : index
    %227 = vector.load %arg18[%c32_105, %c0_106] : memref<64x32xf32, #tpu.memory_space<vmem>>, vector<4x32xf32>
    %c16_107 = arith.constant 16 : index
    %c0_108 = arith.constant 0 : index
    %228 = vector.load %arg19[%c16_107, %c0_108] : memref<32x64xf32, #tpu.memory_space<vmem>>, vector<4x32xf32>
    tpu.vector_store %arg19[%c16_107, %c0_108], %227 {strides = array<i32>} : memref<32x64xf32, #tpu.memory_space<vmem>>, vector<4x32xf32>,
    %c28_109 = arith.constant 28 : index
    %c0_110 = arith.constant 0 : index
    %229 = vector.load %arg18[%c28_109, %c0_110] : memref<64x32xf32, #tpu.memory_space<vmem>>, vector<4x32xf32>
    %c16_111 = arith.constant 16 : index
    %c32_112 = arith.constant 32 : index
    %230 = vector.load %arg19[%c16_111, %c32_112] : memref<32x64xf32, #tpu.memory_space<vmem>>, vector<4x32xf32>
    tpu.vector_store %arg19[%c16_111, %c32_112], %229 {strides = array<i32>} : memref<32x64xf32, #tpu.memory_space<vmem>>, vector<4x32xf32>,
    %c40_113 = arith.constant 40 : index
    %c0_114 = arith.constant 0 : index
    %231 = vector.load %arg18[%c40_113, %c0_114] : memref<64x32xf32, #tpu.memory_space<vmem>>, vector<4x32xf32>
    %c20_115 = arith.constant 20 : index
    %c0_116 = arith.constant 0 : index
    %232 = vector.load %arg19[%c20_115, %c0_116] : memref<32x64xf32, #tpu.memory_space<vmem>>, vector<4x32xf32>
    tpu.vector_store %arg19[%c20_115, %c0_116], %231 {strides = array<i32>} : memref<32x64xf32, #tpu.memory_space<vmem>>, vector<4x32xf32>,
    %c20_117 = arith.constant 20 : index
    %c0_118 = arith.constant 0 : index
    %233 = vector.load %arg18[%c20_117, %c0_118] : memref<64x32xf32, #tpu.memory_space<vmem>>, vector<4x32xf32>
    %c20_119 = arith.constant 20 : index
    %c32_120 = arith.constant 32 : index
    %234 = vector.load %arg19[%c20_119, %c32_120] : memref<32x64xf32, #tpu.memory_space<vmem>>, vector<4x32xf32>
    tpu.vector_store %arg19[%c20_119, %c32_120], %233 {strides = array<i32>} : memref<32x64xf32, #tpu.memory_space<vmem>>, vector<4x32xf32>,
    %c48_121 = arith.constant 48 : index
    %c0_122 = arith.constant 0 : index
    %235 = vector.load %arg18[%c48_121, %c0_122] : memref<64x32xf32, #tpu.memory_space<vmem>>, vector<4x32xf32>
    %c24_123 = arith.constant 24 : index
    %c0_124 = arith.constant 0 : index
    %236 = vector.load %arg19[%c24_123, %c0_124] : memref<32x64xf32, #tpu.memory_space<vmem>>, vector<4x32xf32>
    tpu.vector_store %arg19[%c24_123, %c0_124], %235 {strides = array<i32>} : memref<32x64xf32, #tpu.memory_space<vmem>>, vector<4x32xf32>,
    %c12_125 = arith.constant 12 : index
    %c0_126 = arith.constant 0 : index
    %237 = vector.load %arg18[%c12_125, %c0_126] : memref<64x32xf32, #tpu.memory_space<vmem>>, vector<4x32xf32>
    %c24_127 = arith.constant 24 : index
    %c32_128 = arith.constant 32 : index
    %238 = vector.load %arg19[%c24_127, %c32_128] : memref<32x64xf32, #tpu.memory_space<vmem>>, vector<4x32xf32>
    tpu.vector_store %arg19[%c24_127, %c32_128], %237 {strides = array<i32>} : memref<32x64xf32, #tpu.memory_space<vmem>>, vector<4x32xf32>,
    %c56_129 = arith.constant 56 : index
    %c0_130 = arith.constant 0 : index
    %239 = vector.load %arg18[%c56_129, %c0_130] : memref<64x32xf32, #tpu.memory_space<vmem>>, vector<4x32xf32>
    %c28_131 = arith.constant 28 : index
    %c0_132 = arith.constant 0 : index
    %240 = vector.load %arg19[%c28_131, %c0_132] : memref<32x64xf32, #tpu.memory_space<vmem>>, vector<4x32xf32>
    tpu.vector_store %arg19[%c28_131, %c0_132], %239 {strides = array<i32>} : memref<32x64xf32, #tpu.memory_space<vmem>>, vector<4x32xf32>,
    %c4_133 = arith.constant 4 : index
    %c0_134 = arith.constant 0 : index
    %241 = vector.load %arg18[%c4_133, %c0_134] : memref<64x32xf32, #tpu.memory_space<vmem>>, vector<4x32xf32>
    %c28_135 = arith.constant 28 : index
    %c32_136 = arith.constant 32 : index
    %242 = vector.load %arg19[%c28_135, %c32_136] : memref<32x64xf32, #tpu.memory_space<vmem>>, vector<4x32xf32>
    tpu.vector_store %arg19[%c28_135, %c32_136], %241 {strides = array<i32>} : memref<32x64xf32, #tpu.memory_space<vmem>>, vector<4x32xf32>,
    %c0_137 = arith.constant 0 : index
    %c0_138 = arith.constant 0 : index
    %243 = vector.load %arg19[%c0_137, %c0_138] : memref<32x64xf32, #tpu.memory_space<vmem>>, vector<32x64xf32>
    %c1 = arith.constant 1 : index
    %c0_139 = arith.constant 0 : index
    %c0_140 = arith.constant 0 : index
    %244 = vector.load %arg1[%c1, %c0_139, %c0_140] : memref<3x64x256xf32, #tpu.memory_space<vmem>>, vector<1x64x256xf32>
    %245 = vector.shape_cast %244 : vector<1x64x256xf32> to vector<64x256xf32>
    %cst_141 = arith.constant dense<0.000000e+00> : vector<32x256xf32>
    %246 = tpu.matmul %243, %245, %cst_141 {dimension_numbers = #tpu.dot_dimension_numbers<[1], [0], [0], [1], [0, 0, 1, 1], [], []>} : vector<32x64xf32>, vector<64x256xf32>, vector<32x256xf32> -> vector<32x256xf32>
    %c1_142 = arith.constant 1 : index
    %c0_143 = arith.constant 0 : index
    %c0_144 = arith.constant 0 : index
    %247 = vector.load %arg3[%c1_142, %c0_143, %c0_144] : memref<3x1x256xf32, #tpu.memory_space<vmem>>, vector<1x1x256xf32>
    %248 = vector.shape_cast %247 : vector<1x1x256xf32> to vector<1x256xf32>
    %249 = vector.broadcast %248 : vector<1x256xf32> to vector<32x256xf32>
    %250 = arith.addf %246, %249 : vector<32x256xf32>
    %251 = vector.extract_strided_slice %250 {offsets = [0, 0], sizes = [4, 128], strides = [1, 1]} : vector<32x256xf32> to vector<4x128xf32>
    %c0_145 = arith.constant 0 : index
    %c0_146 = arith.constant 0 : index
    %252 = vector.load %arg17[%c0_145, %c0_146] : memref<64x128xf32, #tpu.memory_space<vmem>>, vector<4x128xf32>
    tpu.vector_store %arg17[%c0_145, %c0_146], %251 {strides = array<i32>} : memref<64x128xf32, #tpu.memory_space<vmem>>, vector<4x128xf32>,
    %253 = vector.extract_strided_slice %250 {offsets = [28, 128], sizes = [4, 128], strides = [1, 1]} : vector<32x256xf32> to vector<4x128xf32>
    %c4_147 = arith.constant 4 : index
    %c0_148 = arith.constant 0 : index
    %254 = vector.load %arg17[%c4_147, %c0_148] : memref<64x128xf32, #tpu.memory_space<vmem>>, vector<4x128xf32>
    tpu.vector_store %arg17[%c4_147, %c0_148], %253 {strides = array<i32>} : memref<64x128xf32, #tpu.memory_space<vmem>>, vector<4x128xf32>,
    %255 = vector.extract_strided_slice %250 {offsets = [4, 0], sizes = [4, 128], strides = [1, 1]} : vector<32x256xf32> to vector<4x128xf32>
    %c8_149 = arith.constant 8 : index
    %c0_150 = arith.constant 0 : index
    %256 = vector.load %arg17[%c8_149, %c0_150] : memref<64x128xf32, #tpu.memory_space<vmem>>, vector<4x128xf32>
    tpu.vector_store %arg17[%c8_149, %c0_150], %255 {strides = array<i32>} : memref<64x128xf32, #tpu.memory_space<vmem>>, vector<4x128xf32>,
    %257 = vector.extract_strided_slice %250 {offsets = [24, 128], sizes = [4, 128], strides = [1, 1]} : vector<32x256xf32> to vector<4x128xf32>
    %c12_151 = arith.constant 12 : index
    %c0_152 = arith.constant 0 : index
    %258 = vector.load %arg17[%c12_151, %c0_152] : memref<64x128xf32, #tpu.memory_space<vmem>>, vector<4x128xf32>
    tpu.vector_store %arg17[%c12_151, %c0_152], %257 {strides = array<i32>} : memref<64x128xf32, #tpu.memory_space<vmem>>, vector<4x128xf32>,
    %259 = vector.extract_strided_slice %250 {offsets = [8, 0], sizes = [4, 128], strides = [1, 1]} : vector<32x256xf32> to vector<4x128xf32>
    %c16_153 = arith.constant 16 : index
    %c0_154 = arith.constant 0 : index
    %260 = vector.load %arg17[%c16_153, %c0_154] : memref<64x128xf32, #tpu.memory_space<vmem>>, vector<4x128xf32>
    tpu.vector_store %arg17[%c16_153, %c0_154], %259 {strides = array<i32>} : memref<64x128xf32, #tpu.memory_space<vmem>>, vector<4x128xf32>,
    %261 = vector.extract_strided_slice %250 {offsets = [20, 128], sizes = [4, 128], strides = [1, 1]} : vector<32x256xf32> to vector<4x128xf32>
    %c20_155 = arith.constant 20 : index
    %c0_156 = arith.constant 0 : index
    %262 = vector.load %arg17[%c20_155, %c0_156] : memref<64x128xf32, #tpu.memory_space<vmem>>, vector<4x128xf32>
    tpu.vector_store %arg17[%c20_155, %c0_156], %261 {strides = array<i32>} : memref<64x128xf32, #tpu.memory_space<vmem>>, vector<4x128xf32>,
    %263 = vector.extract_strided_slice %250 {offsets = [12, 0], sizes = [4, 128], strides = [1, 1]} : vector<32x256xf32> to vector<4x128xf32>
    %c24_157 = arith.constant 24 : index
    %c0_158 = arith.constant 0 : index
    %264 = vector.load %arg17[%c24_157, %c0_158] : memref<64x128xf32, #tpu.memory_space<vmem>>, vector<4x128xf32>
    tpu.vector_store %arg17[%c24_157, %c0_158], %263 {strides = array<i32>} : memref<64x128xf32, #tpu.memory_space<vmem>>, vector<4x128xf32>,
    %265 = vector.extract_strided_slice %250 {offsets = [16, 128], sizes = [4, 128], strides = [1, 1]} : vector<32x256xf32> to vector<4x128xf32>
    %c28_159 = arith.constant 28 : index
    %c0_160 = arith.constant 0 : index
    %266 = vector.load %arg17[%c28_159, %c0_160] : memref<64x128xf32, #tpu.memory_space<vmem>>, vector<4x128xf32>
    tpu.vector_store %arg17[%c28_159, %c0_160], %265 {strides = array<i32>} : memref<64x128xf32, #tpu.memory_space<vmem>>, vector<4x128xf32>,
    %267 = vector.extract_strided_slice %250 {offsets = [16, 0], sizes = [4, 128], strides = [1, 1]} : vector<32x256xf32> to vector<4x128xf32>
    %c32_161 = arith.constant 32 : index
    %c0_162 = arith.constant 0 : index
    %268 = vector.load %arg17[%c32_161, %c0_162] : memref<64x128xf32, #tpu.memory_space<vmem>>, vector<4x128xf32>
    tpu.vector_store %arg17[%c32_161, %c0_162], %267 {strides = array<i32>} : memref<64x128xf32, #tpu.memory_space<vmem>>, vector<4x128xf32>,
    %269 = vector.extract_strided_slice %250 {offsets = [12, 128], sizes = [4, 128], strides = [1, 1]} : vector<32x256xf32> to vector<4x128xf32>
    %c36_163 = arith.constant 36 : index
    %c0_164 = arith.constant 0 : index
    %270 = vector.load %arg17[%c36_163, %c0_164] : memref<64x128xf32, #tpu.memory_space<vmem>>, vector<4x128xf32>
    tpu.vector_store %arg17[%c36_163, %c0_164], %269 {strides = array<i32>} : memref<64x128xf32, #tpu.memory_space<vmem>>, vector<4x128xf32>,
    %271 = vector.extract_strided_slice %250 {offsets = [20, 0], sizes = [4, 128], strides = [1, 1]} : vector<32x256xf32> to vector<4x128xf32>
    %c40_165 = arith.constant 40 : index
    %c0_166 = arith.constant 0 : index
    %272 = vector.load %arg17[%c40_165, %c0_166] : memref<64x128xf32, #tpu.memory_space<vmem>>, vector<4x128xf32>
    tpu.vector_store %arg17[%c40_165, %c0_166], %271 {strides = array<i32>} : memref<64x128xf32, #tpu.memory_space<vmem>>, vector<4x128xf32>,
    %273 = vector.extract_strided_slice %250 {offsets = [8, 128], sizes = [4, 128], strides = [1, 1]} : vector<32x256xf32> to vector<4x128xf32>
    %c44_167 = arith.constant 44 : index
    %c0_168 = arith.constant 0 : index
    %274 = vector.load %arg17[%c44_167, %c0_168] : memref<64x128xf32, #tpu.memory_space<vmem>>, vector<4x128xf32>
    tpu.vector_store %arg17[%c44_167, %c0_168], %273 {strides = array<i32>} : memref<64x128xf32, #tpu.memory_space<vmem>>, vector<4x128xf32>,
    %275 = vector.extract_strided_slice %250 {offsets = [24, 0], sizes = [4, 128], strides = [1, 1]} : vector<32x256xf32> to vector<4x128xf32>
    %c48_169 = arith.constant 48 : index
    %c0_170 = arith.constant 0 : index
    %276 = vector.load %arg17[%c48_169, %c0_170] : memref<64x128xf32, #tpu.memory_space<vmem>>, vector<4x128xf32>
    tpu.vector_store %arg17[%c48_169, %c0_170], %275 {strides = array<i32>} : memref<64x128xf32, #tpu.memory_space<vmem>>, vector<4x128xf32>,
    %277 = vector.extract_strided_slice %250 {offsets = [4, 128], sizes = [4, 128], strides = [1, 1]} : vector<32x256xf32> to vector<4x128xf32>
    %c52_171 = arith.constant 52 : index
    %c0_172 = arith.constant 0 : index
    %278 = vector.load %arg17[%c52_171, %c0_172] : memref<64x128xf32, #tpu.memory_space<vmem>>, vector<4x128xf32>
    tpu.vector_store %arg17[%c52_171, %c0_172], %277 {strides = array<i32>} : memref<64x128xf32, #tpu.memory_space<vmem>>, vector<4x128xf32>,
    %279 = vector.extract_strided_slice %250 {offsets = [28, 0], sizes = [4, 128], strides = [1, 1]} : vector<32x256xf32> to vector<4x128xf32>
    %c56_173 = arith.constant 56 : index
    %c0_174 = arith.constant 0 : index
    %280 = vector.load %arg17[%c56_173, %c0_174] : memref<64x128xf32, #tpu.memory_space<vmem>>, vector<4x128xf32>
    tpu.vector_store %arg17[%c56_173, %c0_174], %279 {strides = array<i32>} : memref<64x128xf32, #tpu.memory_space<vmem>>, vector<4x128xf32>,
    %281 = vector.extract_strided_slice %250 {offsets = [0, 128], sizes = [4, 128], strides = [1, 1]} : vector<32x256xf32> to vector<4x128xf32>
    %c60_175 = arith.constant 60 : index
    %c0_176 = arith.constant 0 : index
    %282 = vector.load %arg17[%c60_175, %c0_176] : memref<64x128xf32, #tpu.memory_space<vmem>>, vector<4x128xf32>
    tpu.vector_store %arg17[%c60_175, %c0_176], %281 {strides = array<i32>} : memref<64x128xf32, #tpu.memory_space<vmem>>, vector<4x128xf32>,
    %c1_177 = arith.constant 1 : index
    %c0_178 = arith.constant 0 : index
    %c0_179 = arith.constant 0 : index
    %283 = vector.load %arg2[%c1_177, %c0_178, %c0_179] : memref<3x32x256xf32, #tpu.memory_space<vmem>>, vector<1x32x256xf32>
    %284 = vector.shape_cast %283 : vector<1x32x256xf32> to vector<32x256xf32>
    %cst_180 = arith.constant 0.000000e+00 : f32
    %285 = vector.broadcast %cst_180 : f32 to vector<8x32xf32>
    %cst_181 = arith.constant 0.000000e+00 : f32
    %286 = vector.broadcast %cst_181 : f32 to vector<8x32xf32>
    %cst_182 = arith.constant dense<0.000000e+00> : vector<8x256xf32>
    %287 = tpu.matmul %285, %284, %cst_182 {dimension_numbers = #tpu.dot_dimension_numbers<[1], [0], [0], [1], [0, 0, 1, 1], [], []>} : vector<8x32xf32>, vector<32x256xf32>, vector<8x256xf32> -> vector<8x256xf32>
    %288 = vector.extract_strided_slice %287 {offsets = [0, 0], sizes = [8, 128], strides = [1, 1]} : vector<8x256xf32> to vector<8x128xf32>
    %289 = vector.extract_strided_slice %287 {offsets = [0, 128], sizes = [8, 128], strides = [1, 1]} : vector<8x256xf32> to vector<8x128xf32>
    %290 = arith.select %3, %288, %289 : vector<8x128xi1>, vector<8x128xf32>
    %c0_183 = arith.constant 0 : index
    %c0_184 = arith.constant 0 : index
    %291 = vector.load %arg17[%c0_183, %c0_184] : memref<64x128xf32, #tpu.memory_space<vmem>>, vector<8x128xf32>
    %292 = arith.addf %291, %290 : vector<8x128xf32>
    %293 = math.tanh %292 : vector<8x128xf32>
    %294 = arith.mulf %293, %11 : vector<8x128xf32>
    %295 = arith.addf %294, %14 : vector<8x128xf32>
    %296 = vector.extract_strided_slice %295 {offsets = [0, 0], sizes = [8, 32], strides = [1, 1]} : vector<8x128xf32> to vector<8x32xf32>
    %297 = vector.extract_strided_slice %295 {offsets = [0, 32], sizes = [8, 32], strides = [1, 1]} : vector<8x128xf32> to vector<8x32xf32>
    %298 = vector.extract_strided_slice %295 {offsets = [0, 64], sizes = [8, 32], strides = [1, 1]} : vector<8x128xf32> to vector<8x32xf32>
    %299 = vector.extract_strided_slice %295 {offsets = [0, 96], sizes = [8, 32], strides = [1, 1]} : vector<8x128xf32> to vector<8x32xf32>
    %300 = arith.mulf %297, %286 : vector<8x32xf32>
    %301 = arith.mulf %296, %298 : vector<8x32xf32>
    %302 = arith.addf %300, %301 : vector<8x32xf32>
    %303 = math.tanh %302 : vector<8x32xf32>
    %304 = arith.mulf %299, %303 : vector<8x32xf32>
    %c0_185 = arith.constant 0 : index
    %c0_186 = arith.constant 0 : index
    %305 = vector.load %arg18[%c0_185, %c0_186] : memref<64x32xf32, #tpu.memory_space<vmem>>, vector<8x32xf32>
    tpu.vector_store %arg18[%c0_185, %c0_186], %304 {strides = array<i32>} : memref<64x32xf32, #tpu.memory_space<vmem>>, vector<8x32xf32>,
    %cst_187 = arith.constant dense<0.000000e+00> : vector<8x256xf32>
    %306 = tpu.matmul %304, %284, %cst_187 {dimension_numbers = #tpu.dot_dimension_numbers<[1], [0], [0], [1], [0, 0, 1, 1], [], []>} : vector<8x32xf32>, vector<32x256xf32>, vector<8x256xf32> -> vector<8x256xf32>
    %307 = vector.extract_strided_slice %306 {offsets = [0, 0], sizes = [8, 128], strides = [1, 1]} : vector<8x256xf32> to vector<8x128xf32>
    %308 = vector.extract_strided_slice %306 {offsets = [0, 128], sizes = [8, 128], strides = [1, 1]} : vector<8x256xf32> to vector<8x128xf32>
    %309 = arith.select %3, %307, %308 : vector<8x128xi1>, vector<8x128xf32>
    %c8_188 = arith.constant 8 : index
    %c0_189 = arith.constant 0 : index
    %310 = vector.load %arg17[%c8_188, %c0_189] : memref<64x128xf32, #tpu.memory_space<vmem>>, vector<8x128xf32>
    %311 = arith.addf %310, %309 : vector<8x128xf32>
    %312 = math.tanh %311 : vector<8x128xf32>
    %313 = arith.mulf %312, %11 : vector<8x128xf32>
    %314 = arith.addf %313, %14 : vector<8x128xf32>
    %315 = vector.extract_strided_slice %314 {offsets = [0, 0], sizes = [8, 32], strides = [1, 1]} : vector<8x128xf32> to vector<8x32xf32>
    %316 = vector.extract_strided_slice %314 {offsets = [0, 32], sizes = [8, 32], strides = [1, 1]} : vector<8x128xf32> to vector<8x32xf32>
    %317 = vector.extract_strided_slice %314 {offsets = [0, 64], sizes = [8, 32], strides = [1, 1]} : vector<8x128xf32> to vector<8x32xf32>
    %318 = vector.extract_strided_slice %314 {offsets = [0, 96], sizes = [8, 32], strides = [1, 1]} : vector<8x128xf32> to vector<8x32xf32>
    %319 = arith.mulf %316, %302 : vector<8x32xf32>
    %320 = arith.mulf %315, %317 : vector<8x32xf32>
    %321 = arith.addf %319, %320 : vector<8x32xf32>
    %322 = math.tanh %321 : vector<8x32xf32>
    %323 = arith.mulf %318, %322 : vector<8x32xf32>
    %c8_190 = arith.constant 8 : index
    %c0_191 = arith.constant 0 : index
    %324 = vector.load %arg18[%c8_190, %c0_191] : memref<64x32xf32, #tpu.memory_space<vmem>>, vector<8x32xf32>
    tpu.vector_store %arg18[%c8_190, %c0_191], %323 {strides = array<i32>} : memref<64x32xf32, #tpu.memory_space<vmem>>, vector<8x32xf32>,
    %cst_192 = arith.constant dense<0.000000e+00> : vector<8x256xf32>
    %325 = tpu.matmul %323, %284, %cst_192 {dimension_numbers = #tpu.dot_dimension_numbers<[1], [0], [0], [1], [0, 0, 1, 1], [], []>} : vector<8x32xf32>, vector<32x256xf32>, vector<8x256xf32> -> vector<8x256xf32>
    %326 = vector.extract_strided_slice %325 {offsets = [0, 0], sizes = [8, 128], strides = [1, 1]} : vector<8x256xf32> to vector<8x128xf32>
    %327 = vector.extract_strided_slice %325 {offsets = [0, 128], sizes = [8, 128], strides = [1, 1]} : vector<8x256xf32> to vector<8x128xf32>
    %328 = arith.select %3, %326, %327 : vector<8x128xi1>, vector<8x128xf32>
    %c16_193 = arith.constant 16 : index
    %c0_194 = arith.constant 0 : index
    %329 = vector.load %arg17[%c16_193, %c0_194] : memref<64x128xf32, #tpu.memory_space<vmem>>, vector<8x128xf32>
    %330 = arith.addf %329, %328 : vector<8x128xf32>
    %331 = math.tanh %330 : vector<8x128xf32>
    %332 = arith.mulf %331, %11 : vector<8x128xf32>
    %333 = arith.addf %332, %14 : vector<8x128xf32>
    %334 = vector.extract_strided_slice %333 {offsets = [0, 0], sizes = [8, 32], strides = [1, 1]} : vector<8x128xf32> to vector<8x32xf32>
    %335 = vector.extract_strided_slice %333 {offsets = [0, 32], sizes = [8, 32], strides = [1, 1]} : vector<8x128xf32> to vector<8x32xf32>
    %336 = vector.extract_strided_slice %333 {offsets = [0, 64], sizes = [8, 32], strides = [1, 1]} : vector<8x128xf32> to vector<8x32xf32>
    %337 = vector.extract_strided_slice %333 {offsets = [0, 96], sizes = [8, 32], strides = [1, 1]} : vector<8x128xf32> to vector<8x32xf32>
    %338 = arith.mulf %335, %321 : vector<8x32xf32>
    %339 = arith.mulf %334, %336 : vector<8x32xf32>
    %340 = arith.addf %338, %339 : vector<8x32xf32>
    %341 = math.tanh %340 : vector<8x32xf32>
    %342 = arith.mulf %337, %341 : vector<8x32xf32>
    %c16_195 = arith.constant 16 : index
    %c0_196 = arith.constant 0 : index
    %343 = vector.load %arg18[%c16_195, %c0_196] : memref<64x32xf32, #tpu.memory_space<vmem>>, vector<8x32xf32>
    tpu.vector_store %arg18[%c16_195, %c0_196], %342 {strides = array<i32>} : memref<64x32xf32, #tpu.memory_space<vmem>>, vector<8x32xf32>,
    %cst_197 = arith.constant dense<0.000000e+00> : vector<8x256xf32>
    %344 = tpu.matmul %342, %284, %cst_197 {dimension_numbers = #tpu.dot_dimension_numbers<[1], [0], [0], [1], [0, 0, 1, 1], [], []>} : vector<8x32xf32>, vector<32x256xf32>, vector<8x256xf32> -> vector<8x256xf32>
    %345 = vector.extract_strided_slice %344 {offsets = [0, 0], sizes = [8, 128], strides = [1, 1]} : vector<8x256xf32> to vector<8x128xf32>
    %346 = vector.extract_strided_slice %344 {offsets = [0, 128], sizes = [8, 128], strides = [1, 1]} : vector<8x256xf32> to vector<8x128xf32>
    %347 = arith.select %3, %345, %346 : vector<8x128xi1>, vector<8x128xf32>
    %c24_198 = arith.constant 24 : index
    %c0_199 = arith.constant 0 : index
    %348 = vector.load %arg17[%c24_198, %c0_199] : memref<64x128xf32, #tpu.memory_space<vmem>>, vector<8x128xf32>
    %349 = arith.addf %348, %347 : vector<8x128xf32>
    %350 = math.tanh %349 : vector<8x128xf32>
    %351 = arith.mulf %350, %11 : vector<8x128xf32>
    %352 = arith.addf %351, %14 : vector<8x128xf32>
    %353 = vector.extract_strided_slice %352 {offsets = [0, 0], sizes = [8, 32], strides = [1, 1]} : vector<8x128xf32> to vector<8x32xf32>
    %354 = vector.extract_strided_slice %352 {offsets = [0, 32], sizes = [8, 32], strides = [1, 1]} : vector<8x128xf32> to vector<8x32xf32>
    %355 = vector.extract_strided_slice %352 {offsets = [0, 64], sizes = [8, 32], strides = [1, 1]} : vector<8x128xf32> to vector<8x32xf32>
    %356 = vector.extract_strided_slice %352 {offsets = [0, 96], sizes = [8, 32], strides = [1, 1]} : vector<8x128xf32> to vector<8x32xf32>
    %357 = arith.mulf %354, %340 : vector<8x32xf32>
    %358 = arith.mulf %353, %355 : vector<8x32xf32>
    %359 = arith.addf %357, %358 : vector<8x32xf32>
    %360 = math.tanh %359 : vector<8x32xf32>
    %361 = arith.mulf %356, %360 : vector<8x32xf32>
    %c24_200 = arith.constant 24 : index
    %c0_201 = arith.constant 0 : index
    %362 = vector.load %arg18[%c24_200, %c0_201] : memref<64x32xf32, #tpu.memory_space<vmem>>, vector<8x32xf32>
    tpu.vector_store %arg18[%c24_200, %c0_201], %361 {strides = array<i32>} : memref<64x32xf32, #tpu.memory_space<vmem>>, vector<8x32xf32>,
    %cst_202 = arith.constant dense<0.000000e+00> : vector<8x256xf32>
    %363 = tpu.matmul %361, %284, %cst_202 {dimension_numbers = #tpu.dot_dimension_numbers<[1], [0], [0], [1], [0, 0, 1, 1], [], []>} : vector<8x32xf32>, vector<32x256xf32>, vector<8x256xf32> -> vector<8x256xf32>
    %364 = vector.extract_strided_slice %363 {offsets = [0, 0], sizes = [8, 128], strides = [1, 1]} : vector<8x256xf32> to vector<8x128xf32>
    %365 = vector.extract_strided_slice %363 {offsets = [0, 128], sizes = [8, 128], strides = [1, 1]} : vector<8x256xf32> to vector<8x128xf32>
    %366 = arith.select %3, %364, %365 : vector<8x128xi1>, vector<8x128xf32>
    %c32_203 = arith.constant 32 : index
    %c0_204 = arith.constant 0 : index
    %367 = vector.load %arg17[%c32_203, %c0_204] : memref<64x128xf32, #tpu.memory_space<vmem>>, vector<8x128xf32>
    %368 = arith.addf %367, %366 : vector<8x128xf32>
    %369 = math.tanh %368 : vector<8x128xf32>
    %370 = arith.mulf %369, %11 : vector<8x128xf32>
    %371 = arith.addf %370, %14 : vector<8x128xf32>
    %372 = vector.extract_strided_slice %371 {offsets = [0, 0], sizes = [8, 32], strides = [1, 1]} : vector<8x128xf32> to vector<8x32xf32>
    %373 = vector.extract_strided_slice %371 {offsets = [0, 32], sizes = [8, 32], strides = [1, 1]} : vector<8x128xf32> to vector<8x32xf32>
    %374 = vector.extract_strided_slice %371 {offsets = [0, 64], sizes = [8, 32], strides = [1, 1]} : vector<8x128xf32> to vector<8x32xf32>
    %375 = vector.extract_strided_slice %371 {offsets = [0, 96], sizes = [8, 32], strides = [1, 1]} : vector<8x128xf32> to vector<8x32xf32>
    %376 = arith.mulf %373, %359 : vector<8x32xf32>
    %377 = arith.mulf %372, %374 : vector<8x32xf32>
    %378 = arith.addf %376, %377 : vector<8x32xf32>
    %379 = math.tanh %378 : vector<8x32xf32>
    %380 = arith.mulf %375, %379 : vector<8x32xf32>
    %c32_205 = arith.constant 32 : index
    %c0_206 = arith.constant 0 : index
    %381 = vector.load %arg18[%c32_205, %c0_206] : memref<64x32xf32, #tpu.memory_space<vmem>>, vector<8x32xf32>
    tpu.vector_store %arg18[%c32_205, %c0_206], %380 {strides = array<i32>} : memref<64x32xf32, #tpu.memory_space<vmem>>, vector<8x32xf32>,
    %cst_207 = arith.constant dense<0.000000e+00> : vector<8x256xf32>
    %382 = tpu.matmul %380, %284, %cst_207 {dimension_numbers = #tpu.dot_dimension_numbers<[1], [0], [0], [1], [0, 0, 1, 1], [], []>} : vector<8x32xf32>, vector<32x256xf32>, vector<8x256xf32> -> vector<8x256xf32>
    %383 = vector.extract_strided_slice %382 {offsets = [0, 0], sizes = [8, 128], strides = [1, 1]} : vector<8x256xf32> to vector<8x128xf32>
    %384 = vector.extract_strided_slice %382 {offsets = [0, 128], sizes = [8, 128], strides = [1, 1]} : vector<8x256xf32> to vector<8x128xf32>
    %385 = arith.select %3, %383, %384 : vector<8x128xi1>, vector<8x128xf32>
    %c40_208 = arith.constant 40 : index
    %c0_209 = arith.constant 0 : index
    %386 = vector.load %arg17[%c40_208, %c0_209] : memref<64x128xf32, #tpu.memory_space<vmem>>, vector<8x128xf32>
    %387 = arith.addf %386, %385 : vector<8x128xf32>
    %388 = math.tanh %387 : vector<8x128xf32>
    %389 = arith.mulf %388, %11 : vector<8x128xf32>
    %390 = arith.addf %389, %14 : vector<8x128xf32>
    %391 = vector.extract_strided_slice %390 {offsets = [0, 0], sizes = [8, 32], strides = [1, 1]} : vector<8x128xf32> to vector<8x32xf32>
    %392 = vector.extract_strided_slice %390 {offsets = [0, 32], sizes = [8, 32], strides = [1, 1]} : vector<8x128xf32> to vector<8x32xf32>
    %393 = vector.extract_strided_slice %390 {offsets = [0, 64], sizes = [8, 32], strides = [1, 1]} : vector<8x128xf32> to vector<8x32xf32>
    %394 = vector.extract_strided_slice %390 {offsets = [0, 96], sizes = [8, 32], strides = [1, 1]} : vector<8x128xf32> to vector<8x32xf32>
    %395 = arith.mulf %392, %378 : vector<8x32xf32>
    %396 = arith.mulf %391, %393 : vector<8x32xf32>
    %397 = arith.addf %395, %396 : vector<8x32xf32>
    %398 = math.tanh %397 : vector<8x32xf32>
    %399 = arith.mulf %394, %398 : vector<8x32xf32>
    %c40_210 = arith.constant 40 : index
    %c0_211 = arith.constant 0 : index
    %400 = vector.load %arg18[%c40_210, %c0_211] : memref<64x32xf32, #tpu.memory_space<vmem>>, vector<8x32xf32>
    tpu.vector_store %arg18[%c40_210, %c0_211], %399 {strides = array<i32>} : memref<64x32xf32, #tpu.memory_space<vmem>>, vector<8x32xf32>,
    %cst_212 = arith.constant dense<0.000000e+00> : vector<8x256xf32>
    %401 = tpu.matmul %399, %284, %cst_212 {dimension_numbers = #tpu.dot_dimension_numbers<[1], [0], [0], [1], [0, 0, 1, 1], [], []>} : vector<8x32xf32>, vector<32x256xf32>, vector<8x256xf32> -> vector<8x256xf32>
    %402 = vector.extract_strided_slice %401 {offsets = [0, 0], sizes = [8, 128], strides = [1, 1]} : vector<8x256xf32> to vector<8x128xf32>
    %403 = vector.extract_strided_slice %401 {offsets = [0, 128], sizes = [8, 128], strides = [1, 1]} : vector<8x256xf32> to vector<8x128xf32>
    %404 = arith.select %3, %402, %403 : vector<8x128xi1>, vector<8x128xf32>
    %c48_213 = arith.constant 48 : index
    %c0_214 = arith.constant 0 : index
    %405 = vector.load %arg17[%c48_213, %c0_214] : memref<64x128xf32, #tpu.memory_space<vmem>>, vector<8x128xf32>
    %406 = arith.addf %405, %404 : vector<8x128xf32>
    %407 = math.tanh %406 : vector<8x128xf32>
    %408 = arith.mulf %407, %11 : vector<8x128xf32>
    %409 = arith.addf %408, %14 : vector<8x128xf32>
    %410 = vector.extract_strided_slice %409 {offsets = [0, 0], sizes = [8, 32], strides = [1, 1]} : vector<8x128xf32> to vector<8x32xf32>
    %411 = vector.extract_strided_slice %409 {offsets = [0, 32], sizes = [8, 32], strides = [1, 1]} : vector<8x128xf32> to vector<8x32xf32>
    %412 = vector.extract_strided_slice %409 {offsets = [0, 64], sizes = [8, 32], strides = [1, 1]} : vector<8x128xf32> to vector<8x32xf32>
    %413 = vector.extract_strided_slice %409 {offsets = [0, 96], sizes = [8, 32], strides = [1, 1]} : vector<8x128xf32> to vector<8x32xf32>
    %414 = arith.mulf %411, %397 : vector<8x32xf32>
    %415 = arith.mulf %410, %412 : vector<8x32xf32>
    %416 = arith.addf %414, %415 : vector<8x32xf32>
    %417 = math.tanh %416 : vector<8x32xf32>
    %418 = arith.mulf %413, %417 : vector<8x32xf32>
    %c48_215 = arith.constant 48 : index
    %c0_216 = arith.constant 0 : index
    %419 = vector.load %arg18[%c48_215, %c0_216] : memref<64x32xf32, #tpu.memory_space<vmem>>, vector<8x32xf32>
    tpu.vector_store %arg18[%c48_215, %c0_216], %418 {strides = array<i32>} : memref<64x32xf32, #tpu.memory_space<vmem>>, vector<8x32xf32>,
    %cst_217 = arith.constant dense<0.000000e+00> : vector<8x256xf32>
    %420 = tpu.matmul %418, %284, %cst_217 {dimension_numbers = #tpu.dot_dimension_numbers<[1], [0], [0], [1], [0, 0, 1, 1], [], []>} : vector<8x32xf32>, vector<32x256xf32>, vector<8x256xf32> -> vector<8x256xf32>
    %421 = vector.extract_strided_slice %420 {offsets = [0, 0], sizes = [8, 128], strides = [1, 1]} : vector<8x256xf32> to vector<8x128xf32>
    %422 = vector.extract_strided_slice %420 {offsets = [0, 128], sizes = [8, 128], strides = [1, 1]} : vector<8x256xf32> to vector<8x128xf32>
    %423 = arith.select %3, %421, %422 : vector<8x128xi1>, vector<8x128xf32>
    %c56_218 = arith.constant 56 : index
    %c0_219 = arith.constant 0 : index
    %424 = vector.load %arg17[%c56_218, %c0_219] : memref<64x128xf32, #tpu.memory_space<vmem>>, vector<8x128xf32>
    %425 = arith.addf %424, %423 : vector<8x128xf32>
    %426 = math.tanh %425 : vector<8x128xf32>
    %427 = arith.mulf %426, %11 : vector<8x128xf32>
    %428 = arith.addf %427, %14 : vector<8x128xf32>
    %429 = vector.extract_strided_slice %428 {offsets = [0, 0], sizes = [8, 32], strides = [1, 1]} : vector<8x128xf32> to vector<8x32xf32>
    %430 = vector.extract_strided_slice %428 {offsets = [0, 32], sizes = [8, 32], strides = [1, 1]} : vector<8x128xf32> to vector<8x32xf32>
    %431 = vector.extract_strided_slice %428 {offsets = [0, 64], sizes = [8, 32], strides = [1, 1]} : vector<8x128xf32> to vector<8x32xf32>
    %432 = vector.extract_strided_slice %428 {offsets = [0, 96], sizes = [8, 32], strides = [1, 1]} : vector<8x128xf32> to vector<8x32xf32>
    %433 = arith.mulf %430, %416 : vector<8x32xf32>
    %434 = arith.mulf %429, %431 : vector<8x32xf32>
    %435 = arith.addf %433, %434 : vector<8x32xf32>
    %436 = math.tanh %435 : vector<8x32xf32>
    %437 = arith.mulf %432, %436 : vector<8x32xf32>
    %c56_220 = arith.constant 56 : index
    %c0_221 = arith.constant 0 : index
    %438 = vector.load %arg18[%c56_220, %c0_221] : memref<64x32xf32, #tpu.memory_space<vmem>>, vector<8x32xf32>
    tpu.vector_store %arg18[%c56_220, %c0_221], %437 {strides = array<i32>} : memref<64x32xf32, #tpu.memory_space<vmem>>, vector<8x32xf32>,
    %c0_222 = arith.constant 0 : index
    %c0_223 = arith.constant 0 : index
    %439 = vector.load %arg18[%c0_222, %c0_223] : memref<64x32xf32, #tpu.memory_space<vmem>>, vector<4x32xf32>
    %c0_224 = arith.constant 0 : index
    %c0_225 = arith.constant 0 : index
    %440 = vector.load %arg19[%c0_224, %c0_225] : memref<32x64xf32, #tpu.memory_space<vmem>>, vector<4x32xf32>
    tpu.vector_store %arg19[%c0_224, %c0_225], %439 {strides = array<i32>} : memref<32x64xf32, #tpu.memory_space<vmem>>, vector<4x32xf32>,
    %c60_226 = arith.constant 60 : index
    %c0_227 = arith.constant 0 : index
    %441 = vector.load %arg18[%c60_226, %c0_227] : memref<64x32xf32, #tpu.memory_space<vmem>>, vector<4x32xf32>
    %c0_228 = arith.constant 0 : index
    %c32_229 = arith.constant 32 : index
    %442 = vector.load %arg19[%c0_228, %c32_229] : memref<32x64xf32, #tpu.memory_space<vmem>>, vector<4x32xf32>
    tpu.vector_store %arg19[%c0_228, %c32_229], %441 {strides = array<i32>} : memref<32x64xf32, #tpu.memory_space<vmem>>, vector<4x32xf32>,
    %c8_230 = arith.constant 8 : index
    %c0_231 = arith.constant 0 : index
    %443 = vector.load %arg18[%c8_230, %c0_231] : memref<64x32xf32, #tpu.memory_space<vmem>>, vector<4x32xf32>
    %c4_232 = arith.constant 4 : index
    %c0_233 = arith.constant 0 : index
    %444 = vector.load %arg19[%c4_232, %c0_233] : memref<32x64xf32, #tpu.memory_space<vmem>>, vector<4x32xf32>
    tpu.vector_store %arg19[%c4_232, %c0_233], %443 {strides = array<i32>} : memref<32x64xf32, #tpu.memory_space<vmem>>, vector<4x32xf32>,
    %c52_234 = arith.constant 52 : index
    %c0_235 = arith.constant 0 : index
    %445 = vector.load %arg18[%c52_234, %c0_235] : memref<64x32xf32, #tpu.memory_space<vmem>>, vector<4x32xf32>
    %c4_236 = arith.constant 4 : index
    %c32_237 = arith.constant 32 : index
    %446 = vector.load %arg19[%c4_236, %c32_237] : memref<32x64xf32, #tpu.memory_space<vmem>>, vector<4x32xf32>
    tpu.vector_store %arg19[%c4_236, %c32_237], %445 {strides = array<i32>} : memref<32x64xf32, #tpu.memory_space<vmem>>, vector<4x32xf32>,
    %c16_238 = arith.constant 16 : index
    %c0_239 = arith.constant 0 : index
    %447 = vector.load %arg18[%c16_238, %c0_239] : memref<64x32xf32, #tpu.memory_space<vmem>>, vector<4x32xf32>
    %c8_240 = arith.constant 8 : index
    %c0_241 = arith.constant 0 : index
    %448 = vector.load %arg19[%c8_240, %c0_241] : memref<32x64xf32, #tpu.memory_space<vmem>>, vector<4x32xf32>
    tpu.vector_store %arg19[%c8_240, %c0_241], %447 {strides = array<i32>} : memref<32x64xf32, #tpu.memory_space<vmem>>, vector<4x32xf32>,
    %c44_242 = arith.constant 44 : index
    %c0_243 = arith.constant 0 : index
    %449 = vector.load %arg18[%c44_242, %c0_243] : memref<64x32xf32, #tpu.memory_space<vmem>>, vector<4x32xf32>
    %c8_244 = arith.constant 8 : index
    %c32_245 = arith.constant 32 : index
    %450 = vector.load %arg19[%c8_244, %c32_245] : memref<32x64xf32, #tpu.memory_space<vmem>>, vector<4x32xf32>
    tpu.vector_store %arg19[%c8_244, %c32_245], %449 {strides = array<i32>} : memref<32x64xf32, #tpu.memory_space<vmem>>, vector<4x32xf32>,
    %c24_246 = arith.constant 24 : index
    %c0_247 = arith.constant 0 : index
    %451 = vector.load %arg18[%c24_246, %c0_247] : memref<64x32xf32, #tpu.memory_space<vmem>>, vector<4x32xf32>
    %c12_248 = arith.constant 12 : index
    %c0_249 = arith.constant 0 : index
    %452 = vector.load %arg19[%c12_248, %c0_249] : memref<32x64xf32, #tpu.memory_space<vmem>>, vector<4x32xf32>
    tpu.vector_store %arg19[%c12_248, %c0_249], %451 {strides = array<i32>} : memref<32x64xf32, #tpu.memory_space<vmem>>, vector<4x32xf32>,
    %c36_250 = arith.constant 36 : index
    %c0_251 = arith.constant 0 : index
    %453 = vector.load %arg18[%c36_250, %c0_251] : memref<64x32xf32, #tpu.memory_space<vmem>>, vector<4x32xf32>
    %c12_252 = arith.constant 12 : index
    %c32_253 = arith.constant 32 : index
    %454 = vector.load %arg19[%c12_252, %c32_253] : memref<32x64xf32, #tpu.memory_space<vmem>>, vector<4x32xf32>
    tpu.vector_store %arg19[%c12_252, %c32_253], %453 {strides = array<i32>} : memref<32x64xf32, #tpu.memory_space<vmem>>, vector<4x32xf32>,
    %c32_254 = arith.constant 32 : index
    %c0_255 = arith.constant 0 : index
    %455 = vector.load %arg18[%c32_254, %c0_255] : memref<64x32xf32, #tpu.memory_space<vmem>>, vector<4x32xf32>
    %c16_256 = arith.constant 16 : index
    %c0_257 = arith.constant 0 : index
    %456 = vector.load %arg19[%c16_256, %c0_257] : memref<32x64xf32, #tpu.memory_space<vmem>>, vector<4x32xf32>
    tpu.vector_store %arg19[%c16_256, %c0_257], %455 {strides = array<i32>} : memref<32x64xf32, #tpu.memory_space<vmem>>, vector<4x32xf32>,
    %c28_258 = arith.constant 28 : index
    %c0_259 = arith.constant 0 : index
    %457 = vector.load %arg18[%c28_258, %c0_259] : memref<64x32xf32, #tpu.memory_space<vmem>>, vector<4x32xf32>
    %c16_260 = arith.constant 16 : index
    %c32_261 = arith.constant 32 : index
    %458 = vector.load %arg19[%c16_260, %c32_261] : memref<32x64xf32, #tpu.memory_space<vmem>>, vector<4x32xf32>
    tpu.vector_store %arg19[%c16_260, %c32_261], %457 {strides = array<i32>} : memref<32x64xf32, #tpu.memory_space<vmem>>, vector<4x32xf32>,
    %c40_262 = arith.constant 40 : index
    %c0_263 = arith.constant 0 : index
    %459 = vector.load %arg18[%c40_262, %c0_263] : memref<64x32xf32, #tpu.memory_space<vmem>>, vector<4x32xf32>
    %c20_264 = arith.constant 20 : index
    %c0_265 = arith.constant 0 : index
    %460 = vector.load %arg19[%c20_264, %c0_265] : memref<32x64xf32, #tpu.memory_space<vmem>>, vector<4x32xf32>
    tpu.vector_store %arg19[%c20_264, %c0_265], %459 {strides = array<i32>} : memref<32x64xf32, #tpu.memory_space<vmem>>, vector<4x32xf32>,
    %c20_266 = arith.constant 20 : index
    %c0_267 = arith.constant 0 : index
    %461 = vector.load %arg18[%c20_266, %c0_267] : memref<64x32xf32, #tpu.memory_space<vmem>>, vector<4x32xf32>
    %c20_268 = arith.constant 20 : index
    %c32_269 = arith.constant 32 : index
    %462 = vector.load %arg19[%c20_268, %c32_269] : memref<32x64xf32, #tpu.memory_space<vmem>>, vector<4x32xf32>
    tpu.vector_store %arg19[%c20_268, %c32_269], %461 {strides = array<i32>} : memref<32x64xf32, #tpu.memory_space<vmem>>, vector<4x32xf32>,
    %c48_270 = arith.constant 48 : index
    %c0_271 = arith.constant 0 : index
    %463 = vector.load %arg18[%c48_270, %c0_271] : memref<64x32xf32, #tpu.memory_space<vmem>>, vector<4x32xf32>
    %c24_272 = arith.constant 24 : index
    %c0_273 = arith.constant 0 : index
    %464 = vector.load %arg19[%c24_272, %c0_273] : memref<32x64xf32, #tpu.memory_space<vmem>>, vector<4x32xf32>
    tpu.vector_store %arg19[%c24_272, %c0_273], %463 {strides = array<i32>} : memref<32x64xf32, #tpu.memory_space<vmem>>, vector<4x32xf32>,
    %c12_274 = arith.constant 12 : index
    %c0_275 = arith.constant 0 : index
    %465 = vector.load %arg18[%c12_274, %c0_275] : memref<64x32xf32, #tpu.memory_space<vmem>>, vector<4x32xf32>
    %c24_276 = arith.constant 24 : index
    %c32_277 = arith.constant 32 : index
    %466 = vector.load %arg19[%c24_276, %c32_277] : memref<32x64xf32, #tpu.memory_space<vmem>>, vector<4x32xf32>
    tpu.vector_store %arg19[%c24_276, %c32_277], %465 {strides = array<i32>} : memref<32x64xf32, #tpu.memory_space<vmem>>, vector<4x32xf32>,
    %c56_278 = arith.constant 56 : index
    %c0_279 = arith.constant 0 : index
    %467 = vector.load %arg18[%c56_278, %c0_279] : memref<64x32xf32, #tpu.memory_space<vmem>>, vector<4x32xf32>
    %c28_280 = arith.constant 28 : index
    %c0_281 = arith.constant 0 : index
    %468 = vector.load %arg19[%c28_280, %c0_281] : memref<32x64xf32, #tpu.memory_space<vmem>>, vector<4x32xf32>
    tpu.vector_store %arg19[%c28_280, %c0_281], %467 {strides = array<i32>} : memref<32x64xf32, #tpu.memory_space<vmem>>, vector<4x32xf32>,
    %c4_282 = arith.constant 4 : index
    %c0_283 = arith.constant 0 : index
    %469 = vector.load %arg18[%c4_282, %c0_283] : memref<64x32xf32, #tpu.memory_space<vmem>>, vector<4x32xf32>
    %c28_284 = arith.constant 28 : index
    %c32_285 = arith.constant 32 : index
    %470 = vector.load %arg19[%c28_284, %c32_285] : memref<32x64xf32, #tpu.memory_space<vmem>>, vector<4x32xf32>
    tpu.vector_store %arg19[%c28_284, %c32_285], %469 {strides = array<i32>} : memref<32x64xf32, #tpu.memory_space<vmem>>, vector<4x32xf32>,
    %c0_286 = arith.constant 0 : index
    %c0_287 = arith.constant 0 : index
    %471 = vector.load %arg19[%c0_286, %c0_287] : memref<32x64xf32, #tpu.memory_space<vmem>>, vector<32x64xf32>
    %c2 = arith.constant 2 : index
    %c0_288 = arith.constant 0 : index
    %c0_289 = arith.constant 0 : index
    %472 = vector.load %arg1[%c2, %c0_288, %c0_289] : memref<3x64x256xf32, #tpu.memory_space<vmem>>, vector<1x64x256xf32>
    %473 = vector.shape_cast %472 : vector<1x64x256xf32> to vector<64x256xf32>
    %cst_290 = arith.constant dense<0.000000e+00> : vector<32x256xf32>
    %474 = tpu.matmul %471, %473, %cst_290 {dimension_numbers = #tpu.dot_dimension_numbers<[1], [0], [0], [1], [0, 0, 1, 1], [], []>} : vector<32x64xf32>, vector<64x256xf32>, vector<32x256xf32> -> vector<32x256xf32>
    %c2_291 = arith.constant 2 : index
    %c0_292 = arith.constant 0 : index
    %c0_293 = arith.constant 0 : index
    %475 = vector.load %arg3[%c2_291, %c0_292, %c0_293] : memref<3x1x256xf32, #tpu.memory_space<vmem>>, vector<1x1x256xf32>
    %476 = vector.shape_cast %475 : vector<1x1x256xf32> to vector<1x256xf32>
    %477 = vector.broadcast %476 : vector<1x256xf32> to vector<32x256xf32>
    %478 = arith.addf %474, %477 : vector<32x256xf32>
    %479 = vector.extract_strided_slice %478 {offsets = [0, 0], sizes = [4, 128], strides = [1, 1]} : vector<32x256xf32> to vector<4x128xf32>
    %c0_294 = arith.constant 0 : index
    %c0_295 = arith.constant 0 : index
    %480 = vector.load %arg17[%c0_294, %c0_295] : memref<64x128xf32, #tpu.memory_space<vmem>>, vector<4x128xf32>
    tpu.vector_store %arg17[%c0_294, %c0_295], %479 {strides = array<i32>} : memref<64x128xf32, #tpu.memory_space<vmem>>, vector<4x128xf32>,
    %481 = vector.extract_strided_slice %478 {offsets = [28, 128], sizes = [4, 128], strides = [1, 1]} : vector<32x256xf32> to vector<4x128xf32>
    %c4_296 = arith.constant 4 : index
    %c0_297 = arith.constant 0 : index
    %482 = vector.load %arg17[%c4_296, %c0_297] : memref<64x128xf32, #tpu.memory_space<vmem>>, vector<4x128xf32>
    tpu.vector_store %arg17[%c4_296, %c0_297], %481 {strides = array<i32>} : memref<64x128xf32, #tpu.memory_space<vmem>>, vector<4x128xf32>,
    %483 = vector.extract_strided_slice %478 {offsets = [4, 0], sizes = [4, 128], strides = [1, 1]} : vector<32x256xf32> to vector<4x128xf32>
    %c8_298 = arith.constant 8 : index
    %c0_299 = arith.constant 0 : index
    %484 = vector.load %arg17[%c8_298, %c0_299] : memref<64x128xf32, #tpu.memory_space<vmem>>, vector<4x128xf32>
    tpu.vector_store %arg17[%c8_298, %c0_299], %483 {strides = array<i32>} : memref<64x128xf32, #tpu.memory_space<vmem>>, vector<4x128xf32>,
    %485 = vector.extract_strided_slice %478 {offsets = [24, 128], sizes = [4, 128], strides = [1, 1]} : vector<32x256xf32> to vector<4x128xf32>
    %c12_300 = arith.constant 12 : index
    %c0_301 = arith.constant 0 : index
    %486 = vector.load %arg17[%c12_300, %c0_301] : memref<64x128xf32, #tpu.memory_space<vmem>>, vector<4x128xf32>
    tpu.vector_store %arg17[%c12_300, %c0_301], %485 {strides = array<i32>} : memref<64x128xf32, #tpu.memory_space<vmem>>, vector<4x128xf32>,
    %487 = vector.extract_strided_slice %478 {offsets = [8, 0], sizes = [4, 128], strides = [1, 1]} : vector<32x256xf32> to vector<4x128xf32>
    %c16_302 = arith.constant 16 : index
    %c0_303 = arith.constant 0 : index
    %488 = vector.load %arg17[%c16_302, %c0_303] : memref<64x128xf32, #tpu.memory_space<vmem>>, vector<4x128xf32>
    tpu.vector_store %arg17[%c16_302, %c0_303], %487 {strides = array<i32>} : memref<64x128xf32, #tpu.memory_space<vmem>>, vector<4x128xf32>,
    %489 = vector.extract_strided_slice %478 {offsets = [20, 128], sizes = [4, 128], strides = [1, 1]} : vector<32x256xf32> to vector<4x128xf32>
    %c20_304 = arith.constant 20 : index
    %c0_305 = arith.constant 0 : index
    %490 = vector.load %arg17[%c20_304, %c0_305] : memref<64x128xf32, #tpu.memory_space<vmem>>, vector<4x128xf32>
    tpu.vector_store %arg17[%c20_304, %c0_305], %489 {strides = array<i32>} : memref<64x128xf32, #tpu.memory_space<vmem>>, vector<4x128xf32>,
    %491 = vector.extract_strided_slice %478 {offsets = [12, 0], sizes = [4, 128], strides = [1, 1]} : vector<32x256xf32> to vector<4x128xf32>
    %c24_306 = arith.constant 24 : index
    %c0_307 = arith.constant 0 : index
    %492 = vector.load %arg17[%c24_306, %c0_307] : memref<64x128xf32, #tpu.memory_space<vmem>>, vector<4x128xf32>
    tpu.vector_store %arg17[%c24_306, %c0_307], %491 {strides = array<i32>} : memref<64x128xf32, #tpu.memory_space<vmem>>, vector<4x128xf32>,
    %493 = vector.extract_strided_slice %478 {offsets = [16, 128], sizes = [4, 128], strides = [1, 1]} : vector<32x256xf32> to vector<4x128xf32>
    %c28_308 = arith.constant 28 : index
    %c0_309 = arith.constant 0 : index
    %494 = vector.load %arg17[%c28_308, %c0_309] : memref<64x128xf32, #tpu.memory_space<vmem>>, vector<4x128xf32>
    tpu.vector_store %arg17[%c28_308, %c0_309], %493 {strides = array<i32>} : memref<64x128xf32, #tpu.memory_space<vmem>>, vector<4x128xf32>,
    %495 = vector.extract_strided_slice %478 {offsets = [16, 0], sizes = [4, 128], strides = [1, 1]} : vector<32x256xf32> to vector<4x128xf32>
    %c32_310 = arith.constant 32 : index
    %c0_311 = arith.constant 0 : index
    %496 = vector.load %arg17[%c32_310, %c0_311] : memref<64x128xf32, #tpu.memory_space<vmem>>, vector<4x128xf32>
    tpu.vector_store %arg17[%c32_310, %c0_311], %495 {strides = array<i32>} : memref<64x128xf32, #tpu.memory_space<vmem>>, vector<4x128xf32>,
    %497 = vector.extract_strided_slice %478 {offsets = [12, 128], sizes = [4, 128], strides = [1, 1]} : vector<32x256xf32> to vector<4x128xf32>
    %c36_312 = arith.constant 36 : index
    %c0_313 = arith.constant 0 : index
    %498 = vector.load %arg17[%c36_312, %c0_313] : memref<64x128xf32, #tpu.memory_space<vmem>>, vector<4x128xf32>
    tpu.vector_store %arg17[%c36_312, %c0_313], %497 {strides = array<i32>} : memref<64x128xf32, #tpu.memory_space<vmem>>, vector<4x128xf32>,
    %499 = vector.extract_strided_slice %478 {offsets = [20, 0], sizes = [4, 128], strides = [1, 1]} : vector<32x256xf32> to vector<4x128xf32>
    %c40_314 = arith.constant 40 : index
    %c0_315 = arith.constant 0 : index
    %500 = vector.load %arg17[%c40_314, %c0_315] : memref<64x128xf32, #tpu.memory_space<vmem>>, vector<4x128xf32>
    tpu.vector_store %arg17[%c40_314, %c0_315], %499 {strides = array<i32>} : memref<64x128xf32, #tpu.memory_space<vmem>>, vector<4x128xf32>,
    %501 = vector.extract_strided_slice %478 {offsets = [8, 128], sizes = [4, 128], strides = [1, 1]} : vector<32x256xf32> to vector<4x128xf32>
    %c44_316 = arith.constant 44 : index
    %c0_317 = arith.constant 0 : index
    %502 = vector.load %arg17[%c44_316, %c0_317] : memref<64x128xf32, #tpu.memory_space<vmem>>, vector<4x128xf32>
    tpu.vector_store %arg17[%c44_316, %c0_317], %501 {strides = array<i32>} : memref<64x128xf32, #tpu.memory_space<vmem>>, vector<4x128xf32>,
    %503 = vector.extract_strided_slice %478 {offsets = [24, 0], sizes = [4, 128], strides = [1, 1]} : vector<32x256xf32> to vector<4x128xf32>
    %c48_318 = arith.constant 48 : index
    %c0_319 = arith.constant 0 : index
    %504 = vector.load %arg17[%c48_318, %c0_319] : memref<64x128xf32, #tpu.memory_space<vmem>>, vector<4x128xf32>
    tpu.vector_store %arg17[%c48_318, %c0_319], %503 {strides = array<i32>} : memref<64x128xf32, #tpu.memory_space<vmem>>, vector<4x128xf32>,
    %505 = vector.extract_strided_slice %478 {offsets = [4, 128], sizes = [4, 128], strides = [1, 1]} : vector<32x256xf32> to vector<4x128xf32>
    %c52_320 = arith.constant 52 : index
    %c0_321 = arith.constant 0 : index
    %506 = vector.load %arg17[%c52_320, %c0_321] : memref<64x128xf32, #tpu.memory_space<vmem>>, vector<4x128xf32>
    tpu.vector_store %arg17[%c52_320, %c0_321], %505 {strides = array<i32>} : memref<64x128xf32, #tpu.memory_space<vmem>>, vector<4x128xf32>,
    %507 = vector.extract_strided_slice %478 {offsets = [28, 0], sizes = [4, 128], strides = [1, 1]} : vector<32x256xf32> to vector<4x128xf32>
    %c56_322 = arith.constant 56 : index
    %c0_323 = arith.constant 0 : index
    %508 = vector.load %arg17[%c56_322, %c0_323] : memref<64x128xf32, #tpu.memory_space<vmem>>, vector<4x128xf32>
    tpu.vector_store %arg17[%c56_322, %c0_323], %507 {strides = array<i32>} : memref<64x128xf32, #tpu.memory_space<vmem>>, vector<4x128xf32>,
    %509 = vector.extract_strided_slice %478 {offsets = [0, 128], sizes = [4, 128], strides = [1, 1]} : vector<32x256xf32> to vector<4x128xf32>
    %c60_324 = arith.constant 60 : index
    %c0_325 = arith.constant 0 : index
    %510 = vector.load %arg17[%c60_324, %c0_325] : memref<64x128xf32, #tpu.memory_space<vmem>>, vector<4x128xf32>
    tpu.vector_store %arg17[%c60_324, %c0_325], %509 {strides = array<i32>} : memref<64x128xf32, #tpu.memory_space<vmem>>, vector<4x128xf32>,
    %c2_326 = arith.constant 2 : index
    %c0_327 = arith.constant 0 : index
    %c0_328 = arith.constant 0 : index
    %511 = vector.load %arg2[%c2_326, %c0_327, %c0_328] : memref<3x32x256xf32, #tpu.memory_space<vmem>>, vector<1x32x256xf32>
    %512 = vector.shape_cast %511 : vector<1x32x256xf32> to vector<32x256xf32>
    %cst_329 = arith.constant 0.000000e+00 : f32
    %513 = vector.broadcast %cst_329 : f32 to vector<8x32xf32>
    %cst_330 = arith.constant 0.000000e+00 : f32
    %514 = vector.broadcast %cst_330 : f32 to vector<8x32xf32>
    %cst_331 = arith.constant dense<0.000000e+00> : vector<8x256xf32>
    %515 = tpu.matmul %513, %512, %cst_331 {dimension_numbers = #tpu.dot_dimension_numbers<[1], [0], [0], [1], [0, 0, 1, 1], [], []>} : vector<8x32xf32>, vector<32x256xf32>, vector<8x256xf32> -> vector<8x256xf32>
    %516 = vector.extract_strided_slice %515 {offsets = [0, 0], sizes = [8, 128], strides = [1, 1]} : vector<8x256xf32> to vector<8x128xf32>
    %517 = vector.extract_strided_slice %515 {offsets = [0, 128], sizes = [8, 128], strides = [1, 1]} : vector<8x256xf32> to vector<8x128xf32>
    %518 = arith.select %3, %516, %517 : vector<8x128xi1>, vector<8x128xf32>
    %c0_332 = arith.constant 0 : index
    %c0_333 = arith.constant 0 : index
    %519 = vector.load %arg17[%c0_332, %c0_333] : memref<64x128xf32, #tpu.memory_space<vmem>>, vector<8x128xf32>
    %520 = arith.addf %519, %518 : vector<8x128xf32>
    %521 = math.tanh %520 : vector<8x128xf32>
    %522 = arith.mulf %521, %11 : vector<8x128xf32>
    %523 = arith.addf %522, %14 : vector<8x128xf32>
    %524 = vector.extract_strided_slice %523 {offsets = [0, 0], sizes = [8, 32], strides = [1, 1]} : vector<8x128xf32> to vector<8x32xf32>
    %525 = vector.extract_strided_slice %523 {offsets = [0, 32], sizes = [8, 32], strides = [1, 1]} : vector<8x128xf32> to vector<8x32xf32>
    %526 = vector.extract_strided_slice %523 {offsets = [0, 64], sizes = [8, 32], strides = [1, 1]} : vector<8x128xf32> to vector<8x32xf32>
    %527 = vector.extract_strided_slice %523 {offsets = [0, 96], sizes = [8, 32], strides = [1, 1]} : vector<8x128xf32> to vector<8x32xf32>
    %528 = arith.mulf %525, %514 : vector<8x32xf32>
    %529 = arith.mulf %524, %526 : vector<8x32xf32>
    %530 = arith.addf %528, %529 : vector<8x32xf32>
    %531 = math.tanh %530 : vector<8x32xf32>
    %532 = arith.mulf %527, %531 : vector<8x32xf32>
    %c0_334 = arith.constant 0 : index
    %c0_335 = arith.constant 0 : index
    %533 = vector.load %arg18[%c0_334, %c0_335] : memref<64x32xf32, #tpu.memory_space<vmem>>, vector<8x32xf32>
    tpu.vector_store %arg18[%c0_334, %c0_335], %532 {strides = array<i32>} : memref<64x32xf32, #tpu.memory_space<vmem>>, vector<8x32xf32>,
    %cst_336 = arith.constant dense<0.000000e+00> : vector<8x256xf32>
    %534 = tpu.matmul %532, %512, %cst_336 {dimension_numbers = #tpu.dot_dimension_numbers<[1], [0], [0], [1], [0, 0, 1, 1], [], []>} : vector<8x32xf32>, vector<32x256xf32>, vector<8x256xf32> -> vector<8x256xf32>
    %535 = vector.extract_strided_slice %534 {offsets = [0, 0], sizes = [8, 128], strides = [1, 1]} : vector<8x256xf32> to vector<8x128xf32>
    %536 = vector.extract_strided_slice %534 {offsets = [0, 128], sizes = [8, 128], strides = [1, 1]} : vector<8x256xf32> to vector<8x128xf32>
    %537 = arith.select %3, %535, %536 : vector<8x128xi1>, vector<8x128xf32>
    %c8_337 = arith.constant 8 : index
    %c0_338 = arith.constant 0 : index
    %538 = vector.load %arg17[%c8_337, %c0_338] : memref<64x128xf32, #tpu.memory_space<vmem>>, vector<8x128xf32>
    %539 = arith.addf %538, %537 : vector<8x128xf32>
    %540 = math.tanh %539 : vector<8x128xf32>
    %541 = arith.mulf %540, %11 : vector<8x128xf32>
    %542 = arith.addf %541, %14 : vector<8x128xf32>
    %543 = vector.extract_strided_slice %542 {offsets = [0, 0], sizes = [8, 32], strides = [1, 1]} : vector<8x128xf32> to vector<8x32xf32>
    %544 = vector.extract_strided_slice %542 {offsets = [0, 32], sizes = [8, 32], strides = [1, 1]} : vector<8x128xf32> to vector<8x32xf32>
    %545 = vector.extract_strided_slice %542 {offsets = [0, 64], sizes = [8, 32], strides = [1, 1]} : vector<8x128xf32> to vector<8x32xf32>
    %546 = vector.extract_strided_slice %542 {offsets = [0, 96], sizes = [8, 32], strides = [1, 1]} : vector<8x128xf32> to vector<8x32xf32>
    %547 = arith.mulf %544, %530 : vector<8x32xf32>
    %548 = arith.mulf %543, %545 : vector<8x32xf32>
    %549 = arith.addf %547, %548 : vector<8x32xf32>
    %550 = math.tanh %549 : vector<8x32xf32>
    %551 = arith.mulf %546, %550 : vector<8x32xf32>
    %c8_339 = arith.constant 8 : index
    %c0_340 = arith.constant 0 : index
    %552 = vector.load %arg18[%c8_339, %c0_340] : memref<64x32xf32, #tpu.memory_space<vmem>>, vector<8x32xf32>
    tpu.vector_store %arg18[%c8_339, %c0_340], %551 {strides = array<i32>} : memref<64x32xf32, #tpu.memory_space<vmem>>, vector<8x32xf32>,
    %cst_341 = arith.constant dense<0.000000e+00> : vector<8x256xf32>
    %553 = tpu.matmul %551, %512, %cst_341 {dimension_numbers = #tpu.dot_dimension_numbers<[1], [0], [0], [1], [0, 0, 1, 1], [], []>} : vector<8x32xf32>, vector<32x256xf32>, vector<8x256xf32> -> vector<8x256xf32>
    %554 = vector.extract_strided_slice %553 {offsets = [0, 0], sizes = [8, 128], strides = [1, 1]} : vector<8x256xf32> to vector<8x128xf32>
    %555 = vector.extract_strided_slice %553 {offsets = [0, 128], sizes = [8, 128], strides = [1, 1]} : vector<8x256xf32> to vector<8x128xf32>
    %556 = arith.select %3, %554, %555 : vector<8x128xi1>, vector<8x128xf32>
    %c16_342 = arith.constant 16 : index
    %c0_343 = arith.constant 0 : index
    %557 = vector.load %arg17[%c16_342, %c0_343] : memref<64x128xf32, #tpu.memory_space<vmem>>, vector<8x128xf32>
    %558 = arith.addf %557, %556 : vector<8x128xf32>
    %559 = math.tanh %558 : vector<8x128xf32>
    %560 = arith.mulf %559, %11 : vector<8x128xf32>
    %561 = arith.addf %560, %14 : vector<8x128xf32>
    %562 = vector.extract_strided_slice %561 {offsets = [0, 0], sizes = [8, 32], strides = [1, 1]} : vector<8x128xf32> to vector<8x32xf32>
    %563 = vector.extract_strided_slice %561 {offsets = [0, 32], sizes = [8, 32], strides = [1, 1]} : vector<8x128xf32> to vector<8x32xf32>
    %564 = vector.extract_strided_slice %561 {offsets = [0, 64], sizes = [8, 32], strides = [1, 1]} : vector<8x128xf32> to vector<8x32xf32>
    %565 = vector.extract_strided_slice %561 {offsets = [0, 96], sizes = [8, 32], strides = [1, 1]} : vector<8x128xf32> to vector<8x32xf32>
    %566 = arith.mulf %563, %549 : vector<8x32xf32>
    %567 = arith.mulf %562, %564 : vector<8x32xf32>
    %568 = arith.addf %566, %567 : vector<8x32xf32>
    %569 = math.tanh %568 : vector<8x32xf32>
    %570 = arith.mulf %565, %569 : vector<8x32xf32>
    %c16_344 = arith.constant 16 : index
    %c0_345 = arith.constant 0 : index
    %571 = vector.load %arg18[%c16_344, %c0_345] : memref<64x32xf32, #tpu.memory_space<vmem>>, vector<8x32xf32>
    tpu.vector_store %arg18[%c16_344, %c0_345], %570 {strides = array<i32>} : memref<64x32xf32, #tpu.memory_space<vmem>>, vector<8x32xf32>,
    %cst_346 = arith.constant dense<0.000000e+00> : vector<8x256xf32>
    %572 = tpu.matmul %570, %512, %cst_346 {dimension_numbers = #tpu.dot_dimension_numbers<[1], [0], [0], [1], [0, 0, 1, 1], [], []>} : vector<8x32xf32>, vector<32x256xf32>, vector<8x256xf32> -> vector<8x256xf32>
    %573 = vector.extract_strided_slice %572 {offsets = [0, 0], sizes = [8, 128], strides = [1, 1]} : vector<8x256xf32> to vector<8x128xf32>
    %574 = vector.extract_strided_slice %572 {offsets = [0, 128], sizes = [8, 128], strides = [1, 1]} : vector<8x256xf32> to vector<8x128xf32>
    %575 = arith.select %3, %573, %574 : vector<8x128xi1>, vector<8x128xf32>
    %c24_347 = arith.constant 24 : index
    %c0_348 = arith.constant 0 : index
    %576 = vector.load %arg17[%c24_347, %c0_348] : memref<64x128xf32, #tpu.memory_space<vmem>>, vector<8x128xf32>
    %577 = arith.addf %576, %575 : vector<8x128xf32>
    %578 = math.tanh %577 : vector<8x128xf32>
    %579 = arith.mulf %578, %11 : vector<8x128xf32>
    %580 = arith.addf %579, %14 : vector<8x128xf32>
    %581 = vector.extract_strided_slice %580 {offsets = [0, 0], sizes = [8, 32], strides = [1, 1]} : vector<8x128xf32> to vector<8x32xf32>
    %582 = vector.extract_strided_slice %580 {offsets = [0, 32], sizes = [8, 32], strides = [1, 1]} : vector<8x128xf32> to vector<8x32xf32>
    %583 = vector.extract_strided_slice %580 {offsets = [0, 64], sizes = [8, 32], strides = [1, 1]} : vector<8x128xf32> to vector<8x32xf32>
    %584 = vector.extract_strided_slice %580 {offsets = [0, 96], sizes = [8, 32], strides = [1, 1]} : vector<8x128xf32> to vector<8x32xf32>
    %585 = arith.mulf %582, %568 : vector<8x32xf32>
    %586 = arith.mulf %581, %583 : vector<8x32xf32>
    %587 = arith.addf %585, %586 : vector<8x32xf32>
    %588 = math.tanh %587 : vector<8x32xf32>
    %589 = arith.mulf %584, %588 : vector<8x32xf32>
    %c24_349 = arith.constant 24 : index
    %c0_350 = arith.constant 0 : index
    %590 = vector.load %arg18[%c24_349, %c0_350] : memref<64x32xf32, #tpu.memory_space<vmem>>, vector<8x32xf32>
    tpu.vector_store %arg18[%c24_349, %c0_350], %589 {strides = array<i32>} : memref<64x32xf32, #tpu.memory_space<vmem>>, vector<8x32xf32>,
    %cst_351 = arith.constant dense<0.000000e+00> : vector<8x256xf32>
    %591 = tpu.matmul %589, %512, %cst_351 {dimension_numbers = #tpu.dot_dimension_numbers<[1], [0], [0], [1], [0, 0, 1, 1], [], []>} : vector<8x32xf32>, vector<32x256xf32>, vector<8x256xf32> -> vector<8x256xf32>
    %592 = vector.extract_strided_slice %591 {offsets = [0, 0], sizes = [8, 128], strides = [1, 1]} : vector<8x256xf32> to vector<8x128xf32>
    %593 = vector.extract_strided_slice %591 {offsets = [0, 128], sizes = [8, 128], strides = [1, 1]} : vector<8x256xf32> to vector<8x128xf32>
    %594 = arith.select %3, %592, %593 : vector<8x128xi1>, vector<8x128xf32>
    %c32_352 = arith.constant 32 : index
    %c0_353 = arith.constant 0 : index
    %595 = vector.load %arg17[%c32_352, %c0_353] : memref<64x128xf32, #tpu.memory_space<vmem>>, vector<8x128xf32>
    %596 = arith.addf %595, %594 : vector<8x128xf32>
    %597 = math.tanh %596 : vector<8x128xf32>
    %598 = arith.mulf %597, %11 : vector<8x128xf32>
    %599 = arith.addf %598, %14 : vector<8x128xf32>
    %600 = vector.extract_strided_slice %599 {offsets = [0, 0], sizes = [8, 32], strides = [1, 1]} : vector<8x128xf32> to vector<8x32xf32>
    %601 = vector.extract_strided_slice %599 {offsets = [0, 32], sizes = [8, 32], strides = [1, 1]} : vector<8x128xf32> to vector<8x32xf32>
    %602 = vector.extract_strided_slice %599 {offsets = [0, 64], sizes = [8, 32], strides = [1, 1]} : vector<8x128xf32> to vector<8x32xf32>
    %603 = vector.extract_strided_slice %599 {offsets = [0, 96], sizes = [8, 32], strides = [1, 1]} : vector<8x128xf32> to vector<8x32xf32>
    %604 = arith.mulf %601, %587 : vector<8x32xf32>
    %605 = arith.mulf %600, %602 : vector<8x32xf32>
    %606 = arith.addf %604, %605 : vector<8x32xf32>
    %607 = math.tanh %606 : vector<8x32xf32>
    %608 = arith.mulf %603, %607 : vector<8x32xf32>
    %c32_354 = arith.constant 32 : index
    %c0_355 = arith.constant 0 : index
    %609 = vector.load %arg18[%c32_354, %c0_355] : memref<64x32xf32, #tpu.memory_space<vmem>>, vector<8x32xf32>
    tpu.vector_store %arg18[%c32_354, %c0_355], %608 {strides = array<i32>} : memref<64x32xf32, #tpu.memory_space<vmem>>, vector<8x32xf32>,
    %cst_356 = arith.constant dense<0.000000e+00> : vector<8x256xf32>
    %610 = tpu.matmul %608, %512, %cst_356 {dimension_numbers = #tpu.dot_dimension_numbers<[1], [0], [0], [1], [0, 0, 1, 1], [], []>} : vector<8x32xf32>, vector<32x256xf32>, vector<8x256xf32> -> vector<8x256xf32>
    %611 = vector.extract_strided_slice %610 {offsets = [0, 0], sizes = [8, 128], strides = [1, 1]} : vector<8x256xf32> to vector<8x128xf32>
    %612 = vector.extract_strided_slice %610 {offsets = [0, 128], sizes = [8, 128], strides = [1, 1]} : vector<8x256xf32> to vector<8x128xf32>
    %613 = arith.select %3, %611, %612 : vector<8x128xi1>, vector<8x128xf32>
    %c40_357 = arith.constant 40 : index
    %c0_358 = arith.constant 0 : index
    %614 = vector.load %arg17[%c40_357, %c0_358] : memref<64x128xf32, #tpu.memory_space<vmem>>, vector<8x128xf32>
    %615 = arith.addf %614, %613 : vector<8x128xf32>
    %616 = math.tanh %615 : vector<8x128xf32>
    %617 = arith.mulf %616, %11 : vector<8x128xf32>
    %618 = arith.addf %617, %14 : vector<8x128xf32>
    %619 = vector.extract_strided_slice %618 {offsets = [0, 0], sizes = [8, 32], strides = [1, 1]} : vector<8x128xf32> to vector<8x32xf32>
    %620 = vector.extract_strided_slice %618 {offsets = [0, 32], sizes = [8, 32], strides = [1, 1]} : vector<8x128xf32> to vector<8x32xf32>
    %621 = vector.extract_strided_slice %618 {offsets = [0, 64], sizes = [8, 32], strides = [1, 1]} : vector<8x128xf32> to vector<8x32xf32>
    %622 = vector.extract_strided_slice %618 {offsets = [0, 96], sizes = [8, 32], strides = [1, 1]} : vector<8x128xf32> to vector<8x32xf32>
    %623 = arith.mulf %620, %606 : vector<8x32xf32>
    %624 = arith.mulf %619, %621 : vector<8x32xf32>
    %625 = arith.addf %623, %624 : vector<8x32xf32>
    %626 = math.tanh %625 : vector<8x32xf32>
    %627 = arith.mulf %622, %626 : vector<8x32xf32>
    %c40_359 = arith.constant 40 : index
    %c0_360 = arith.constant 0 : index
    %628 = vector.load %arg18[%c40_359, %c0_360] : memref<64x32xf32, #tpu.memory_space<vmem>>, vector<8x32xf32>
    tpu.vector_store %arg18[%c40_359, %c0_360], %627 {strides = array<i32>} : memref<64x32xf32, #tpu.memory_space<vmem>>, vector<8x32xf32>,
    %cst_361 = arith.constant dense<0.000000e+00> : vector<8x256xf32>
    %629 = tpu.matmul %627, %512, %cst_361 {dimension_numbers = #tpu.dot_dimension_numbers<[1], [0], [0], [1], [0, 0, 1, 1], [], []>} : vector<8x32xf32>, vector<32x256xf32>, vector<8x256xf32> -> vector<8x256xf32>
    %630 = vector.extract_strided_slice %629 {offsets = [0, 0], sizes = [8, 128], strides = [1, 1]} : vector<8x256xf32> to vector<8x128xf32>
    %631 = vector.extract_strided_slice %629 {offsets = [0, 128], sizes = [8, 128], strides = [1, 1]} : vector<8x256xf32> to vector<8x128xf32>
    %632 = arith.select %3, %630, %631 : vector<8x128xi1>, vector<8x128xf32>
    %c48_362 = arith.constant 48 : index
    %c0_363 = arith.constant 0 : index
    %633 = vector.load %arg17[%c48_362, %c0_363] : memref<64x128xf32, #tpu.memory_space<vmem>>, vector<8x128xf32>
    %634 = arith.addf %633, %632 : vector<8x128xf32>
    %635 = math.tanh %634 : vector<8x128xf32>
    %636 = arith.mulf %635, %11 : vector<8x128xf32>
    %637 = arith.addf %636, %14 : vector<8x128xf32>
    %638 = vector.extract_strided_slice %637 {offsets = [0, 0], sizes = [8, 32], strides = [1, 1]} : vector<8x128xf32> to vector<8x32xf32>
    %639 = vector.extract_strided_slice %637 {offsets = [0, 32], sizes = [8, 32], strides = [1, 1]} : vector<8x128xf32> to vector<8x32xf32>
    %640 = vector.extract_strided_slice %637 {offsets = [0, 64], sizes = [8, 32], strides = [1, 1]} : vector<8x128xf32> to vector<8x32xf32>
    %641 = vector.extract_strided_slice %637 {offsets = [0, 96], sizes = [8, 32], strides = [1, 1]} : vector<8x128xf32> to vector<8x32xf32>
    %642 = arith.mulf %639, %625 : vector<8x32xf32>
    %643 = arith.mulf %638, %640 : vector<8x32xf32>
    %644 = arith.addf %642, %643 : vector<8x32xf32>
    %645 = math.tanh %644 : vector<8x32xf32>
    %646 = arith.mulf %641, %645 : vector<8x32xf32>
    %c48_364 = arith.constant 48 : index
    %c0_365 = arith.constant 0 : index
    %647 = vector.load %arg18[%c48_364, %c0_365] : memref<64x32xf32, #tpu.memory_space<vmem>>, vector<8x32xf32>
    tpu.vector_store %arg18[%c48_364, %c0_365], %646 {strides = array<i32>} : memref<64x32xf32, #tpu.memory_space<vmem>>, vector<8x32xf32>,
    %cst_366 = arith.constant dense<0.000000e+00> : vector<8x256xf32>
    %648 = tpu.matmul %646, %512, %cst_366 {dimension_numbers = #tpu.dot_dimension_numbers<[1], [0], [0], [1], [0, 0, 1, 1], [], []>} : vector<8x32xf32>, vector<32x256xf32>, vector<8x256xf32> -> vector<8x256xf32>
    %649 = vector.extract_strided_slice %648 {offsets = [0, 0], sizes = [8, 128], strides = [1, 1]} : vector<8x256xf32> to vector<8x128xf32>
    %650 = vector.extract_strided_slice %648 {offsets = [0, 128], sizes = [8, 128], strides = [1, 1]} : vector<8x256xf32> to vector<8x128xf32>
    %651 = arith.select %3, %649, %650 : vector<8x128xi1>, vector<8x128xf32>
    %c56_367 = arith.constant 56 : index
    %c0_368 = arith.constant 0 : index
    %652 = vector.load %arg17[%c56_367, %c0_368] : memref<64x128xf32, #tpu.memory_space<vmem>>, vector<8x128xf32>
    %653 = arith.addf %652, %651 : vector<8x128xf32>
    %654 = math.tanh %653 : vector<8x128xf32>
    %655 = arith.mulf %654, %11 : vector<8x128xf32>
    %656 = arith.addf %655, %14 : vector<8x128xf32>
    %657 = vector.extract_strided_slice %656 {offsets = [0, 0], sizes = [8, 32], strides = [1, 1]} : vector<8x128xf32> to vector<8x32xf32>
    %658 = vector.extract_strided_slice %656 {offsets = [0, 32], sizes = [8, 32], strides = [1, 1]} : vector<8x128xf32> to vector<8x32xf32>
    %659 = vector.extract_strided_slice %656 {offsets = [0, 64], sizes = [8, 32], strides = [1, 1]} : vector<8x128xf32> to vector<8x32xf32>
    %660 = vector.extract_strided_slice %656 {offsets = [0, 96], sizes = [8, 32], strides = [1, 1]} : vector<8x128xf32> to vector<8x32xf32>
    %661 = arith.mulf %658, %644 : vector<8x32xf32>
    %662 = arith.mulf %657, %659 : vector<8x32xf32>
    %663 = arith.addf %661, %662 : vector<8x32xf32>
    %664 = math.tanh %663 : vector<8x32xf32>
    %665 = arith.mulf %660, %664 : vector<8x32xf32>
    %c56_369 = arith.constant 56 : index
    %c0_370 = arith.constant 0 : index
    %666 = vector.load %arg18[%c56_369, %c0_370] : memref<64x32xf32, #tpu.memory_space<vmem>>, vector<8x32xf32>
    tpu.vector_store %arg18[%c56_369, %c0_370], %665 {strides = array<i32>} : memref<64x32xf32, #tpu.memory_space<vmem>>, vector<8x32xf32>,
    %c0_371 = arith.constant 0 : index
    %c0_372 = arith.constant 0 : index
    %667 = vector.load %arg18[%c0_371, %c0_372] : memref<64x32xf32, #tpu.memory_space<vmem>>, vector<4x32xf32>
    %c0_373 = arith.constant 0 : index
    %c0_374 = arith.constant 0 : index
    %668 = vector.load %arg19[%c0_373, %c0_374] : memref<32x64xf32, #tpu.memory_space<vmem>>, vector<4x32xf32>
    tpu.vector_store %arg19[%c0_373, %c0_374], %667 {strides = array<i32>} : memref<32x64xf32, #tpu.memory_space<vmem>>, vector<4x32xf32>,
    %c60_375 = arith.constant 60 : index
    %c0_376 = arith.constant 0 : index
    %669 = vector.load %arg18[%c60_375, %c0_376] : memref<64x32xf32, #tpu.memory_space<vmem>>, vector<4x32xf32>
    %c0_377 = arith.constant 0 : index
    %c32_378 = arith.constant 32 : index
    %670 = vector.load %arg19[%c0_377, %c32_378] : memref<32x64xf32, #tpu.memory_space<vmem>>, vector<4x32xf32>
    tpu.vector_store %arg19[%c0_377, %c32_378], %669 {strides = array<i32>} : memref<32x64xf32, #tpu.memory_space<vmem>>, vector<4x32xf32>,
    %c8_379 = arith.constant 8 : index
    %c0_380 = arith.constant 0 : index
    %671 = vector.load %arg18[%c8_379, %c0_380] : memref<64x32xf32, #tpu.memory_space<vmem>>, vector<4x32xf32>
    %c4_381 = arith.constant 4 : index
    %c0_382 = arith.constant 0 : index
    %672 = vector.load %arg19[%c4_381, %c0_382] : memref<32x64xf32, #tpu.memory_space<vmem>>, vector<4x32xf32>
    tpu.vector_store %arg19[%c4_381, %c0_382], %671 {strides = array<i32>} : memref<32x64xf32, #tpu.memory_space<vmem>>, vector<4x32xf32>,
    %c52_383 = arith.constant 52 : index
    %c0_384 = arith.constant 0 : index
    %673 = vector.load %arg18[%c52_383, %c0_384] : memref<64x32xf32, #tpu.memory_space<vmem>>, vector<4x32xf32>
    %c4_385 = arith.constant 4 : index
    %c32_386 = arith.constant 32 : index
    %674 = vector.load %arg19[%c4_385, %c32_386] : memref<32x64xf32, #tpu.memory_space<vmem>>, vector<4x32xf32>
    tpu.vector_store %arg19[%c4_385, %c32_386], %673 {strides = array<i32>} : memref<32x64xf32, #tpu.memory_space<vmem>>, vector<4x32xf32>,
    %c16_387 = arith.constant 16 : index
    %c0_388 = arith.constant 0 : index
    %675 = vector.load %arg18[%c16_387, %c0_388] : memref<64x32xf32, #tpu.memory_space<vmem>>, vector<4x32xf32>
    %c8_389 = arith.constant 8 : index
    %c0_390 = arith.constant 0 : index
    %676 = vector.load %arg19[%c8_389, %c0_390] : memref<32x64xf32, #tpu.memory_space<vmem>>, vector<4x32xf32>
    tpu.vector_store %arg19[%c8_389, %c0_390], %675 {strides = array<i32>} : memref<32x64xf32, #tpu.memory_space<vmem>>, vector<4x32xf32>,
    %c44_391 = arith.constant 44 : index
    %c0_392 = arith.constant 0 : index
    %677 = vector.load %arg18[%c44_391, %c0_392] : memref<64x32xf32, #tpu.memory_space<vmem>>, vector<4x32xf32>
    %c8_393 = arith.constant 8 : index
    %c32_394 = arith.constant 32 : index
    %678 = vector.load %arg19[%c8_393, %c32_394] : memref<32x64xf32, #tpu.memory_space<vmem>>, vector<4x32xf32>
    tpu.vector_store %arg19[%c8_393, %c32_394], %677 {strides = array<i32>} : memref<32x64xf32, #tpu.memory_space<vmem>>, vector<4x32xf32>,
    %c24_395 = arith.constant 24 : index
    %c0_396 = arith.constant 0 : index
    %679 = vector.load %arg18[%c24_395, %c0_396] : memref<64x32xf32, #tpu.memory_space<vmem>>, vector<4x32xf32>
    %c12_397 = arith.constant 12 : index
    %c0_398 = arith.constant 0 : index
    %680 = vector.load %arg19[%c12_397, %c0_398] : memref<32x64xf32, #tpu.memory_space<vmem>>, vector<4x32xf32>
    tpu.vector_store %arg19[%c12_397, %c0_398], %679 {strides = array<i32>} : memref<32x64xf32, #tpu.memory_space<vmem>>, vector<4x32xf32>,
    %c36_399 = arith.constant 36 : index
    %c0_400 = arith.constant 0 : index
    %681 = vector.load %arg18[%c36_399, %c0_400] : memref<64x32xf32, #tpu.memory_space<vmem>>, vector<4x32xf32>
    %c12_401 = arith.constant 12 : index
    %c32_402 = arith.constant 32 : index
    %682 = vector.load %arg19[%c12_401, %c32_402] : memref<32x64xf32, #tpu.memory_space<vmem>>, vector<4x32xf32>
    tpu.vector_store %arg19[%c12_401, %c32_402], %681 {strides = array<i32>} : memref<32x64xf32, #tpu.memory_space<vmem>>, vector<4x32xf32>,
    %c32_403 = arith.constant 32 : index
    %c0_404 = arith.constant 0 : index
    %683 = vector.load %arg18[%c32_403, %c0_404] : memref<64x32xf32, #tpu.memory_space<vmem>>, vector<4x32xf32>
    %c16_405 = arith.constant 16 : index
    %c0_406 = arith.constant 0 : index
    %684 = vector.load %arg19[%c16_405, %c0_406] : memref<32x64xf32, #tpu.memory_space<vmem>>, vector<4x32xf32>
    tpu.vector_store %arg19[%c16_405, %c0_406], %683 {strides = array<i32>} : memref<32x64xf32, #tpu.memory_space<vmem>>, vector<4x32xf32>,
    %c28_407 = arith.constant 28 : index
    %c0_408 = arith.constant 0 : index
    %685 = vector.load %arg18[%c28_407, %c0_408] : memref<64x32xf32, #tpu.memory_space<vmem>>, vector<4x32xf32>
    %c16_409 = arith.constant 16 : index
    %c32_410 = arith.constant 32 : index
    %686 = vector.load %arg19[%c16_409, %c32_410] : memref<32x64xf32, #tpu.memory_space<vmem>>, vector<4x32xf32>
    tpu.vector_store %arg19[%c16_409, %c32_410], %685 {strides = array<i32>} : memref<32x64xf32, #tpu.memory_space<vmem>>, vector<4x32xf32>,
    %c40_411 = arith.constant 40 : index
    %c0_412 = arith.constant 0 : index
    %687 = vector.load %arg18[%c40_411, %c0_412] : memref<64x32xf32, #tpu.memory_space<vmem>>, vector<4x32xf32>
    %c20_413 = arith.constant 20 : index
    %c0_414 = arith.constant 0 : index
    %688 = vector.load %arg19[%c20_413, %c0_414] : memref<32x64xf32, #tpu.memory_space<vmem>>, vector<4x32xf32>
    tpu.vector_store %arg19[%c20_413, %c0_414], %687 {strides = array<i32>} : memref<32x64xf32, #tpu.memory_space<vmem>>, vector<4x32xf32>,
    %c20_415 = arith.constant 20 : index
    %c0_416 = arith.constant 0 : index
    %689 = vector.load %arg18[%c20_415, %c0_416] : memref<64x32xf32, #tpu.memory_space<vmem>>, vector<4x32xf32>
    %c20_417 = arith.constant 20 : index
    %c32_418 = arith.constant 32 : index
    %690 = vector.load %arg19[%c20_417, %c32_418] : memref<32x64xf32, #tpu.memory_space<vmem>>, vector<4x32xf32>
    tpu.vector_store %arg19[%c20_417, %c32_418], %689 {strides = array<i32>} : memref<32x64xf32, #tpu.memory_space<vmem>>, vector<4x32xf32>,
    %c48_419 = arith.constant 48 : index
    %c0_420 = arith.constant 0 : index
    %691 = vector.load %arg18[%c48_419, %c0_420] : memref<64x32xf32, #tpu.memory_space<vmem>>, vector<4x32xf32>
    %c24_421 = arith.constant 24 : index
    %c0_422 = arith.constant 0 : index
    %692 = vector.load %arg19[%c24_421, %c0_422] : memref<32x64xf32, #tpu.memory_space<vmem>>, vector<4x32xf32>
    tpu.vector_store %arg19[%c24_421, %c0_422], %691 {strides = array<i32>} : memref<32x64xf32, #tpu.memory_space<vmem>>, vector<4x32xf32>,
    %c12_423 = arith.constant 12 : index
    %c0_424 = arith.constant 0 : index
    %693 = vector.load %arg18[%c12_423, %c0_424] : memref<64x32xf32, #tpu.memory_space<vmem>>, vector<4x32xf32>
    %c24_425 = arith.constant 24 : index
    %c32_426 = arith.constant 32 : index
    %694 = vector.load %arg19[%c24_425, %c32_426] : memref<32x64xf32, #tpu.memory_space<vmem>>, vector<4x32xf32>
    tpu.vector_store %arg19[%c24_425, %c32_426], %693 {strides = array<i32>} : memref<32x64xf32, #tpu.memory_space<vmem>>, vector<4x32xf32>,
    %c56_427 = arith.constant 56 : index
    %c0_428 = arith.constant 0 : index
    %695 = vector.load %arg18[%c56_427, %c0_428] : memref<64x32xf32, #tpu.memory_space<vmem>>, vector<4x32xf32>
    %c28_429 = arith.constant 28 : index
    %c0_430 = arith.constant 0 : index
    %696 = vector.load %arg19[%c28_429, %c0_430] : memref<32x64xf32, #tpu.memory_space<vmem>>, vector<4x32xf32>
    tpu.vector_store %arg19[%c28_429, %c0_430], %695 {strides = array<i32>} : memref<32x64xf32, #tpu.memory_space<vmem>>, vector<4x32xf32>,
    %c4_431 = arith.constant 4 : index
    %c0_432 = arith.constant 0 : index
    %697 = vector.load %arg18[%c4_431, %c0_432] : memref<64x32xf32, #tpu.memory_space<vmem>>, vector<4x32xf32>
    %c28_433 = arith.constant 28 : index
    %c32_434 = arith.constant 32 : index
    %698 = vector.load %arg19[%c28_433, %c32_434] : memref<32x64xf32, #tpu.memory_space<vmem>>, vector<4x32xf32>
    tpu.vector_store %arg19[%c28_433, %c32_434], %697 {strides = array<i32>} : memref<32x64xf32, #tpu.memory_space<vmem>>, vector<4x32xf32>,
    %c0_435 = arith.constant 0 : index
    %c0_436 = arith.constant 0 : index
    %699 = vector.load %arg19[%c0_435, %c0_436] : memref<32x64xf32, #tpu.memory_space<vmem>>, vector<32x64xf32>
    %c0_437 = arith.constant 0 : index
    %c0_438 = arith.constant 0 : index
    %700 = vector.load %arg4[%c0_437, %c0_438] : memref<1x64xf32, #tpu.memory_space<vmem>>, vector<1x64xf32>
    %701 = vector.broadcast %700 : vector<1x64xf32> to vector<32x64xf32>
    %702 = arith.mulf %699, %701 : vector<32x64xf32>
    %cst_439 = arith.constant dense<0.000000e+00> : vector<32xf32>
    %703 = vector.multi_reduction <add>, %702, %cst_439 [1] : vector<32x64xf32> to vector<32xf32>
    %704 = vector.shape_cast %703 : vector<32xf32> to vector<32x1xf32>
    %c0_440 = arith.constant 0 : index
    %c0_441 = arith.constant 0 : index
    %705 = vector.load %arg5[%c0_440, %c0_441] : memref<1x1xf32, #tpu.memory_space<vmem>>, vector<1x1xf32>
    %706 = vector.broadcast %705 : vector<1x1xf32> to vector<32x1xf32>
    %707 = arith.addf %704, %706 : vector<32x1xf32>
    %708 = vector.extract_strided_slice %707 {offsets = [0, 0], sizes = [4, 1], strides = [1, 1]} : vector<32x1xf32> to vector<4x1xf32>
    %709 = vector.extract_strided_slice %707 {offsets = [4, 0], sizes = [4, 1], strides = [1, 1]} : vector<32x1xf32> to vector<4x1xf32>
    %710 = vector.extract_strided_slice %707 {offsets = [8, 0], sizes = [4, 1], strides = [1, 1]} : vector<32x1xf32> to vector<4x1xf32>
    %711 = vector.extract_strided_slice %707 {offsets = [12, 0], sizes = [4, 1], strides = [1, 1]} : vector<32x1xf32> to vector<4x1xf32>
    %712 = vector.extract_strided_slice %707 {offsets = [16, 0], sizes = [4, 1], strides = [1, 1]} : vector<32x1xf32> to vector<4x1xf32>
    %713 = vector.extract_strided_slice %707 {offsets = [20, 0], sizes = [4, 1], strides = [1, 1]} : vector<32x1xf32> to vector<4x1xf32>
    %714 = vector.extract_strided_slice %707 {offsets = [24, 0], sizes = [4, 1], strides = [1, 1]} : vector<32x1xf32> to vector<4x1xf32>
    %715 = vector.extract_strided_slice %707 {offsets = [28, 0], sizes = [4, 1], strides = [1, 1]} : vector<32x1xf32> to vector<4x1xf32>
    %716 = arith.maximumf %708, %709 : vector<4x1xf32>
    %717 = arith.maximumf %716, %710 : vector<4x1xf32>
    %718 = arith.maximumf %717, %711 : vector<4x1xf32>
    %719 = arith.maximumf %718, %712 : vector<4x1xf32>
    %720 = arith.maximumf %719, %713 : vector<4x1xf32>
    %721 = arith.maximumf %720, %714 : vector<4x1xf32>
    %722 = arith.maximumf %721, %715 : vector<4x1xf32>
    %723 = arith.subf %708, %722 : vector<4x1xf32>
    %724 = math.exp %723 : vector<4x1xf32>
    %725 = arith.subf %709, %722 : vector<4x1xf32>
    %726 = math.exp %725 : vector<4x1xf32>
    %727 = arith.subf %710, %722 : vector<4x1xf32>
    %728 = math.exp %727 : vector<4x1xf32>
    %729 = arith.subf %711, %722 : vector<4x1xf32>
    %730 = math.exp %729 : vector<4x1xf32>
    %731 = arith.subf %712, %722 : vector<4x1xf32>
    %732 = math.exp %731 : vector<4x1xf32>
    %733 = arith.subf %713, %722 : vector<4x1xf32>
    %734 = math.exp %733 : vector<4x1xf32>
    %735 = arith.subf %714, %722 : vector<4x1xf32>
    %736 = math.exp %735 : vector<4x1xf32>
    %737 = arith.subf %715, %722 : vector<4x1xf32>
    %738 = math.exp %737 : vector<4x1xf32>
    %739 = arith.addf %724, %726 : vector<4x1xf32>
    %740 = arith.addf %739, %728 : vector<4x1xf32>
    %741 = arith.addf %740, %730 : vector<4x1xf32>
    %742 = arith.addf %741, %732 : vector<4x1xf32>
    %743 = arith.addf %742, %734 : vector<4x1xf32>
    %744 = arith.addf %743, %736 : vector<4x1xf32>
    %745 = arith.addf %744, %738 : vector<4x1xf32>
    %cst_442 = arith.constant 0.000000e+00 : f32
    %746 = vector.broadcast %cst_442 : f32 to vector<4x64xf32>
    %747 = vector.extract_strided_slice %699 {offsets = [0, 0], sizes = [4, 64], strides = [1, 1]} : vector<32x64xf32> to vector<4x64xf32>
    %748 = vector.broadcast %724 : vector<4x1xf32> to vector<4x64xf32>
    %749 = arith.mulf %748, %747 : vector<4x64xf32>
    %750 = arith.addf %746, %749 : vector<4x64xf32>
    %751 = vector.extract_strided_slice %699 {offsets = [4, 0], sizes = [4, 64], strides = [1, 1]} : vector<32x64xf32> to vector<4x64xf32>
    %752 = vector.broadcast %726 : vector<4x1xf32> to vector<4x64xf32>
    %753 = arith.mulf %752, %751 : vector<4x64xf32>
    %754 = arith.addf %750, %753 : vector<4x64xf32>
    %755 = vector.extract_strided_slice %699 {offsets = [8, 0], sizes = [4, 64], strides = [1, 1]} : vector<32x64xf32> to vector<4x64xf32>
    %756 = vector.broadcast %728 : vector<4x1xf32> to vector<4x64xf32>
    %757 = arith.mulf %756, %755 : vector<4x64xf32>
    %758 = arith.addf %754, %757 : vector<4x64xf32>
    %759 = vector.extract_strided_slice %699 {offsets = [12, 0], sizes = [4, 64], strides = [1, 1]} : vector<32x64xf32> to vector<4x64xf32>
    %760 = vector.broadcast %730 : vector<4x1xf32> to vector<4x64xf32>
    %761 = arith.mulf %760, %759 : vector<4x64xf32>
    %762 = arith.addf %758, %761 : vector<4x64xf32>
    %763 = vector.extract_strided_slice %699 {offsets = [16, 0], sizes = [4, 64], strides = [1, 1]} : vector<32x64xf32> to vector<4x64xf32>
    %764 = vector.broadcast %732 : vector<4x1xf32> to vector<4x64xf32>
    %765 = arith.mulf %764, %763 : vector<4x64xf32>
    %766 = arith.addf %762, %765 : vector<4x64xf32>
    %767 = vector.extract_strided_slice %699 {offsets = [20, 0], sizes = [4, 64], strides = [1, 1]} : vector<32x64xf32> to vector<4x64xf32>
    %768 = vector.broadcast %734 : vector<4x1xf32> to vector<4x64xf32>
    %769 = arith.mulf %768, %767 : vector<4x64xf32>
    %770 = arith.addf %766, %769 : vector<4x64xf32>
    %771 = vector.extract_strided_slice %699 {offsets = [24, 0], sizes = [4, 64], strides = [1, 1]} : vector<32x64xf32> to vector<4x64xf32>
    %772 = vector.broadcast %736 : vector<4x1xf32> to vector<4x64xf32>
    %773 = arith.mulf %772, %771 : vector<4x64xf32>
    %774 = arith.addf %770, %773 : vector<4x64xf32>
    %775 = vector.extract_strided_slice %699 {offsets = [28, 0], sizes = [4, 64], strides = [1, 1]} : vector<32x64xf32> to vector<4x64xf32>
    %776 = vector.broadcast %738 : vector<4x1xf32> to vector<4x64xf32>
    %777 = arith.mulf %776, %775 : vector<4x64xf32>
    %778 = arith.addf %774, %777 : vector<4x64xf32>
    %779 = vector.broadcast %745 : vector<4x1xf32> to vector<4x64xf32>
    %780 = arith.divf %778, %779 : vector<4x64xf32>
    %c0_443 = arith.constant 0 : index
    %c0_444 = arith.constant 0 : index
    %781 = vector.load %arg6[%c0_443, %c0_444] : memref<64x64xf32, #tpu.memory_space<vmem>>, vector<64x64xf32>
    %cst_445 = arith.constant dense<0.000000e+00> : vector<4x64xf32>
    %782 = tpu.matmul %780, %781, %cst_445 {dimension_numbers = #tpu.dot_dimension_numbers<[1], [0], [0], [1], [0, 0, 1, 1], [], []>} : vector<4x64xf32>, vector<64x64xf32>, vector<4x64xf32> -> vector<4x64xf32>
    %c0_446 = arith.constant 0 : index
    %c0_447 = arith.constant 0 : index
    %783 = vector.load %arg7[%c0_446, %c0_447] : memref<1x64xf32, #tpu.memory_space<vmem>>, vector<1x64xf32>
    %784 = vector.broadcast %783 : vector<1x64xf32> to vector<4x64xf32>
    %785 = arith.addf %782, %784 : vector<4x64xf32>
    %c0_448 = arith.constant 0 : index
    %c0_449 = arith.constant 0 : index
    %786 = vector.load %arg8[%c0_448, %c0_449] : memref<1x64xf32, #tpu.memory_space<vmem>>, vector<1x64xf32>
    %787 = vector.broadcast %786 : vector<1x64xf32> to vector<4x64xf32>
    %788 = arith.mulf %785, %787 : vector<4x64xf32>
    %c0_450 = arith.constant 0 : index
    %c0_451 = arith.constant 0 : index
    %789 = vector.load %arg9[%c0_450, %c0_451] : memref<1x64xf32, #tpu.memory_space<vmem>>, vector<1x64xf32>
    %790 = vector.broadcast %789 : vector<1x64xf32> to vector<4x64xf32>
    %791 = arith.addf %788, %790 : vector<4x64xf32>
    %cst_452 = arith.constant 0.000000e+00 : f32
    %792 = vector.broadcast %cst_452 : f32 to vector<4x64xf32>
    %793 = arith.cmpf oge, %791, %792 : vector<4x64xf32>
    %cst_453 = arith.constant 0.00999999977 : f32
    %794 = vector.broadcast %cst_453 : f32 to vector<4x64xf32>
    %795 = arith.mulf %794, %791 : vector<4x64xf32>
    %796 = arith.select %793, %791, %795 : vector<4x64xi1>, vector<4x64xf32>
    %c0_454 = arith.constant 0 : index
    %c0_455 = arith.constant 0 : index
    %797 = vector.load %arg10[%c0_454, %c0_455] : memref<64x32xf32, #tpu.memory_space<vmem>>, vector<64x32xf32>
    %cst_456 = arith.constant dense<0.000000e+00> : vector<4x32xf32>
    %798 = tpu.matmul %796, %797, %cst_456 {dimension_numbers = #tpu.dot_dimension_numbers<[1], [0], [0], [1], [0, 0, 1, 1], [], []>} : vector<4x64xf32>, vector<64x32xf32>, vector<4x32xf32> -> vector<4x32xf32>
    %c0_457 = arith.constant 0 : index
    %c0_458 = arith.constant 0 : index
    %799 = vector.load %arg11[%c0_457, %c0_458] : memref<1x32xf32, #tpu.memory_space<vmem>>, vector<1x32xf32>
    %800 = vector.broadcast %799 : vector<1x32xf32> to vector<4x32xf32>
    %801 = arith.addf %798, %800 : vector<4x32xf32>
    %c0_459 = arith.constant 0 : index
    %c0_460 = arith.constant 0 : index
    %802 = vector.load %arg12[%c0_459, %c0_460] : memref<1x32xf32, #tpu.memory_space<vmem>>, vector<1x32xf32>
    %803 = vector.broadcast %802 : vector<1x32xf32> to vector<4x32xf32>
    %804 = arith.mulf %801, %803 : vector<4x32xf32>
    %c0_461 = arith.constant 0 : index
    %c0_462 = arith.constant 0 : index
    %805 = vector.load %arg13[%c0_461, %c0_462] : memref<1x32xf32, #tpu.memory_space<vmem>>, vector<1x32xf32>
    %806 = vector.broadcast %805 : vector<1x32xf32> to vector<4x32xf32>
    %807 = arith.addf %804, %806 : vector<4x32xf32>
    %cst_463 = arith.constant 0.000000e+00 : f32
    %808 = vector.broadcast %cst_463 : f32 to vector<4x32xf32>
    %809 = arith.cmpf oge, %807, %808 : vector<4x32xf32>
    %cst_464 = arith.constant 0.00999999977 : f32
    %810 = vector.broadcast %cst_464 : f32 to vector<4x32xf32>
    %811 = arith.mulf %810, %807 : vector<4x32xf32>
    %812 = arith.select %809, %807, %811 : vector<4x32xi1>, vector<4x32xf32>
    %c0_465 = arith.constant 0 : index
    %c0_466 = arith.constant 0 : index
    %813 = vector.load %arg14[%c0_465, %c0_466] : memref<32x1xf32, #tpu.memory_space<vmem>>, vector<32x1xf32>
    %cst_467 = arith.constant dense<0.000000e+00> : vector<4x1xf32>
    %814 = tpu.matmul %812, %813, %cst_467 {dimension_numbers = #tpu.dot_dimension_numbers<[1], [0], [0], [1], [0, 0, 1, 1], [], []>} : vector<4x32xf32>, vector<32x1xf32>, vector<4x1xf32> -> vector<4x1xf32>
    %c0_468 = arith.constant 0 : index
    %c0_469 = arith.constant 0 : index
    %815 = vector.load %arg15[%c0_468, %c0_469] : memref<1x1xf32, #tpu.memory_space<vmem>>, vector<1x1xf32>
    %816 = vector.broadcast %815 : vector<1x1xf32> to vector<4x1xf32>
    %817 = arith.addf %814, %816 : vector<4x1xf32>
    %c0_470 = arith.constant 0 : index
    %c0_471 = arith.constant 0 : index
    %818 = vector.load %arg16[%c0_470, %c0_471] : memref<4x1xf32, #tpu.memory_space<vmem>>, vector<4x1xf32>
    tpu.vector_store %arg16[%c0_470, %c0_471], %817 {strides = array<i32>} : memref<4x1xf32, #tpu.memory_space<vmem>>, vector<4x1xf32>,
    return
  }
}

</mosaic_0001>

<llo_original>
// kernel: enhanced_lstm_predictor.1
$region0: #{enhanced_lstm_predictor.1}
  #allocation0 [shape = 'u32[]', space=smem, size = 0x4, offset = 0x4, fixed_abs, tag = 'smem constant byte address 0x4 - core index']
  #allocation1 [shape = 'u32[144,128]{1,0:T(1,128)}', space=vmem, size = 0x12000, scoped, tag = 'internal scratch']
  #allocation2 [shape = 'f32[64,128]{1,0:T(8,128)}', space=vmem, size = 0x8000, scoped, tag = 'scratch operand']
  #allocation3 [shape = 'f32[64,32]{1,0:T(8,128)}', space=vmem, size = 0x8000, scoped, tag = 'scratch operand']
  #allocation4 [shape = 'f32[32,64]{1,0:T(8,128)}', space=vmem, size = 0x4000, scoped, tag = 'scratch operand']
  #allocation5 [shape = 'f32[1,1]{1,0:T(1,128)S(1)}', space=vmem, size = 0x200, scoped, tag = 'scoped memory for enhanced_lstm_predictor.1']
  #allocation6 [shape = 'f32[1,1]{1,0:T(1,128)S(1)}', space=vmem, size = 0x200, scoped, tag = 'scoped memory for enhanced_lstm_predictor.1']
  %s0 = inlined_call_operand.vmem [shape: f32[32,64], index: 0, kind: input, shape index: {}]
  %s1 = inlined_call_operand.hbm [shape: f32[3,64,256], index: 1, kind: input, shape index: {}]
  %s2 = inlined_call_operand.vmem [shape: f32[3,32,256], index: 2, kind: input, shape index: {}]
  %s3 = inlined_call_operand.vmem [shape: f32[3,1,256], index: 3, kind: input, shape index: {}]
  %s4 = inlined_call_operand.vmem [shape: f32[1,64], index: 4, kind: input, shape index: {}]
  %s5 = inlined_call_operand.<no memory space> [shape: f32[1,1], index: 5, kind: input, shape index: {}]
  %s6 = inlined_call_operand.vmem [shape: f32[64,64], index: 6, kind: input, shape index: {}]
  %s7 = inlined_call_operand.vmem [shape: f32[1,64], index: 7, kind: input, shape index: {}]
  %s8 = inlined_call_operand.vmem [shape: f32[1,64], index: 8, kind: input, shape index: {}]
  %s9 = inlined_call_operand.vmem [shape: f32[1,64], index: 9, kind: input, shape index: {}]
  %s10 = inlined_call_operand.vmem [shape: f32[64,32], index: 10, kind: input, shape index: {}]
  %s11 = inlined_call_operand.vmem [shape: f32[1,32], index: 11, kind: input, shape index: {}]
  %s12 = inlined_call_operand.vmem [shape: f32[1,32], index: 12, kind: input, shape index: {}]
  %s13 = inlined_call_operand.vmem [shape: f32[1,32], index: 13, kind: input, shape index: {}]
  %s14 = inlined_call_operand.vmem [shape: f32[32,1], index: 14, kind: input, shape index: {}]
  %s15 = inlined_call_operand.<no memory space> [shape: f32[1,1], index: 15, kind: input, shape index: {}]
  %s16 = inlined_call_operand.vmem [shape: f32[4,1], index: 16, kind: output, shape index: {}]
  %s17 = sld [smem:[#allocation0]]
  $region78: #{enhanced_lstm_predictor.1} parent=0
    _
  %s19 = ssub.s32 1, %s17
  %s20 = scalar_select 0, %s19, %s17
  %v21 = vstv %s5
  %22 = vst [vmem:[#allocation5] sm:$0x1] %v21
  %v23 = vstv %s15
  %24 = vst [vmem:[#allocation6] sm:$0x1] %v23
  $region1: #{enhanced_lstm_predictor.1} parent=0
    #allocation7 [shape = 'u8[196608]{0}', space=vmem, size = 0x30000, scoped, tag = 'input window, operand 1, single buffered']
    #allocation8 [shape = 's32[1]{0}', space=sflag, size = 0x4, scoped, tag = 'scoped memory for enhanced_lstm_predictor.1']
    %25 = vsyncpa [#allocation8], 0
    // Predicated region
    $region2: #{enhanced_lstm_predictor.1} parent=1 // pred_check
      _
    $region3: #{enhanced_lstm_predictor.1} parent=1 // pred_check_branch
      %27 = sbr.rel (0) target = $region5
    $region4: #{enhanced_lstm_predictor.1} parent=1 // pred_region
      _
    $region5: #{enhanced_lstm_predictor.1} parent=1 // pred_fallthru
      _
    // Predicated region
    $region6: #{enhanced_lstm_predictor.1} parent=1 // pred_check
      _
    $region7: #{enhanced_lstm_predictor.1} parent=1 // pred_check_branch
      %29 = sbr.rel (0) target = $region9
    $region8: #{enhanced_lstm_predictor.1} parent=1 // pred_region
      %s31 = ssub.s32 6144, 6144
      %32 = vsyncadd [#allocation8], %s31
      %s33 = sshll.u32 [#allocation7], 4
      %s34 = int_to_ptr.vmem [resolvable:$true] %s33
      %39 = dma.hbm_to_vmem [thread:$0]  %s1, 6144, %s34, [#allocation8], 256, 256, 16
    $region9: #{enhanced_lstm_predictor.1} parent=1 // pred_fallthru
      _
    // Predicated region
    $region10: #{enhanced_lstm_predictor.1} parent=1 // pred_check
      _
    $region11: #{enhanced_lstm_predictor.1} parent=1 // pred_check_branch
      %41 = sbr.rel (0) target = $region13
    $region12: #{enhanced_lstm_predictor.1} parent=1 // pred_region
      _
    $region13: #{enhanced_lstm_predictor.1} parent=1 // pred_fallthru
      _
    // Predicated region
    $region14: #{enhanced_lstm_predictor.1} parent=1 // pred_check
      _
    $region15: #{enhanced_lstm_predictor.1} parent=1 // pred_check_branch
      %43 = sbr.rel (0) target = $region17
    $region16: #{enhanced_lstm_predictor.1} parent=1 // pred_region
      _
    $region17: #{enhanced_lstm_predictor.1} parent=1 // pred_fallthru
      _
    // Predicated region
    $region18: #{enhanced_lstm_predictor.1} parent=1 // pred_check
      _
    $region19: #{enhanced_lstm_predictor.1} parent=1 // pred_check_branch
      %45 = sbr.rel (0) target = $region21
    $region20: #{enhanced_lstm_predictor.1} parent=1 // pred_region
      _
    $region21: #{enhanced_lstm_predictor.1} parent=1 // pred_fallthru
      _
    // Predicated region
    $region22: #{enhanced_lstm_predictor.1} parent=1 // pred_check
      _
    $region23: #{enhanced_lstm_predictor.1} parent=1 // pred_check_branch
      %47 = sbr.rel (0) target = $region25
    $region24: #{enhanced_lstm_predictor.1} parent=1 // pred_region
      _
    $region25: #{enhanced_lstm_predictor.1} parent=1 // pred_fallthru
      _
    // Predicated region
    $region26: #{enhanced_lstm_predictor.1} parent=1 // pred_check
      _
    $region27: #{enhanced_lstm_predictor.1} parent=1 // pred_check_branch
      %49 = sbr.rel (0) target = $region29
    $region28: #{enhanced_lstm_predictor.1} parent=1 // pred_region
      _
    $region29: #{enhanced_lstm_predictor.1} parent=1 // pred_fallthru
      _
    // Predicated region
    $region30: #{enhanced_lstm_predictor.1} parent=1 // pred_check
      _
    $region31: #{enhanced_lstm_predictor.1} parent=1 // pred_check_branch
      %51 = sbr.rel (0) target = $region33
    $region32: #{enhanced_lstm_predictor.1} parent=1 // pred_region
      _
    $region33: #{enhanced_lstm_predictor.1} parent=1 // pred_fallthru
      _
    // Predicated region
    $region34: #{enhanced_lstm_predictor.1} parent=1 // pred_check
      _
    $region35: #{enhanced_lstm_predictor.1} parent=1 // pred_check_branch
      %53 = sbr.rel (0) target = $region37
    $region36: #{enhanced_lstm_predictor.1} parent=1 // pred_region
      _
    $region37: #{enhanced_lstm_predictor.1} parent=1 // pred_fallthru
      _
    // Predicated region
    $region38: #{enhanced_lstm_predictor.1} parent=1 // pred_check
      _
    $region39: #{enhanced_lstm_predictor.1} parent=1 // pred_check_branch
      %55 = sbr.rel (0) target = $region41
    $region40: #{enhanced_lstm_predictor.1} parent=1 // pred_region
      _
    $region41: #{enhanced_lstm_predictor.1} parent=1 // pred_fallthru
      _
    // Predicated region
    $region42: #{enhanced_lstm_predictor.1} parent=1 // pred_check
      _
    $region43: #{enhanced_lstm_predictor.1} parent=1 // pred_check_branch
      %57 = sbr.rel (0) target = $region45
    $region44: #{enhanced_lstm_predictor.1} parent=1 // pred_region
      _
    $region45: #{enhanced_lstm_predictor.1} parent=1 // pred_fallthru
      _
    // Predicated region
    $region46: #{enhanced_lstm_predictor.1} parent=1 // pred_check
      _
    $region47: #{enhanced_lstm_predictor.1} parent=1 // pred_check_branch
      %59 = sbr.rel (0) target = $region49
    $region48: #{enhanced_lstm_predictor.1} parent=1 // pred_region
      _
    $region49: #{enhanced_lstm_predictor.1} parent=1 // pred_fallthru
      _
    // Predicated region
    $region50: #{enhanced_lstm_predictor.1} parent=1 // pred_check
      _
    $region51: #{enhanced_lstm_predictor.1} parent=1 // pred_check_branch
      %61 = sbr.rel (0) target = $region53
    $region52: #{enhanced_lstm_predictor.1} parent=1 // pred_region
      _
    $region53: #{enhanced_lstm_predictor.1} parent=1 // pred_fallthru
      _
    // Predicated region
    $region54: #{enhanced_lstm_predictor.1} parent=1 // pred_check
      _
    $region55: #{enhanced_lstm_predictor.1} parent=1 // pred_check_branch
      %63 = sbr.rel (0) target = $region57
    $region56: #{enhanced_lstm_predictor.1} parent=1 // pred_region
      _
    $region57: #{enhanced_lstm_predictor.1} parent=1 // pred_fallthru
      _
    // Predicated region
    $region58: #{enhanced_lstm_predictor.1} parent=1 // pred_check
      _
    $region59: #{enhanced_lstm_predictor.1} parent=1 // pred_check_branch
      %65 = sbr.rel (0) target = $region61
    $region60: #{enhanced_lstm_predictor.1} parent=1 // pred_region
      _
    $region61: #{enhanced_lstm_predictor.1} parent=1 // pred_fallthru
      _
    // Predicated region
    $region62: #{enhanced_lstm_predictor.1} parent=1 // pred_check
      _
    $region63: #{enhanced_lstm_predictor.1} parent=1 // pred_check_branch
      %67 = sbr.rel (0) target = $region65
    $region64: #{enhanced_lstm_predictor.1} parent=1 // pred_region
      _
    $region65: #{enhanced_lstm_predictor.1} parent=1 // pred_fallthru
      _
    // Predicated region
    $region66: #{enhanced_lstm_predictor.1} parent=1 // pred_check
      _
    $region67: #{enhanced_lstm_predictor.1} parent=1 // pred_check_branch
      %69 = sbr.rel (0) target = $region69
    $region68: #{enhanced_lstm_predictor.1} parent=1 // pred_region
      %70 = dma.done [#allocation8], 6144
    $region69: #{enhanced_lstm_predictor.1} parent=1 // pred_fallthru
      _
    %v71 = vlaneseq
    %v72 = vshrl.u32 %v71, 7
    %v73 = vlaneseq
    %v74 = vand.u32 %v73, 127
    %vm75 = vcmp.lt.s32.totalorder %v72, 4
    %vm76 = vcmp.ge.s32.totalorder %v74, 64
    %vm77 = vcmp.lt.s32.totalorder %v74, 96
    %vm78 = vmand %vm76, %vm77
    %v79 = vsel %vm78, 1.0, 0.5
    %v80 = vsel %vm78, 0.0, 0.5
    %v81 = vld [vmem:[%s0] sm:$0xff]
    %v82 = vld [vmem:[%s0 + $0x8] sm:$0xff]
    %v83 = vld [vmem:[%s0 + $0x10] sm:$0xff]
    %v84 = vld [vmem:[%s0 + $0x18] sm:$0xff]
    %v85 = vld [vmem:[#allocation7] sm:$0xff]
    %v86 = vld [vmem:[#allocation7 + $0x8] sm:$0xff]
    %v87 = vld [vmem:[#allocation7 + $0x10] sm:$0xff]
    %v88 = vld [vmem:[#allocation7 + $0x18] sm:$0xff]
    %v89 = vld [vmem:[#allocation7 + $0x20] sm:$0xff]
    %v90 = vld [vmem:[#allocation7 + $0x28] sm:$0xff]
    %v91 = vld [vmem:[#allocation7 + $0x30] sm:$0xff]
    %v92 = vld [vmem:[#allocation7 + $0x38] sm:$0xff]
    %v93 = vld [vmem:[#allocation7 + $0x40] sm:$0xff]
    %v94 = vld [vmem:[#allocation7 + $0x48] sm:$0xff]
    %v95 = vld [vmem:[#allocation7 + $0x50] sm:$0xff]
    %v96 = vld [vmem:[#allocation7 + $0x58] sm:$0xff]
    %v97 = vld [vmem:[#allocation7 + $0x60] sm:$0xff]
    %v98 = vld [vmem:[#allocation7 + $0x68] sm:$0xff]
    %v99 = vld [vmem:[#allocation7 + $0x70] sm:$0xff]
    %v100 = vld [vmem:[#allocation7 + $0x78] sm:$0xff]
    %v101 = vld [vmem:[%s3] sm:$0x3]
    %v103 = vlaneseq
    %v104 = vshrl.u32 %v103, 7
    %v105 = vsub.s32 0, %v104
    %v106 = vrot.slane %v101, %v105
    %v107 = vlaneseq
    %v108 = vshrl.u32 %v107, 7
    %v109 = vsub.s32 1, %v108
    %v110 = vrot.slane %v101, %v109
    %vm113 = vcmask 523264
    %v115 = vsel %vm113, %v81, 0
    %v118 = vsel %vm113, %v82, 0
    %v121 = vsel %vm113, %v83, 0
    %v124 = vsel %vm113, %v84, 0
    %126 = vmatprep.subr.mxu0 %v86
    %127 = vmatpush1.msra.mxu0 %v85
    %128 = vmatprep.subr.mxu0 %v88
    %129 = vmatpush1.msra.mxu0 %v87
    %130 = vmatprep.subr.mxu0 %v90
    %131 = vmatpush1.msra.mxu0 %v89
    %132 = vmatprep.subr.mxu0 %v92
    %133 = vmatpush1.msra.mxu0 %v91
    %134 = vmatprep.subr.mxu0 %v94
    %135 = vmatpush1.msra.mxu0 %v93
    %136 = vmatprep.subr.mxu0 %v96
    %137 = vmatpush1.msra.mxu0 %v95
    %138 = vmatprep.subr.mxu0 %v98
    %139 = vmatpush1.msra.mxu0 %v97
    %140 = vmatprep.subr.mxu0 %v100
    %141 = vmatpush1.msra.mxu0 %v99
    %142 = vmatprep.subr.mxu0 0.0
    %143 = vmatpush1.msra.mxu0 0.0
    %144 = vmatprep.subr.mxu0 0.0
    %145 = vmatpush1.msra.mxu0 0.0
    %146 = vmatprep.subr.mxu0 0.0
    %147 = vmatpush1.msra.mxu0 0.0
    %148 = vmatprep.subr.mxu0 0.0
    %149 = vmatpush1.msra.mxu0 0.0
    %150 = vmatprep.subr.mxu0 0.0
    %151 = vmatpush1.msra.mxu0 0.0
    %152 = vmatprep.subr.mxu0 0.0
    %153 = vmatpush1.msra.mxu0 0.0
    %154 = vmatprep.subr.mxu0 0.0
    %155 = vmatpush1.msra.mxu0 0.0
    %156 = vmatprep.subr.mxu0 0.0
    %157 = vmatpush1.msra.mxu0 0.0
    %158 = vmatprep.subr.mxu0 0.0
    %159 = vmatpush1.msra.mxu0 0.0
    %160 = vmatprep.subr.mxu0 0.0
    %161 = vmatpush1.msra.mxu0 0.0
    %162 = vmatprep.subr.mxu0 0.0
    %163 = vmatpush1.msra.mxu0 0.0
    %164 = vmatprep.subr.mxu0 0.0
    %165 = vmatpush1.msra.mxu0 0.0
    %166 = vmatprep.subr.mxu0 0.0
    %167 = vmatpush1.msra.mxu0 0.0
    %168 = vmatprep.subr.mxu0 0.0
    %169 = vmatpush1.msra.mxu0 0.0
    %170 = vmatprep.subr.mxu0 0.0
    %171 = vmatpush1.msra.mxu0 0.0
    %172 = vmatprep.subr.mxu0 0.0
    %173 = vmatpush1.msra.mxu0 0.0
    %174 = vmatprep.subr.mxu0 0.0
    %175 = vmatpush1.msra.mxu0 0.0
    %176 = vmatprep.subr.mxu0 0.0
    %177 = vmatpush1.msra.mxu0 0.0
    %178 = vmatprep.subr.mxu0 0.0
    %179 = vmatpush1.msra.mxu0 0.0
    %180 = vmatprep.subr.mxu0 0.0
    %181 = vmatpush1.msra.mxu0 0.0
    %182 = vmatprep.subr.mxu0 0.0
    %183 = vmatpush1.msra.mxu0 0.0
    %184 = vmatprep.subr.mxu0 0.0
    %185 = vmatpush1.msra.mxu0 0.0
    %186 = vmatprep.subr.mxu0 0.0
    %187 = vmatpush1.msra.mxu0 0.0
    %188 = vmatprep.subr.mxu0 0.0
    %189 = vmatpush1.msra.mxu0 0.0
    %190 = vmatprep.mubr.f32.mxu0 0.0
    %191 = vmatmul.mubr.f32.gmra.mrb[0].mxu0 %v115
    %v192 = vpop.f32.mrb[0].mxu0
    %v193 = vadd.f32 %v106, %v192
    %v194 = vpop.f32.mrb[0].mxu0
    %v195 = vadd.f32 %v110, %v194
    %196 = vmatprep.mubr.f32.mxu0 0.0
    %197 = vmatmul.mubr.f32.gmra.mrb[0].mxu0 %v118
    %v198 = vpop.f32.mrb[0].mxu0
    %v199 = vadd.f32 %v106, %v198
    %v200 = vpop.f32.mrb[0].mxu0
    %v201 = vadd.f32 %v110, %v200
    %202 = vmatprep.mubr.f32.mxu0 0.0
    %203 = vmatmul.mubr.f32.gmra.mrb[0].mxu0 %v121
    %v204 = vpop.f32.mrb[0].mxu0
    %v205 = vadd.f32 %v106, %v204
    %v206 = vpop.f32.mrb[0].mxu0
    %v207 = vadd.f32 %v110, %v206
    %208 = vmatprep.mubr.f32.mxu0 0.0
    %209 = vmatmul.mubr.f32.gmra.mrb[0].mxu0 %v124
    %v210 = vpop.f32.mrb[0].mxu0
    %v211 = vadd.f32 %v106, %v210
    %v212 = vpop.f32.mrb[0].mxu0
    %v213 = vadd.f32 %v110, %v212
    %214 = vdwg.mxu0
    %215 = vst [vmem:[#allocation2] sm:$0xf] %v193
    %216 = vst [vmem:[#allocation2] sm:$0xf0] %v213
    %217 = vst [vmem:[#allocation2 + $0x4] sm:$0xf0] %v193
    %218 = vst [vmem:[#allocation2 + $0xc] sm:$0xf] %v213
    %219 = vst [vmem:[#allocation2 + $0x10] sm:$0xf] %v199
    %220 = vst [vmem:[#allocation2 + $0x10] sm:$0xf0] %v207
    %221 = vst [vmem:[#allocation2 + $0x14] sm:$0xf0] %v199
    %222 = vst [vmem:[#allocation2 + $0x1c] sm:$0xf] %v207
    %223 = vst [vmem:[#allocation2 + $0x20] sm:$0xf] %v205
    %224 = vst [vmem:[#allocation2 + $0x20] sm:$0xf0] %v201
    %225 = vst [vmem:[#allocation2 + $0x24] sm:$0xf0] %v205
    %226 = vst [vmem:[#allocation2 + $0x2c] sm:$0xf] %v201
    %227 = vst [vmem:[#allocation2 + $0x30] sm:$0xf] %v211
    %228 = vst [vmem:[#allocation2 + $0x30] sm:$0xf0] %v195
    %229 = vst [vmem:[#allocation2 + $0x34] sm:$0xf0] %v211
    %230 = vst [vmem:[#allocation2 + $0x3c] sm:$0xf] %v195
    %v231 = vld [vmem:[%s2] sm:$0xff]
    %v232 = vld [vmem:[%s2 + $0x8] sm:$0xff]
    %v233 = vld [vmem:[%s2 + $0x10] sm:$0xff]
    %v234 = vld [vmem:[%s2 + $0x18] sm:$0xff]
    %v235 = vld [vmem:[%s2 + $0x20] sm:$0xff]
    %v236 = vld [vmem:[%s2 + $0x28] sm:$0xff]
    %v237 = vld [vmem:[%s2 + $0x30] sm:$0xff]
    %v238 = vld [vmem:[%s2 + $0x38] sm:$0xff]
    %vm239 = vcmask 261120
    %v241 = vsel %vm239, 0.0, 0
    %243 = vmatprep.subr.mxu0 %v232
    %244 = vmatpush1.msra.mxu0 %v231
    %245 = vmatprep.subr.mxu0 %v234
    %246 = vmatpush1.msra.mxu0 %v233
    %247 = vmatprep.subr.mxu0 %v236
    %248 = vmatpush1.msra.mxu0 %v235
    %249 = vmatprep.subr.mxu0 %v238
    %250 = vmatpush1.msra.mxu0 %v237
    %251 = vmatprep.subr.mxu0 0.0
    %252 = vmatpush1.msra.mxu0 0.0
    %253 = vmatprep.subr.mxu0 0.0
    %254 = vmatpush1.msra.mxu0 0.0
    %255 = vmatprep.subr.mxu0 0.0
    %256 = vmatpush1.msra.mxu0 0.0
    %257 = vmatprep.subr.mxu0 0.0
    %258 = vmatpush1.msra.mxu0 0.0
    %259 = vmatprep.subr.mxu0 0.0
    %260 = vmatpush1.msra.mxu0 0.0
    %261 = vmatprep.subr.mxu0 0.0
    %262 = vmatpush1.msra.mxu0 0.0
    %263 = vmatprep.subr.mxu0 0.0
    %264 = vmatpush1.msra.mxu0 0.0
    %265 = vmatprep.subr.mxu0 0.0
    %266 = vmatpush1.msra.mxu0 0.0
    %267 = vmatprep.subr.mxu0 0.0
    %268 = vmatpush1.msra.mxu0 0.0
    %269 = vmatprep.subr.mxu0 0.0
    %270 = vmatpush1.msra.mxu0 0.0
    %271 = vmatprep.subr.mxu0 0.0
    %272 = vmatpush1.msra.mxu0 0.0
    %273 = vmatprep.subr.mxu0 0.0
    %274 = vmatpush1.msra.mxu0 0.0
    %275 = vmatprep.subr.mxu0 0.0
    %276 = vmatpush1.msra.mxu0 0.0
    %277 = vmatprep.subr.mxu0 0.0
    %278 = vmatpush1.msra.mxu0 0.0
    %279 = vmatprep.subr.mxu0 0.0
    %280 = vmatpush1.msra.mxu0 0.0
    %281 = vmatprep.subr.mxu0 0.0
    %282 = vmatpush1.msra.mxu0 0.0
    %283 = vmatprep.subr.mxu0 0.0
    %284 = vmatpush1.msra.mxu0 0.0
    %285 = vmatprep.subr.mxu0 0.0
    %286 = vmatpush1.msra.mxu0 0.0
    %287 = vmatprep.subr.mxu0 0.0
    %288 = vmatpush1.msra.mxu0 0.0
    %289 = vmatprep.subr.mxu0 0.0
    %290 = vmatpush1.msra.mxu0 0.0
    %291 = vmatprep.subr.mxu0 0.0
    %292 = vmatpush1.msra.mxu0 0.0
    %293 = vmatprep.subr.mxu0 0.0
    %294 = vmatpush1.msra.mxu0 0.0
    %295 = vmatprep.subr.mxu0 0.0
    %296 = vmatpush1.msra.mxu0 0.0
    %297 = vmatprep.subr.mxu0 0.0
    %298 = vmatpush1.msra.mxu0 0.0
    %299 = vmatprep.subr.mxu0 0.0
    %300 = vmatpush1.msra.mxu0 0.0
    %301 = vmatprep.subr.mxu0 0.0
    %302 = vmatpush1.msra.mxu0 0.0
    %303 = vmatprep.subr.mxu0 0.0
    %304 = vmatpush1.msra.mxu0 0.0
    %305 = vmatprep.subr.mxu0 0.0
    %306 = vmatpush1.msra.mxu0 0.0
    %307 = vmatprep.mubr.f32.mxu0 0.0
    %308 = vmatmul.mubr.f32.gmra.mrb[0].mxu0 %v241
    %v309 = vpop.f32.mrb[0].mxu0
    %v310 = vadd.f32 0.0, %v309
    %v311 = vpop.f32.mrb[0].mxu0
    %v312 = vadd.f32 0.0, %v311
    %313 = vdwg.mxu0
    %v314 = vsel %vm75, %v310, %v312
    %v315 = vld [vmem:[#allocation2] sm:$0xff]
    %v316 = vadd.f32 %v315, %v314
    %v317 = vtanh.pop %v316
    %v318 = vmul.f32 %v317, %v79
    %v319 = vadd.f32 %v318, %v80
    %v320 = vmul.f32 %v319, 0.0
    %322 = vrot.lane.b32.xlu0 %v319, 64
    %v323 = vpop.permute.xlu0 %322
    %v325 = vmul.f32 %v319, %v323
    %327 = vrot.lane.b32.xlu0 %v325, 32
    %v328 = vpop.permute.xlu0 %327
    %v330 = vadd.f32 %v320, %v328
    %v331 = vtanh.pop %v330
    %333 = vrot.lane.b32.xlu0 %v331, 64
    %v334 = vpop.permute.xlu0 %333
    %v336 = vmul.f32 %v319, %v334
    %338 = vrot.lane.b32.xlu0 %v336, 32
    %v339 = vpop.permute.xlu0 %338
    %341 = vst.msk [vmem:[#allocation3] sm:$0xff] %vm239, %v339
    %v342 = vsel %vm239, %v339, 0
    %344 = vmatprep.subr.mxu0 %v232
    %345 = vmatpush1.msra.mxu0 %v231
    %346 = vmatprep.subr.mxu0 %v234
    %347 = vmatpush1.msra.mxu0 %v233
    %348 = vmatprep.subr.mxu0 %v236
    %349 = vmatpush1.msra.mxu0 %v235
    %350 = vmatprep.subr.mxu0 %v238
    %351 = vmatpush1.msra.mxu0 %v237
    %352 = vmatprep.subr.mxu0 0.0
    %353 = vmatpush1.msra.mxu0 0.0
    %354 = vmatprep.subr.mxu0 0.0
    %355 = vmatpush1.msra.mxu0 0.0
    %356 = vmatprep.subr.mxu0 0.0
    %357 = vmatpush1.msra.mxu0 0.0
    %358 = vmatprep.subr.mxu0 0.0
    %359 = vmatpush1.msra.mxu0 0.0
    %360 = vmatprep.subr.mxu0 0.0
    %361 = vmatpush1.msra.mxu0 0.0
    %362 = vmatprep.subr.mxu0 0.0
    %363 = vmatpush1.msra.mxu0 0.0
    %364 = vmatprep.subr.mxu0 0.0
    %365 = vmatpush1.msra.mxu0 0.0
    %366 = vmatprep.subr.mxu0 0.0
    %367 = vmatpush1.msra.mxu0 0.0
    %368 = vmatprep.subr.mxu0 0.0
    %369 = vmatpush1.msra.mxu0 0.0
    %370 = vmatprep.subr.mxu0 0.0
    %371 = vmatpush1.msra.mxu0 0.0
    %372 = vmatprep.subr.mxu0 0.0
    %373 = vmatpush1.msra.mxu0 0.0
    %374 = vmatprep.subr.mxu0 0.0
    %375 = vmatpush1.msra.mxu0 0.0
    %376 = vmatprep.subr.mxu0 0.0
    %377 = vmatpush1.msra.mxu0 0.0
    %378 = vmatprep.subr.mxu0 0.0
    %379 = vmatpush1.msra.mxu0 0.0
    %380 = vmatprep.subr.mxu0 0.0
    %381 = vmatpush1.msra.mxu0 0.0
    %382 = vmatprep.subr.mxu0 0.0
    %383 = vmatpush1.msra.mxu0 0.0
    %384 = vmatprep.subr.mxu0 0.0
    %385 = vmatpush1.msra.mxu0 0.0
    %386 = vmatprep.subr.mxu0 0.0
    %387 = vmatpush1.msra.mxu0 0.0
    %388 = vmatprep.subr.mxu0 0.0
    %389 = vmatpush1.msra.mxu0 0.0
    %390 = vmatprep.subr.mxu0 0.0
    %391 = vmatpush1.msra.mxu0 0.0
    %392 = vmatprep.subr.mxu0 0.0
    %393 = vmatpush1.msra.mxu0 0.0
    %394 = vmatprep.subr.mxu0 0.0
    %395 = vmatpush1.msra.mxu0 0.0
    %396 = vmatprep.subr.mxu0 0.0
    %397 = vmatpush1.msra.mxu0 0.0
    %398 = vmatprep.subr.mxu0 0.0
    %399 = vmatpush1.msra.mxu0 0.0
    %400 = vmatprep.subr.mxu0 0.0
    %401 = vmatpush1.msra.mxu0 0.0
    %402 = vmatprep.subr.mxu0 0.0
    %403 = vmatpush1.msra.mxu0 0.0
    %404 = vmatprep.subr.mxu0 0.0
    %405 = vmatpush1.msra.mxu0 0.0
    %406 = vmatprep.subr.mxu0 0.0
    %407 = vmatpush1.msra.mxu0 0.0
    %408 = vmatprep.mubr.f32.mxu0 0.0
    %409 = vmatmul.mubr.f32.gmra.mrb[0].mxu0 %v342
    %v410 = vpop.f32.mrb[0].mxu0
    %v411 = vadd.f32 0.0, %v410
    %v412 = vpop.f32.mrb[0].mxu0
    %v413 = vadd.f32 0.0, %v412
    %414 = vdwg.mxu0
    %v415 = vsel %vm75, %v411, %v413
    %v416 = vld [vmem:[#allocation2 + $0x8] sm:$0xff]
    %v417 = vadd.f32 %v416, %v415
    %v418 = vtanh.pop %v417
    %v419 = vmul.f32 %v418, %v79
    %v420 = vadd.f32 %v419, %v80
    %v421 = vmul.f32 %v420, %v330
    %423 = vrot.lane.b32.xlu0 %v420, 64
    %v424 = vpop.permute.xlu0 %423
    %v426 = vmul.f32 %v420, %v424
    %428 = vrot.lane.b32.xlu0 %v426, 32
    %v429 = vpop.permute.xlu0 %428
    %v431 = vadd.f32 %v421, %v429
    %v432 = vtanh.pop %v431
    %434 = vrot.lane.b32.xlu0 %v432, 64
    %v435 = vpop.permute.xlu0 %434
    %v437 = vmul.f32 %v420, %v435
    %439 = vrot.lane.b32.xlu0 %v437, 32
    %v440 = vpop.permute.xlu0 %439
    %442 = vst.msk [vmem:[#allocation3 + $0x8] sm:$0xff] %vm239, %v440
    %v443 = vsel %vm239, %v440, 0
    %445 = vmatprep.subr.mxu0 %v232
    %446 = vmatpush1.msra.mxu0 %v231
    %447 = vmatprep.subr.mxu0 %v234
    %448 = vmatpush1.msra.mxu0 %v233
    %449 = vmatprep.subr.mxu0 %v236
    %450 = vmatpush1.msra.mxu0 %v235
    %451 = vmatprep.subr.mxu0 %v238
    %452 = vmatpush1.msra.mxu0 %v237
    %453 = vmatprep.subr.mxu0 0.0
    %454 = vmatpush1.msra.mxu0 0.0
    %455 = vmatprep.subr.mxu0 0.0
    %456 = vmatpush1.msra.mxu0 0.0
    %457 = vmatprep.subr.mxu0 0.0
    %458 = vmatpush1.msra.mxu0 0.0
    %459 = vmatprep.subr.mxu0 0.0
    %460 = vmatpush1.msra.mxu0 0.0
    %461 = vmatprep.subr.mxu0 0.0
    %462 = vmatpush1.msra.mxu0 0.0
    %463 = vmatprep.subr.mxu0 0.0
    %464 = vmatpush1.msra.mxu0 0.0
    %465 = vmatprep.subr.mxu0 0.0
    %466 = vmatpush1.msra.mxu0 0.0
    %467 = vmatprep.subr.mxu0 0.0
    %468 = vmatpush1.msra.mxu0 0.0
    %469 = vmatprep.subr.mxu0 0.0
    %470 = vmatpush1.msra.mxu0 0.0
    %471 = vmatprep.subr.mxu0 0.0
    %472 = vmatpush1.msra.mxu0 0.0
    %473 = vmatprep.subr.mxu0 0.0
    %474 = vmatpush1.msra.mxu0 0.0
    %475 = vmatprep.subr.mxu0 0.0
    %476 = vmatpush1.msra.mxu0 0.0
    %477 = vmatprep.subr.mxu0 0.0
    %478 = vmatpush1.msra.mxu0 0.0
    %479 = vmatprep.subr.mxu0 0.0
    %480 = vmatpush1.msra.mxu0 0.0
    %481 = vmatprep.subr.mxu0 0.0
    %482 = vmatpush1.msra.mxu0 0.0
    %483 = vmatprep.subr.mxu0 0.0
    %484 = vmatpush1.msra.mxu0 0.0
    %485 = vmatprep.subr.mxu0 0.0
    %486 = vmatpush1.msra.mxu0 0.0
    %487 = vmatprep.subr.mxu0 0.0
    %488 = vmatpush1.msra.mxu0 0.0
    %489 = vmatprep.subr.mxu0 0.0
    %490 = vmatpush1.msra.mxu0 0.0
    %491 = vmatprep.subr.mxu0 0.0
    %492 = vmatpush1.msra.mxu0 0.0
    %493 = vmatprep.subr.mxu0 0.0
    %494 = vmatpush1.msra.mxu0 0.0
    %495 = vmatprep.subr.mxu0 0.0
    %496 = vmatpush1.msra.mxu0 0.0
    %497 = vmatprep.subr.mxu0 0.0
    %498 = vmatpush1.msra.mxu0 0.0
    %499 = vmatprep.subr.mxu0 0.0
    %500 = vmatpush1.msra.mxu0 0.0
    %501 = vmatprep.subr.mxu0 0.0
    %502 = vmatpush1.msra.mxu0 0.0
    %503 = vmatprep.subr.mxu0 0.0
    %504 = vmatpush1.msra.mxu0 0.0
    %505 = vmatprep.subr.mxu0 0.0
    %506 = vmatpush1.msra.mxu0 0.0
    %507 = vmatprep.subr.mxu0 0.0
    %508 = vmatpush1.msra.mxu0 0.0
    %509 = vmatprep.mubr.f32.mxu0 0.0
    %510 = vmatmul.mubr.f32.gmra.mrb[0].mxu0 %v443
    %v511 = vpop.f32.mrb[0].mxu0
    %v512 = vadd.f32 0.0, %v511
    %v513 = vpop.f32.mrb[0].mxu0
    %v514 = vadd.f32 0.0, %v513
    %515 = vdwg.mxu0
    %v516 = vsel %vm75, %v512, %v514
    %v517 = vld [vmem:[#allocation2 + $0x10] sm:$0xff]
    %v518 = vadd.f32 %v517, %v516
    %v519 = vtanh.pop %v518
    %v520 = vmul.f32 %v519, %v79
    %v521 = vadd.f32 %v520, %v80
    %v522 = vmul.f32 %v521, %v431
    %524 = vrot.lane.b32.xlu0 %v521, 64
    %v525 = vpop.permute.xlu0 %524
    %v527 = vmul.f32 %v521, %v525
    %529 = vrot.lane.b32.xlu0 %v527, 32
    %v530 = vpop.permute.xlu0 %529
    %v532 = vadd.f32 %v522, %v530
    %v533 = vtanh.pop %v532
    %535 = vrot.lane.b32.xlu0 %v533, 64
    %v536 = vpop.permute.xlu0 %535
    %v538 = vmul.f32 %v521, %v536
    %540 = vrot.lane.b32.xlu0 %v538, 32
    %v541 = vpop.permute.xlu0 %540
    %543 = vst.msk [vmem:[#allocation3 + $0x10] sm:$0xff] %vm239, %v541
    %v544 = vsel %vm239, %v541, 0
    %546 = vmatprep.subr.mxu0 %v232
    %547 = vmatpush1.msra.mxu0 %v231
    %548 = vmatprep.subr.mxu0 %v234
    %549 = vmatpush1.msra.mxu0 %v233
    %550 = vmatprep.subr.mxu0 %v236
    %551 = vmatpush1.msra.mxu0 %v235
    %552 = vmatprep.subr.mxu0 %v238
    %553 = vmatpush1.msra.mxu0 %v237
    %554 = vmatprep.subr.mxu0 0.0
    %555 = vmatpush1.msra.mxu0 0.0
    %556 = vmatprep.subr.mxu0 0.0
    %557 = vmatpush1.msra.mxu0 0.0
    %558 = vmatprep.subr.mxu0 0.0
    %559 = vmatpush1.msra.mxu0 0.0
    %560 = vmatprep.subr.mxu0 0.0
    %561 = vmatpush1.msra.mxu0 0.0
    %562 = vmatprep.subr.mxu0 0.0
    %563 = vmatpush1.msra.mxu0 0.0
    %564 = vmatprep.subr.mxu0 0.0
    %565 = vmatpush1.msra.mxu0 0.0
    %566 = vmatprep.subr.mxu0 0.0
    %567 = vmatpush1.msra.mxu0 0.0
    %568 = vmatprep.subr.mxu0 0.0
    %569 = vmatpush1.msra.mxu0 0.0
    %570 = vmatprep.subr.mxu0 0.0
    %571 = vmatpush1.msra.mxu0 0.0
    %572 = vmatprep.subr.mxu0 0.0
    %573 = vmatpush1.msra.mxu0 0.0
    %574 = vmatprep.subr.mxu0 0.0
    %575 = vmatpush1.msra.mxu0 0.0
    %576 = vmatprep.subr.mxu0 0.0
    %577 = vmatpush1.msra.mxu0 0.0
    %578 = vmatprep.subr.mxu0 0.0
    %579 = vmatpush1.msra.mxu0 0.0
    %580 = vmatprep.subr.mxu0 0.0
    %581 = vmatpush1.msra.mxu0 0.0
    %582 = vmatprep.subr.mxu0 0.0
    %583 = vmatpush1.msra.mxu0 0.0
    %584 = vmatprep.subr.mxu0 0.0
    %585 = vmatpush1.msra.mxu0 0.0
    %586 = vmatprep.subr.mxu0 0.0
    %587 = vmatpush1.msra.mxu0 0.0
    %588 = vmatprep.subr.mxu0 0.0
    %589 = vmatpush1.msra.mxu0 0.0
    %590 = vmatprep.subr.mxu0 0.0
    %591 = vmatpush1.msra.mxu0 0.0
    %592 = vmatprep.subr.mxu0 0.0
    %593 = vmatpush1.msra.mxu0 0.0
    %594 = vmatprep.subr.mxu0 0.0
    %595 = vmatpush1.msra.mxu0 0.0
    %596 = vmatprep.subr.mxu0 0.0
    %597 = vmatpush1.msra.mxu0 0.0
    %598 = vmatprep.subr.mxu0 0.0
    %599 = vmatpush1.msra.mxu0 0.0
    %600 = vmatprep.subr.mxu0 0.0
    %601 = vmatpush1.msra.mxu0 0.0
    %602 = vmatprep.subr.mxu0 0.0
    %603 = vmatpush1.msra.mxu0 0.0
    %604 = vmatprep.subr.mxu0 0.0
    %605 = vmatpush1.msra.mxu0 0.0
    %606 = vmatprep.subr.mxu0 0.0
    %607 = vmatpush1.msra.mxu0 0.0
    %608 = vmatprep.subr.mxu0 0.0
    %609 = vmatpush1.msra.mxu0 0.0
    %610 = vmatprep.mubr.f32.mxu0 0.0
    %611 = vmatmul.mubr.f32.gmra.mrb[0].mxu0 %v544
    %v612 = vpop.f32.mrb[0].mxu0
    %v613 = vadd.f32 0.0, %v612
    %v614 = vpop.f32.mrb[0].mxu0
    %v615 = vadd.f32 0.0, %v614
    %616 = vdwg.mxu0
    %v617 = vsel %vm75, %v613, %v615
    %v618 = vld [vmem:[#allocation2 + $0x18] sm:$0xff]
    %v619 = vadd.f32 %v618, %v617
    %v620 = vtanh.pop %v619
    %v621 = vmul.f32 %v620, %v79
    %v622 = vadd.f32 %v621, %v80
    %v623 = vmul.f32 %v622, %v532
    %625 = vrot.lane.b32.xlu0 %v622, 64
    %v626 = vpop.permute.xlu0 %625
    %v628 = vmul.f32 %v622, %v626
    %630 = vrot.lane.b32.xlu0 %v628, 32
    %v631 = vpop.permute.xlu0 %630
    %v633 = vadd.f32 %v623, %v631
    %v634 = vtanh.pop %v633
    %636 = vrot.lane.b32.xlu0 %v634, 64
    %v637 = vpop.permute.xlu0 %636
    %v639 = vmul.f32 %v622, %v637
    %641 = vrot.lane.b32.xlu0 %v639, 32
    %v642 = vpop.permute.xlu0 %641
    %644 = vst.msk [vmem:[#allocation3 + $0x18] sm:$0xff] %vm239, %v642
    %v645 = vsel %vm239, %v642, 0
    %647 = vmatprep.subr.mxu0 %v232
    %648 = vmatpush1.msra.mxu0 %v231
    %649 = vmatprep.subr.mxu0 %v234
    %650 = vmatpush1.msra.mxu0 %v233
    %651 = vmatprep.subr.mxu0 %v236
    %652 = vmatpush1.msra.mxu0 %v235
    %653 = vmatprep.subr.mxu0 %v238
    %654 = vmatpush1.msra.mxu0 %v237
    %655 = vmatprep.subr.mxu0 0.0
    %656 = vmatpush1.msra.mxu0 0.0
    %657 = vmatprep.subr.mxu0 0.0
    %658 = vmatpush1.msra.mxu0 0.0
    %659 = vmatprep.subr.mxu0 0.0
    %660 = vmatpush1.msra.mxu0 0.0
    %661 = vmatprep.subr.mxu0 0.0
    %662 = vmatpush1.msra.mxu0 0.0
    %663 = vmatprep.subr.mxu0 0.0
    %664 = vmatpush1.msra.mxu0 0.0
    %665 = vmatprep.subr.mxu0 0.0
    %666 = vmatpush1.msra.mxu0 0.0
    %667 = vmatprep.subr.mxu0 0.0
    %668 = vmatpush1.msra.mxu0 0.0
    %669 = vmatprep.subr.mxu0 0.0
    %670 = vmatpush1.msra.mxu0 0.0
    %671 = vmatprep.subr.mxu0 0.0
    %672 = vmatpush1.msra.mxu0 0.0
    %673 = vmatprep.subr.mxu0 0.0
    %674 = vmatpush1.msra.mxu0 0.0
    %675 = vmatprep.subr.mxu0 0.0
    %676 = vmatpush1.msra.mxu0 0.0
    %677 = vmatprep.subr.mxu0 0.0
    %678 = vmatpush1.msra.mxu0 0.0
    %679 = vmatprep.subr.mxu0 0.0
    %680 = vmatpush1.msra.mxu0 0.0
    %681 = vmatprep.subr.mxu0 0.0
    %682 = vmatpush1.msra.mxu0 0.0
    %683 = vmatprep.subr.mxu0 0.0
    %684 = vmatpush1.msra.mxu0 0.0
    %685 = vmatprep.subr.mxu0 0.0
    %686 = vmatpush1.msra.mxu0 0.0
    %687 = vmatprep.subr.mxu0 0.0
    %688 = vmatpush1.msra.mxu0 0.0
    %689 = vmatprep.subr.mxu0 0.0
    %690 = vmatpush1.msra.mxu0 0.0
    %691 = vmatprep.subr.mxu0 0.0
    %692 = vmatpush1.msra.mxu0 0.0
    %693 = vmatprep.subr.mxu0 0.0
    %694 = vmatpush1.msra.mxu0 0.0
    %695 = vmatprep.subr.mxu0 0.0
    %696 = vmatpush1.msra.mxu0 0.0
    %697 = vmatprep.subr.mxu0 0.0
    %698 = vmatpush1.msra.mxu0 0.0
    %699 = vmatprep.subr.mxu0 0.0
    %700 = vmatpush1.msra.mxu0 0.0
    %701 = vmatprep.subr.mxu0 0.0
    %702 = vmatpush1.msra.mxu0 0.0
    %703 = vmatprep.subr.mxu0 0.0
    %704 = vmatpush1.msra.mxu0 0.0
    %705 = vmatprep.subr.mxu0 0.0
    %706 = vmatpush1.msra.mxu0 0.0
    %707 = vmatprep.subr.mxu0 0.0
    %708 = vmatpush1.msra.mxu0 0.0
    %709 = vmatprep.subr.mxu0 0.0
    %710 = vmatpush1.msra.mxu0 0.0
    %711 = vmatprep.mubr.f32.mxu0 0.0
    %712 = vmatmul.mubr.f32.gmra.mrb[0].mxu0 %v645
    %v713 = vpop.f32.mrb[0].mxu0
    %v714 = vadd.f32 0.0, %v713
    %v715 = vpop.f32.mrb[0].mxu0
    %v716 = vadd.f32 0.0, %v715
    %717 = vdwg.mxu0
    %v718 = vsel %vm75, %v714, %v716
    %v719 = vld [vmem:[#allocation2 + $0x20] sm:$0xff]
    %v720 = vadd.f32 %v719, %v718
    %v721 = vtanh.pop %v720
    %v722 = vmul.f32 %v721, %v79
    %v723 = vadd.f32 %v722, %v80
    %v724 = vmul.f32 %v723, %v633
    %726 = vrot.lane.b32.xlu0 %v723, 64
    %v727 = vpop.permute.xlu0 %726
    %v729 = vmul.f32 %v723, %v727
    %731 = vrot.lane.b32.xlu0 %v729, 32
    %v732 = vpop.permute.xlu0 %731
    %v734 = vadd.f32 %v724, %v732
    %v735 = vtanh.pop %v734
    %737 = vrot.lane.b32.xlu0 %v735, 64
    %v738 = vpop.permute.xlu0 %737
    %v740 = vmul.f32 %v723, %v738
    %742 = vrot.lane.b32.xlu0 %v740, 32
    %v743 = vpop.permute.xlu0 %742
    %745 = vst.msk [vmem:[#allocation3 + $0x20] sm:$0xff] %vm239, %v743
    %v746 = vsel %vm239, %v743, 0
    %748 = vmatprep.subr.mxu0 %v232
    %749 = vmatpush1.msra.mxu0 %v231
    %750 = vmatprep.subr.mxu0 %v234
    %751 = vmatpush1.msra.mxu0 %v233
    %752 = vmatprep.subr.mxu0 %v236
    %753 = vmatpush1.msra.mxu0 %v235
    %754 = vmatprep.subr.mxu0 %v238
    %755 = vmatpush1.msra.mxu0 %v237
    %756 = vmatprep.subr.mxu0 0.0
    %757 = vmatpush1.msra.mxu0 0.0
    %758 = vmatprep.subr.mxu0 0.0
    %759 = vmatpush1.msra.mxu0 0.0
    %760 = vmatprep.subr.mxu0 0.0
    %761 = vmatpush1.msra.mxu0 0.0
    %762 = vmatprep.subr.mxu0 0.0
    %763 = vmatpush1.msra.mxu0 0.0
    %764 = vmatprep.subr.mxu0 0.0
    %765 = vmatpush1.msra.mxu0 0.0
    %766 = vmatprep.subr.mxu0 0.0
    %767 = vmatpush1.msra.mxu0 0.0
    %768 = vmatprep.subr.mxu0 0.0
    %769 = vmatpush1.msra.mxu0 0.0
    %770 = vmatprep.subr.mxu0 0.0
    %771 = vmatpush1.msra.mxu0 0.0
    %772 = vmatprep.subr.mxu0 0.0
    %773 = vmatpush1.msra.mxu0 0.0
    %774 = vmatprep.subr.mxu0 0.0
    %775 = vmatpush1.msra.mxu0 0.0
    %776 = vmatprep.subr.mxu0 0.0
    %777 = vmatpush1.msra.mxu0 0.0
    %778 = vmatprep.subr.mxu0 0.0
    %779 = vmatpush1.msra.mxu0 0.0
    %780 = vmatprep.subr.mxu0 0.0
    %781 = vmatpush1.msra.mxu0 0.0
    %782 = vmatprep.subr.mxu0 0.0
    %783 = vmatpush1.msra.mxu0 0.0
    %784 = vmatprep.subr.mxu0 0.0
    %785 = vmatpush1.msra.mxu0 0.0
    %786 = vmatprep.subr.mxu0 0.0
    %787 = vmatpush1.msra.mxu0 0.0
    %788 = vmatprep.subr.mxu0 0.0
    %789 = vmatpush1.msra.mxu0 0.0
    %790 = vmatprep.subr.mxu0 0.0
    %791 = vmatpush1.msra.mxu0 0.0
    %792 = vmatprep.subr.mxu0 0.0
    %793 = vmatpush1.msra.mxu0 0.0
    %794 = vmatprep.subr.mxu0 0.0
    %795 = vmatpush1.msra.mxu0 0.0
    %796 = vmatprep.subr.mxu0 0.0
    %797 = vmatpush1.msra.mxu0 0.0
    %798 = vmatprep.subr.mxu0 0.0
    %799 = vmatpush1.msra.mxu0 0.0
    %800 = vmatprep.subr.mxu0 0.0
    %801 = vmatpush1.msra.mxu0 0.0
    %802 = vmatprep.subr.mxu0 0.0
    %803 = vmatpush1.msra.mxu0 0.0
    %804 = vmatprep.subr.mxu0 0.0
    %805 = vmatpush1.msra.mxu0 0.0
    %806 = vmatprep.subr.mxu0 0.0
    %807 = vmatpush1.msra.mxu0 0.0
    %808 = vmatprep.subr.mxu0 0.0
    %809 = vmatpush1.msra.mxu0 0.0
    %810 = vmatprep.subr.mxu0 0.0
    %811 = vmatpush1.msra.mxu0 0.0
    %812 = vmatprep.mubr.f32.mxu0 0.0
    %813 = vmatmul.mubr.f32.gmra.mrb[0].mxu0 %v746
    %v814 = vpop.f32.mrb[0].mxu0
    %v815 = vadd.f32 0.0, %v814
    %v816 = vpop.f32.mrb[0].mxu0
    %v817 = vadd.f32 0.0, %v816
    %818 = vdwg.mxu0
    %v819 = vsel %vm75, %v815, %v817
    %v820 = vld [vmem:[#allocation2 + $0x28] sm:$0xff]
    %v821 = vadd.f32 %v820, %v819
    %v822 = vtanh.pop %v821
    %v823 = vmul.f32 %v822, %v79
    %v824 = vadd.f32 %v823, %v80
    %v825 = vmul.f32 %v824, %v734
    %827 = vrot.lane.b32.xlu0 %v824, 64
    %v828 = vpop.permute.xlu0 %827
    %v830 = vmul.f32 %v824, %v828
    %832 = vrot.lane.b32.xlu0 %v830, 32
    %v833 = vpop.permute.xlu0 %832
    %v835 = vadd.f32 %v825, %v833
    %v836 = vtanh.pop %v835
    %838 = vrot.lane.b32.xlu0 %v836, 64
    %v839 = vpop.permute.xlu0 %838
    %v841 = vmul.f32 %v824, %v839
    %843 = vrot.lane.b32.xlu0 %v841, 32
    %v844 = vpop.permute.xlu0 %843
    %846 = vst.msk [vmem:[#allocation3 + $0x28] sm:$0xff] %vm239, %v844
    %v847 = vsel %vm239, %v844, 0
    %849 = vmatprep.subr.mxu0 %v232
    %850 = vmatpush1.msra.mxu0 %v231
    %851 = vmatprep.subr.mxu0 %v234
    %852 = vmatpush1.msra.mxu0 %v233
    %853 = vmatprep.subr.mxu0 %v236
    %854 = vmatpush1.msra.mxu0 %v235
    %855 = vmatprep.subr.mxu0 %v238
    %856 = vmatpush1.msra.mxu0 %v237
    %857 = vmatprep.subr.mxu0 0.0
    %858 = vmatpush1.msra.mxu0 0.0
    %859 = vmatprep.subr.mxu0 0.0
    %860 = vmatpush1.msra.mxu0 0.0
    %861 = vmatprep.subr.mxu0 0.0
    %862 = vmatpush1.msra.mxu0 0.0
    %863 = vmatprep.subr.mxu0 0.0
    %864 = vmatpush1.msra.mxu0 0.0
    %865 = vmatprep.subr.mxu0 0.0
    %866 = vmatpush1.msra.mxu0 0.0
    %867 = vmatprep.subr.mxu0 0.0
    %868 = vmatpush1.msra.mxu0 0.0
    %869 = vmatprep.subr.mxu0 0.0
    %870 = vmatpush1.msra.mxu0 0.0
    %871 = vmatprep.subr.mxu0 0.0
    %872 = vmatpush1.msra.mxu0 0.0
    %873 = vmatprep.subr.mxu0 0.0
    %874 = vmatpush1.msra.mxu0 0.0
    %875 = vmatprep.subr.mxu0 0.0
    %876 = vmatpush1.msra.mxu0 0.0
    %877 = vmatprep.subr.mxu0 0.0
    %878 = vmatpush1.msra.mxu0 0.0
    %879 = vmatprep.subr.mxu0 0.0
    %880 = vmatpush1.msra.mxu0 0.0
    %881 = vmatprep.subr.mxu0 0.0
    %882 = vmatpush1.msra.mxu0 0.0
    %883 = vmatprep.subr.mxu0 0.0
    %884 = vmatpush1.msra.mxu0 0.0
    %885 = vmatprep.subr.mxu0 0.0
    %886 = vmatpush1.msra.mxu0 0.0
    %887 = vmatprep.subr.mxu0 0.0
    %888 = vmatpush1.msra.mxu0 0.0
    %889 = vmatprep.subr.mxu0 0.0
    %890 = vmatpush1.msra.mxu0 0.0
    %891 = vmatprep.subr.mxu0 0.0
    %892 = vmatpush1.msra.mxu0 0.0
    %893 = vmatprep.subr.mxu0 0.0
    %894 = vmatpush1.msra.mxu0 0.0
    %895 = vmatprep.subr.mxu0 0.0
    %896 = vmatpush1.msra.mxu0 0.0
    %897 = vmatprep.subr.mxu0 0.0
    %898 = vmatpush1.msra.mxu0 0.0
    %899 = vmatprep.subr.mxu0 0.0
    %900 = vmatpush1.msra.mxu0 0.0
    %901 = vmatprep.subr.mxu0 0.0
    %902 = vmatpush1.msra.mxu0 0.0
    %903 = vmatprep.subr.mxu0 0.0
    %904 = vmatpush1.msra.mxu0 0.0
    %905 = vmatprep.subr.mxu0 0.0
    %906 = vmatpush1.msra.mxu0 0.0
    %907 = vmatprep.subr.mxu0 0.0
    %908 = vmatpush1.msra.mxu0 0.0
    %909 = vmatprep.subr.mxu0 0.0
    %910 = vmatpush1.msra.mxu0 0.0
    %911 = vmatprep.subr.mxu0 0.0
    %912 = vmatpush1.msra.mxu0 0.0
    %913 = vmatprep.mubr.f32.mxu0 0.0
    %914 = vmatmul.mubr.f32.gmra.mrb[0].mxu0 %v847
    %v915 = vpop.f32.mrb[0].mxu0
    %v916 = vadd.f32 0.0, %v915
    %v917 = vpop.f32.mrb[0].mxu0
    %v918 = vadd.f32 0.0, %v917
    %919 = vdwg.mxu0
    %v920 = vsel %vm75, %v916, %v918
    %v921 = vld [vmem:[#allocation2 + $0x30] sm:$0xff]
    %v922 = vadd.f32 %v921, %v920
    %v923 = vtanh.pop %v922
    %v924 = vmul.f32 %v923, %v79
    %v925 = vadd.f32 %v924, %v80
    %v926 = vmul.f32 %v925, %v835
    %928 = vrot.lane.b32.xlu0 %v925, 64
    %v929 = vpop.permute.xlu0 %928
    %v931 = vmul.f32 %v925, %v929
    %933 = vrot.lane.b32.xlu0 %v931, 32
    %v934 = vpop.permute.xlu0 %933
    %v936 = vadd.f32 %v926, %v934
    %v937 = vtanh.pop %v936
    %939 = vrot.lane.b32.xlu0 %v937, 64
    %v940 = vpop.permute.xlu0 %939
    %v942 = vmul.f32 %v925, %v940
    %944 = vrot.lane.b32.xlu0 %v942, 32
    %v945 = vpop.permute.xlu0 %944
    %947 = vst.msk [vmem:[#allocation3 + $0x30] sm:$0xff] %vm239, %v945
    %v948 = vsel %vm239, %v945, 0
    %950 = vmatprep.subr.mxu0 %v232
    %951 = vmatpush1.msra.mxu0 %v231
    %952 = vmatprep.subr.mxu0 %v234
    %953 = vmatpush1.msra.mxu0 %v233
    %954 = vmatprep.subr.mxu0 %v236
    %955 = vmatpush1.msra.mxu0 %v235
    %956 = vmatprep.subr.mxu0 %v238
    %957 = vmatpush1.msra.mxu0 %v237
    %958 = vmatprep.subr.mxu0 0.0
    %959 = vmatpush1.msra.mxu0 0.0
    %960 = vmatprep.subr.mxu0 0.0
    %961 = vmatpush1.msra.mxu0 0.0
    %962 = vmatprep.subr.mxu0 0.0
    %963 = vmatpush1.msra.mxu0 0.0
    %964 = vmatprep.subr.mxu0 0.0
    %965 = vmatpush1.msra.mxu0 0.0
    %966 = vmatprep.subr.mxu0 0.0
    %967 = vmatpush1.msra.mxu0 0.0
    %968 = vmatprep.subr.mxu0 0.0
    %969 = vmatpush1.msra.mxu0 0.0
    %970 = vmatprep.subr.mxu0 0.0
    %971 = vmatpush1.msra.mxu0 0.0
    %972 = vmatprep.subr.mxu0 0.0
    %973 = vmatpush1.msra.mxu0 0.0
    %974 = vmatprep.subr.mxu0 0.0
    %975 = vmatpush1.msra.mxu0 0.0
    %976 = vmatprep.subr.mxu0 0.0
    %977 = vmatpush1.msra.mxu0 0.0
    %978 = vmatprep.subr.mxu0 0.0
    %979 = vmatpush1.msra.mxu0 0.0
    %980 = vmatprep.subr.mxu0 0.0
    %981 = vmatpush1.msra.mxu0 0.0
    %982 = vmatprep.subr.mxu0 0.0
    %983 = vmatpush1.msra.mxu0 0.0
    %984 = vmatprep.subr.mxu0 0.0
    %985 = vmatpush1.msra.mxu0 0.0
    %986 = vmatprep.subr.mxu0 0.0
    %987 = vmatpush1.msra.mxu0 0.0
    %988 = vmatprep.subr.mxu0 0.0
    %989 = vmatpush1.msra.mxu0 0.0
    %990 = vmatprep.subr.mxu0 0.0
    %991 = vmatpush1.msra.mxu0 0.0
    %992 = vmatprep.subr.mxu0 0.0
    %993 = vmatpush1.msra.mxu0 0.0
    %994 = vmatprep.subr.mxu0 0.0
    %995 = vmatpush1.msra.mxu0 0.0
    %996 = vmatprep.subr.mxu0 0.0
    %997 = vmatpush1.msra.mxu0 0.0
    %998 = vmatprep.subr.mxu0 0.0
    %999 = vmatpush1.msra.mxu0 0.0
    %1000 = vmatprep.subr.mxu0 0.0
    %1001 = vmatpush1.msra.mxu0 0.0
    %1002 = vmatprep.subr.mxu0 0.0
    %1003 = vmatpush1.msra.mxu0 0.0
    %1004 = vmatprep.subr.mxu0 0.0
    %1005 = vmatpush1.msra.mxu0 0.0
    %1006 = vmatprep.subr.mxu0 0.0
    %1007 = vmatpush1.msra.mxu0 0.0
    %1008 = vmatprep.subr.mxu0 0.0
    %1009 = vmatpush1.msra.mxu0 0.0
    %1010 = vmatprep.subr.mxu0 0.0
    %1011 = vmatpush1.msra.mxu0 0.0
    %1012 = vmatprep.subr.mxu0 0.0
    %1013 = vmatpush1.msra.mxu0 0.0
    %1014 = vmatprep.mubr.f32.mxu0 0.0
    %1015 = vmatmul.mubr.f32.gmra.mrb[0].mxu0 %v948
    %v1016 = vpop.f32.mrb[0].mxu0
    %v1017 = vadd.f32 0.0, %v1016
    %v1018 = vpop.f32.mrb[0].mxu0
    %v1019 = vadd.f32 0.0, %v1018
    %1020 = vdwg.mxu0
    %v1021 = vsel %vm75, %v1017, %v1019
    %v1022 = vld [vmem:[#allocation2 + $0x38] sm:$0xff]
    %v1023 = vadd.f32 %v1022, %v1021
    %v1024 = vtanh.pop %v1023
    %v1025 = vmul.f32 %v1024, %v79
    %v1026 = vadd.f32 %v1025, %v80
    %v1027 = vmul.f32 %v1026, %v936
    %1029 = vrot.lane.b32.xlu0 %v1026, 64
    %v1030 = vpop.permute.xlu0 %1029
    %v1032 = vmul.f32 %v1026, %v1030
    %1034 = vrot.lane.b32.xlu0 %v1032, 32
    %v1035 = vpop.permute.xlu0 %1034
    %v1037 = vadd.f32 %v1027, %v1035
    %v1038 = vtanh.pop %v1037
    %1040 = vrot.lane.b32.xlu0 %v1038, 64
    %v1041 = vpop.permute.xlu0 %1040
    %v1043 = vmul.f32 %v1026, %v1041
    %1045 = vrot.lane.b32.xlu0 %v1043, 32
    %v1046 = vpop.permute.xlu0 %1045
    %1048 = vst.msk [vmem:[#allocation3 + $0x38] sm:$0xff] %vm239, %v1046
    %v1049 = vld [vmem:[#allocation3] sm:$0xf]
    %vm1050 = vcmask 257024
    %1051 = vst.msk [vmem:[#allocation4] sm:$0xf] %vm1050, %v1049
    %v1052 = vld [vmem:[#allocation3 + $0x3c] sm:$0xf]
    %1054 = vrot.lane.b32.xlu0 %v1052, 32
    %v1055 = vpop.permute.xlu0 %1054
    %vm1057 = vcmask 519424
    %1058 = vst.msk [vmem:[#allocation4] sm:$0xf] %vm1057, %v1055
    %v1059 = vld [vmem:[#allocation3 + $0x8] sm:$0xf]
    %1060 = vst.msk [vmem:[#allocation4 + $0x4] sm:$0xf] %vm1050, %v1059
    %v1061 = vld [vmem:[#allocation3 + $0x34] sm:$0xf]
    %1063 = vrot.lane.b32.xlu0 %v1061, 32
    %v1064 = vpop.permute.xlu0 %1063
    %1066 = vst.msk [vmem:[#allocation4 + $0x4] sm:$0xf] %vm1057, %v1064
    %v1067 = vld [vmem:[#allocation3 + $0x10] sm:$0xf]
    %1068 = vst.msk [vmem:[#allocation4 + $0x8] sm:$0xf] %vm1050, %v1067
    %v1069 = vld [vmem:[#allocation3 + $0x2c] sm:$0xf]
    %1071 = vrot.lane.b32.xlu0 %v1069, 32
    %v1072 = vpop.permute.xlu0 %1071
    %1074 = vst.msk [vmem:[#allocation4 + $0x8] sm:$0xf] %vm1057, %v1072
    %v1075 = vld [vmem:[#allocation3 + $0x18] sm:$0xf]
    %1076 = vst.msk [vmem:[#allocation4 + $0xc] sm:$0xf] %vm1050, %v1075
    %v1077 = vld [vmem:[#allocation3 + $0x24] sm:$0xf]
    %1079 = vrot.lane.b32.xlu0 %v1077, 32
    %v1080 = vpop.permute.xlu0 %1079
    %1082 = vst.msk [vmem:[#allocation4 + $0xc] sm:$0xf] %vm1057, %v1080
    %v1083 = vld [vmem:[#allocation3 + $0x20] sm:$0xf]
    %1084 = vst.msk [vmem:[#allocation4 + $0x10] sm:$0xf] %vm1050, %v1083
    %v1085 = vld [vmem:[#allocation3 + $0x1c] sm:$0xf]
    %1087 = vrot.lane.b32.xlu0 %v1085, 32
    %v1088 = vpop.permute.xlu0 %1087
    %1090 = vst.msk [vmem:[#allocation4 + $0x10] sm:$0xf] %vm1057, %v1088
    %v1091 = vld [vmem:[#allocation3 + $0x28] sm:$0xf]
    %1092 = vst.msk [vmem:[#allocation4 + $0x14] sm:$0xf] %vm1050, %v1091
    %v1093 = vld [vmem:[#allocation3 + $0x14] sm:$0xf]
    %1095 = vrot.lane.b32.xlu0 %v1093, 32
    %v1096 = vpop.permute.xlu0 %1095
    %1098 = vst.msk [vmem:[#allocation4 + $0x14] sm:$0xf] %vm1057, %v1096
    %v1099 = vld [vmem:[#allocation3 + $0x30] sm:$0xf]
    %1100 = vst.msk [vmem:[#allocation4 + $0x18] sm:$0xf] %vm1050, %v1099
    %v1101 = vld [vmem:[#allocation3 + $0xc] sm:$0xf]
    %1103 = vrot.lane.b32.xlu0 %v1101, 32
    %v1104 = vpop.permute.xlu0 %1103
    %1106 = vst.msk [vmem:[#allocation4 + $0x18] sm:$0xf] %vm1057, %v1104
    %v1107 = vld [vmem:[#allocation3 + $0x38] sm:$0xf]
    %1108 = vst.msk [vmem:[#allocation4 + $0x1c] sm:$0xf] %vm1050, %v1107
    %v1109 = vld [vmem:[#allocation3 + $0x4] sm:$0xf]
    %1111 = vrot.lane.b32.xlu0 %v1109, 32
    %v1112 = vpop.permute.xlu0 %1111
    %1114 = vst.msk [vmem:[#allocation4 + $0x1c] sm:$0xf] %vm1057, %v1112
    %v1115 = vld [vmem:[#allocation4] sm:$0xff]
    %v1116 = vld [vmem:[#allocation4 + $0x8] sm:$0xff]
    %v1117 = vld [vmem:[#allocation4 + $0x10] sm:$0xff]
    %v1118 = vld [vmem:[#allocation4 + $0x18] sm:$0xff]
    %s1119 = scalar_lea.vmem [#allocation7], 128
    %v1120 = vld [vmem:[%s1119] sm:$0xff]
    %v1121 = vld [vmem:[%s1119 + $0x8] sm:$0xff]
    %v1122 = vld [vmem:[%s1119 + $0x10] sm:$0xff]
    %v1123 = vld [vmem:[%s1119 + $0x18] sm:$0xff]
    %v1124 = vld [vmem:[%s1119 + $0x20] sm:$0xff]
    %v1125 = vld [vmem:[%s1119 + $0x28] sm:$0xff]
    %v1126 = vld [vmem:[%s1119 + $0x30] sm:$0xff]
    %v1127 = vld [vmem:[%s1119 + $0x38] sm:$0xff]
    %v1128 = vld [vmem:[%s1119 + $0x40] sm:$0xff]
    %v1129 = vld [vmem:[%s1119 + $0x48] sm:$0xff]
    %v1130 = vld [vmem:[%s1119 + $0x50] sm:$0xff]
    %v1131 = vld [vmem:[%s1119 + $0x58] sm:$0xff]
    %v1132 = vld [vmem:[%s1119 + $0x60] sm:$0xff]
    %v1133 = vld [vmem:[%s1119 + $0x68] sm:$0xff]
    %v1134 = vld [vmem:[%s1119 + $0x70] sm:$0xff]
    %v1135 = vld [vmem:[%s1119 + $0x78] sm:$0xff]
    %s1136 = scalar_lea.vmem %s3, 2
    %v1137 = vld [vmem:[%s1136] sm:$0x3]
    %v1139 = vlaneseq
    %v1140 = vshrl.u32 %v1139, 7
    %v1141 = vsub.s32 0, %v1140
    %v1142 = vrot.slane %v1137, %v1141
    %v1143 = vlaneseq
    %v1144 = vshrl.u32 %v1143, 7
    %v1145 = vsub.s32 1, %v1144
    %v1146 = vrot.slane %v1137, %v1145
    %v1150 = vsel %vm113, %v1115, 0
    %v1153 = vsel %vm113, %v1116, 0
    %v1156 = vsel %vm113, %v1117, 0
    %v1159 = vsel %vm113, %v1118, 0
    %1161 = vmatprep.subr.mxu0 %v1121
    %1162 = vmatpush1.msra.mxu0 %v1120
    %1163 = vmatprep.subr.mxu0 %v1123
    %1164 = vmatpush1.msra.mxu0 %v1122
    %1165 = vmatprep.subr.mxu0 %v1125
    %1166 = vmatpush1.msra.mxu0 %v1124
    %1167 = vmatprep.subr.mxu0 %v1127
    %1168 = vmatpush1.msra.mxu0 %v1126
    %1169 = vmatprep.subr.mxu0 %v1129
    %1170 = vmatpush1.msra.mxu0 %v1128
    %1171 = vmatprep.subr.mxu0 %v1131
    %1172 = vmatpush1.msra.mxu0 %v1130
    %1173 = vmatprep.subr.mxu0 %v1133
    %1174 = vmatpush1.msra.mxu0 %v1132
    %1175 = vmatprep.subr.mxu0 %v1135
    %1176 = vmatpush1.msra.mxu0 %v1134
    %1177 = vmatprep.subr.mxu0 0.0
    %1178 = vmatpush1.msra.mxu0 0.0
    %1179 = vmatprep.subr.mxu0 0.0
    %1180 = vmatpush1.msra.mxu0 0.0
    %1181 = vmatprep.subr.mxu0 0.0
    %1182 = vmatpush1.msra.mxu0 0.0
    %1183 = vmatprep.subr.mxu0 0.0
    %1184 = vmatpush1.msra.mxu0 0.0
    %1185 = vmatprep.subr.mxu0 0.0
    %1186 = vmatpush1.msra.mxu0 0.0
    %1187 = vmatprep.subr.mxu0 0.0
    %1188 = vmatpush1.msra.mxu0 0.0
    %1189 = vmatprep.subr.mxu0 0.0
    %1190 = vmatpush1.msra.mxu0 0.0
    %1191 = vmatprep.subr.mxu0 0.0
    %1192 = vmatpush1.msra.mxu0 0.0
    %1193 = vmatprep.subr.mxu0 0.0
    %1194 = vmatpush1.msra.mxu0 0.0
    %1195 = vmatprep.subr.mxu0 0.0
    %1196 = vmatpush1.msra.mxu0 0.0
    %1197 = vmatprep.subr.mxu0 0.0
    %1198 = vmatpush1.msra.mxu0 0.0
    %1199 = vmatprep.subr.mxu0 0.0
    %1200 = vmatpush1.msra.mxu0 0.0
    %1201 = vmatprep.subr.mxu0 0.0
    %1202 = vmatpush1.msra.mxu0 0.0
    %1203 = vmatprep.subr.mxu0 0.0
    %1204 = vmatpush1.msra.mxu0 0.0
    %1205 = vmatprep.subr.mxu0 0.0
    %1206 = vmatpush1.msra.mxu0 0.0
    %1207 = vmatprep.subr.mxu0 0.0
    %1208 = vmatpush1.msra.mxu0 0.0
    %1209 = vmatprep.subr.mxu0 0.0
    %1210 = vmatpush1.msra.mxu0 0.0
    %1211 = vmatprep.subr.mxu0 0.0
    %1212 = vmatpush1.msra.mxu0 0.0
    %1213 = vmatprep.subr.mxu0 0.0
    %1214 = vmatpush1.msra.mxu0 0.0
    %1215 = vmatprep.subr.mxu0 0.0
    %1216 = vmatpush1.msra.mxu0 0.0
    %1217 = vmatprep.subr.mxu0 0.0
    %1218 = vmatpush1.msra.mxu0 0.0
    %1219 = vmatprep.subr.mxu0 0.0
    %1220 = vmatpush1.msra.mxu0 0.0
    %1221 = vmatprep.subr.mxu0 0.0
    %1222 = vmatpush1.msra.mxu0 0.0
    %1223 = vmatprep.subr.mxu0 0.0
    %1224 = vmatpush1.msra.mxu0 0.0
    %1225 = vmatprep.mubr.f32.mxu0 0.0
    %1226 = vmatmul.mubr.f32.gmra.mrb[0].mxu0 %v1150
    %v1227 = vpop.f32.mrb[0].mxu0
    %v1228 = vadd.f32 %v1142, %v1227
    %v1229 = vpop.f32.mrb[0].mxu0
    %v1230 = vadd.f32 %v1146, %v1229
    %1231 = vmatprep.mubr.f32.mxu0 0.0
    %1232 = vmatmul.mubr.f32.gmra.mrb[0].mxu0 %v1153
    %v1233 = vpop.f32.mrb[0].mxu0
    %v1234 = vadd.f32 %v1142, %v1233
    %v1235 = vpop.f32.mrb[0].mxu0
    %v1236 = vadd.f32 %v1146, %v1235
    %1237 = vmatprep.mubr.f32.mxu0 0.0
    %1238 = vmatmul.mubr.f32.gmra.mrb[0].mxu0 %v1156
    %v1239 = vpop.f32.mrb[0].mxu0
    %v1240 = vadd.f32 %v1142, %v1239
    %v1241 = vpop.f32.mrb[0].mxu0
    %v1242 = vadd.f32 %v1146, %v1241
    %1243 = vmatprep.mubr.f32.mxu0 0.0
    %1244 = vmatmul.mubr.f32.gmra.mrb[0].mxu0 %v1159
    %v1245 = vpop.f32.mrb[0].mxu0
    %v1246 = vadd.f32 %v1142, %v1245
    %v1247 = vpop.f32.mrb[0].mxu0
    %v1248 = vadd.f32 %v1146, %v1247
    %1249 = vdwg.mxu0
    %1250 = vst [vmem:[#allocation2] sm:$0xf] %v1228
    %1251 = vst [vmem:[#allocation2] sm:$0xf0] %v1248
    %1252 = vst [vmem:[#allocation2 + $0x4] sm:$0xf0] %v1228
    %1253 = vst [vmem:[#allocation2 + $0xc] sm:$0xf] %v1248
    %1254 = vst [vmem:[#allocation2 + $0x10] sm:$0xf] %v1234
    %1255 = vst [vmem:[#allocation2 + $0x10] sm:$0xf0] %v1242
    %1256 = vst [vmem:[#allocation2 + $0x14] sm:$0xf0] %v1234
    %1257 = vst [vmem:[#allocation2 + $0x1c] sm:$0xf] %v1242
    %1258 = vst [vmem:[#allocation2 + $0x20] sm:$0xf] %v1240
    %1259 = vst [vmem:[#allocation2 + $0x20] sm:$0xf0] %v1236
    %1260 = vst [vmem:[#allocation2 + $0x24] sm:$0xf0] %v1240
    %1261 = vst [vmem:[#allocation2 + $0x2c] sm:$0xf] %v1236
    %1262 = vst [vmem:[#allocation2 + $0x30] sm:$0xf] %v1246
    %1263 = vst [vmem:[#allocation2 + $0x30] sm:$0xf0] %v1230
    %1264 = vst [vmem:[#allocation2 + $0x34] sm:$0xf0] %v1246
    %1265 = vst [vmem:[#allocation2 + $0x3c] sm:$0xf] %v1230
    %s1266 = scalar_lea.vmem %s2, 64
    %v1267 = vld [vmem:[%s1266] sm:$0xff]
    %v1268 = vld [vmem:[%s1266 + $0x8] sm:$0xff]
    %v1269 = vld [vmem:[%s1266 + $0x10] sm:$0xff]
    %v1270 = vld [vmem:[%s1266 + $0x18] sm:$0xff]
    %v1271 = vld [vmem:[%s1266 + $0x20] sm:$0xff]
    %v1272 = vld [vmem:[%s1266 + $0x28] sm:$0xff]
    %v1273 = vld [vmem:[%s1266 + $0x30] sm:$0xff]
    %v1274 = vld [vmem:[%s1266 + $0x38] sm:$0xff]
    %1275 = vmatprep.subr.mxu0 %v1268
    %1276 = vmatpush1.msra.mxu0 %v1267
    %1277 = vmatprep.subr.mxu0 %v1270
    %1278 = vmatpush1.msra.mxu0 %v1269
    %1279 = vmatprep.subr.mxu0 %v1272
    %1280 = vmatpush1.msra.mxu0 %v1271
    %1281 = vmatprep.subr.mxu0 %v1274
    %1282 = vmatpush1.msra.mxu0 %v1273
    %1283 = vmatprep.subr.mxu0 0.0
    %1284 = vmatpush1.msra.mxu0 0.0
    %1285 = vmatprep.subr.mxu0 0.0
    %1286 = vmatpush1.msra.mxu0 0.0
    %1287 = vmatprep.subr.mxu0 0.0
    %1288 = vmatpush1.msra.mxu0 0.0
    %1289 = vmatprep.subr.mxu0 0.0
    %1290 = vmatpush1.msra.mxu0 0.0
    %1291 = vmatprep.subr.mxu0 0.0
    %1292 = vmatpush1.msra.mxu0 0.0
    %1293 = vmatprep.subr.mxu0 0.0
    %1294 = vmatpush1.msra.mxu0 0.0
    %1295 = vmatprep.subr.mxu0 0.0
    %1296 = vmatpush1.msra.mxu0 0.0
    %1297 = vmatprep.subr.mxu0 0.0
    %1298 = vmatpush1.msra.mxu0 0.0
    %1299 = vmatprep.subr.mxu0 0.0
    %1300 = vmatpush1.msra.mxu0 0.0
    %1301 = vmatprep.subr.mxu0 0.0
    %1302 = vmatpush1.msra.mxu0 0.0
    %1303 = vmatprep.subr.mxu0 0.0
    %1304 = vmatpush1.msra.mxu0 0.0
    %1305 = vmatprep.subr.mxu0 0.0
    %1306 = vmatpush1.msra.mxu0 0.0
    %1307 = vmatprep.subr.mxu0 0.0
    %1308 = vmatpush1.msra.mxu0 0.0
    %1309 = vmatprep.subr.mxu0 0.0
    %1310 = vmatpush1.msra.mxu0 0.0
    %1311 = vmatprep.subr.mxu0 0.0
    %1312 = vmatpush1.msra.mxu0 0.0
    %1313 = vmatprep.subr.mxu0 0.0
    %1314 = vmatpush1.msra.mxu0 0.0
    %1315 = vmatprep.subr.mxu0 0.0
    %1316 = vmatpush1.msra.mxu0 0.0
    %1317 = vmatprep.subr.mxu0 0.0
    %1318 = vmatpush1.msra.mxu0 0.0
    %1319 = vmatprep.subr.mxu0 0.0
    %1320 = vmatpush1.msra.mxu0 0.0
    %1321 = vmatprep.subr.mxu0 0.0
    %1322 = vmatpush1.msra.mxu0 0.0
    %1323 = vmatprep.subr.mxu0 0.0
    %1324 = vmatpush1.msra.mxu0 0.0
    %1325 = vmatprep.subr.mxu0 0.0
    %1326 = vmatpush1.msra.mxu0 0.0
    %1327 = vmatprep.subr.mxu0 0.0
    %1328 = vmatpush1.msra.mxu0 0.0
    %1329 = vmatprep.subr.mxu0 0.0
    %1330 = vmatpush1.msra.mxu0 0.0
    %1331 = vmatprep.subr.mxu0 0.0
    %1332 = vmatpush1.msra.mxu0 0.0
    %1333 = vmatprep.subr.mxu0 0.0
    %1334 = vmatpush1.msra.mxu0 0.0
    %1335 = vmatprep.subr.mxu0 0.0
    %1336 = vmatpush1.msra.mxu0 0.0
    %1337 = vmatprep.subr.mxu0 0.0
    %1338 = vmatpush1.msra.mxu0 0.0
    %1339 = vmatprep.mubr.f32.mxu0 0.0
    %1340 = vmatmul.mubr.f32.gmra.mrb[0].mxu0 %v241
    %v1341 = vpop.f32.mrb[0].mxu0
    %v1342 = vadd.f32 0.0, %v1341
    %v1343 = vpop.f32.mrb[0].mxu0
    %v1344 = vadd.f32 0.0, %v1343
    %1345 = vdwg.mxu0
    %v1346 = vsel %vm75, %v1342, %v1344
    %v1347 = vld [vmem:[#allocation2] sm:$0xff]
    %v1348 = vadd.f32 %v1347, %v1346
    %v1349 = vtanh.pop %v1348
    %v1350 = vmul.f32 %v1349, %v79
    %v1351 = vadd.f32 %v1350, %v80
    %v1352 = vmul.f32 %v1351, 0.0
    %1354 = vrot.lane.b32.xlu0 %v1351, 64
    %v1355 = vpop.permute.xlu0 %1354
    %v1357 = vmul.f32 %v1351, %v1355
    %1359 = vrot.lane.b32.xlu0 %v1357, 32
    %v1360 = vpop.permute.xlu0 %1359
    %v1362 = vadd.f32 %v1352, %v1360
    %v1363 = vtanh.pop %v1362
    %1365 = vrot.lane.b32.xlu0 %v1363, 64
    %v1366 = vpop.permute.xlu0 %1365
    %v1368 = vmul.f32 %v1351, %v1366
    %1370 = vrot.lane.b32.xlu0 %v1368, 32
    %v1371 = vpop.permute.xlu0 %1370
    %1373 = vst.msk [vmem:[#allocation3] sm:$0xff] %vm239, %v1371
    %v1374 = vsel %vm239, %v1371, 0
    %1376 = vmatprep.subr.mxu0 %v1268
    %1377 = vmatpush1.msra.mxu0 %v1267
    %1378 = vmatprep.subr.mxu0 %v1270
    %1379 = vmatpush1.msra.mxu0 %v1269
    %1380 = vmatprep.subr.mxu0 %v1272
    %1381 = vmatpush1.msra.mxu0 %v1271
    %1382 = vmatprep.subr.mxu0 %v1274
    %1383 = vmatpush1.msra.mxu0 %v1273
    %1384 = vmatprep.subr.mxu0 0.0
    %1385 = vmatpush1.msra.mxu0 0.0
    %1386 = vmatprep.subr.mxu0 0.0
    %1387 = vmatpush1.msra.mxu0 0.0
    %1388 = vmatprep.subr.mxu0 0.0
    %1389 = vmatpush1.msra.mxu0 0.0
    %1390 = vmatprep.subr.mxu0 0.0
    %1391 = vmatpush1.msra.mxu0 0.0
    %1392 = vmatprep.subr.mxu0 0.0
    %1393 = vmatpush1.msra.mxu0 0.0
    %1394 = vmatprep.subr.mxu0 0.0
    %1395 = vmatpush1.msra.mxu0 0.0
    %1396 = vmatprep.subr.mxu0 0.0
    %1397 = vmatpush1.msra.mxu0 0.0
    %1398 = vmatprep.subr.mxu0 0.0
    %1399 = vmatpush1.msra.mxu0 0.0
    %1400 = vmatprep.subr.mxu0 0.0
    %1401 = vmatpush1.msra.mxu0 0.0
    %1402 = vmatprep.subr.mxu0 0.0
    %1403 = vmatpush1.msra.mxu0 0.0
    %1404 = vmatprep.subr.mxu0 0.0
    %1405 = vmatpush1.msra.mxu0 0.0
    %1406 = vmatprep.subr.mxu0 0.0
    %1407 = vmatpush1.msra.mxu0 0.0
    %1408 = vmatprep.subr.mxu0 0.0
    %1409 = vmatpush1.msra.mxu0 0.0
    %1410 = vmatprep.subr.mxu0 0.0
    %1411 = vmatpush1.msra.mxu0 0.0
    %1412 = vmatprep.subr.mxu0 0.0
    %1413 = vmatpush1.msra.mxu0 0.0
    %1414 = vmatprep.subr.mxu0 0.0
    %1415 = vmatpush1.msra.mxu0 0.0
    %1416 = vmatprep.subr.mxu0 0.0
    %1417 = vmatpush1.msra.mxu0 0.0
    %1418 = vmatprep.subr.mxu0 0.0
    %1419 = vmatpush1.msra.mxu0 0.0
    %1420 = vmatprep.subr.mxu0 0.0
    %1421 = vmatpush1.msra.mxu0 0.0
    %1422 = vmatprep.subr.mxu0 0.0
    %1423 = vmatpush1.msra.mxu0 0.0
    %1424 = vmatprep.subr.mxu0 0.0
    %1425 = vmatpush1.msra.mxu0 0.0
    %1426 = vmatprep.subr.mxu0 0.0
    %1427 = vmatpush1.msra.mxu0 0.0
    %1428 = vmatprep.subr.mxu0 0.0
    %1429 = vmatpush1.msra.mxu0 0.0
    %1430 = vmatprep.subr.mxu0 0.0
    %1431 = vmatpush1.msra.mxu0 0.0
    %1432 = vmatprep.subr.mxu0 0.0
    %1433 = vmatpush1.msra.mxu0 0.0
    %1434 = vmatprep.subr.mxu0 0.0
    %1435 = vmatpush1.msra.mxu0 0.0
    %1436 = vmatprep.subr.mxu0 0.0
    %1437 = vmatpush1.msra.mxu0 0.0
    %1438 = vmatprep.subr.mxu0 0.0
    %1439 = vmatpush1.msra.mxu0 0.0
    %1440 = vmatprep.mubr.f32.mxu0 0.0
    %1441 = vmatmul.mubr.f32.gmra.mrb[0].mxu0 %v1374
    %v1442 = vpop.f32.mrb[0].mxu0
    %v1443 = vadd.f32 0.0, %v1442
    %v1444 = vpop.f32.mrb[0].mxu0
    %v1445 = vadd.f32 0.0, %v1444
    %1446 = vdwg.mxu0
    %v1447 = vsel %vm75, %v1443, %v1445
    %v1448 = vld [vmem:[#allocation2 + $0x8] sm:$0xff]
    %v1449 = vadd.f32 %v1448, %v1447
    %v1450 = vtanh.pop %v1449
    %v1451 = vmul.f32 %v1450, %v79
    %v1452 = vadd.f32 %v1451, %v80
    %v1453 = vmul.f32 %v1452, %v1362
    %1455 = vrot.lane.b32.xlu0 %v1452, 64
    %v1456 = vpop.permute.xlu0 %1455
    %v1458 = vmul.f32 %v1452, %v1456
    %1460 = vrot.lane.b32.xlu0 %v1458, 32
    %v1461 = vpop.permute.xlu0 %1460
    %v1463 = vadd.f32 %v1453, %v1461
    %v1464 = vtanh.pop %v1463
    %1466 = vrot.lane.b32.xlu0 %v1464, 64
    %v1467 = vpop.permute.xlu0 %1466
    %v1469 = vmul.f32 %v1452, %v1467
    %1471 = vrot.lane.b32.xlu0 %v1469, 32
    %v1472 = vpop.permute.xlu0 %1471
    %1474 = vst.msk [vmem:[#allocation3 + $0x8] sm:$0xff] %vm239, %v1472
    %v1475 = vsel %vm239, %v1472, 0
    %1477 = vmatprep.subr.mxu0 %v1268
    %1478 = vmatpush1.msra.mxu0 %v1267
    %1479 = vmatprep.subr.mxu0 %v1270
    %1480 = vmatpush1.msra.mxu0 %v1269
    %1481 = vmatprep.subr.mxu0 %v1272
    %1482 = vmatpush1.msra.mxu0 %v1271
    %1483 = vmatprep.subr.mxu0 %v1274
    %1484 = vmatpush1.msra.mxu0 %v1273
    %1485 = vmatprep.subr.mxu0 0.0
    %1486 = vmatpush1.msra.mxu0 0.0
    %1487 = vmatprep.subr.mxu0 0.0
    %1488 = vmatpush1.msra.mxu0 0.0
    %1489 = vmatprep.subr.mxu0 0.0
    %1490 = vmatpush1.msra.mxu0 0.0
    %1491 = vmatprep.subr.mxu0 0.0
    %1492 = vmatpush1.msra.mxu0 0.0
    %1493 = vmatprep.subr.mxu0 0.0
    %1494 = vmatpush1.msra.mxu0 0.0
    %1495 = vmatprep.subr.mxu0 0.0
    %1496 = vmatpush1.msra.mxu0 0.0
    %1497 = vmatprep.subr.mxu0 0.0
    %1498 = vmatpush1.msra.mxu0 0.0
    %1499 = vmatprep.subr.mxu0 0.0
    %1500 = vmatpush1.msra.mxu0 0.0
    %1501 = vmatprep.subr.mxu0 0.0
    %1502 = vmatpush1.msra.mxu0 0.0
    %1503 = vmatprep.subr.mxu0 0.0
    %1504 = vmatpush1.msra.mxu0 0.0
    %1505 = vmatprep.subr.mxu0 0.0
    %1506 = vmatpush1.msra.mxu0 0.0
    %1507 = vmatprep.subr.mxu0 0.0
    %1508 = vmatpush1.msra.mxu0 0.0
    %1509 = vmatprep.subr.mxu0 0.0
    %1510 = vmatpush1.msra.mxu0 0.0
    %1511 = vmatprep.subr.mxu0 0.0
    %1512 = vmatpush1.msra.mxu0 0.0
    %1513 = vmatprep.subr.mxu0 0.0
    %1514 = vmatpush1.msra.mxu0 0.0
    %1515 = vmatprep.subr.mxu0 0.0
    %1516 = vmatpush1.msra.mxu0 0.0
    %1517 = vmatprep.subr.mxu0 0.0
    %1518 = vmatpush1.msra.mxu0 0.0
    %1519 = vmatprep.subr.mxu0 0.0
    %1520 = vmatpush1.msra.mxu0 0.0
    %1521 = vmatprep.subr.mxu0 0.0
    %1522 = vmatpush1.msra.mxu0 0.0
    %1523 = vmatprep.subr.mxu0 0.0
    %1524 = vmatpush1.msra.mxu0 0.0
    %1525 = vmatprep.subr.mxu0 0.0
    %1526 = vmatpush1.msra.mxu0 0.0
    %1527 = vmatprep.subr.mxu0 0.0
    %1528 = vmatpush1.msra.mxu0 0.0
    %1529 = vmatprep.subr.mxu0 0.0
    %1530 = vmatpush1.msra.mxu0 0.0
    %1531 = vmatprep.subr.mxu0 0.0
    %1532 = vmatpush1.msra.mxu0 0.0
    %1533 = vmatprep.subr.mxu0 0.0
    %1534 = vmatpush1.msra.mxu0 0.0
    %1535 = vmatprep.subr.mxu0 0.0
    %1536 = vmatpush1.msra.mxu0 0.0
    %1537 = vmatprep.subr.mxu0 0.0
    %1538 = vmatpush1.msra.mxu0 0.0
    %1539 = vmatprep.subr.mxu0 0.0
    %1540 = vmatpush1.msra.mxu0 0.0
    %1541 = vmatprep.mubr.f32.mxu0 0.0
    %1542 = vmatmul.mubr.f32.gmra.mrb[0].mxu0 %v1475
    %v1543 = vpop.f32.mrb[0].mxu0
    %v1544 = vadd.f32 0.0, %v1543
    %v1545 = vpop.f32.mrb[0].mxu0
    %v1546 = vadd.f32 0.0, %v1545
    %1547 = vdwg.mxu0
    %v1548 = vsel %vm75, %v1544, %v1546
    %v1549 = vld [vmem:[#allocation2 + $0x10] sm:$0xff]
    %v1550 = vadd.f32 %v1549, %v1548
    %v1551 = vtanh.pop %v1550
    %v1552 = vmul.f32 %v1551, %v79
    %v1553 = vadd.f32 %v1552, %v80
    %v1554 = vmul.f32 %v1553, %v1463
    %1556 = vrot.lane.b32.xlu0 %v1553, 64
    %v1557 = vpop.permute.xlu0 %1556
    %v1559 = vmul.f32 %v1553, %v1557
    %1561 = vrot.lane.b32.xlu0 %v1559, 32
    %v1562 = vpop.permute.xlu0 %1561
    %v1564 = vadd.f32 %v1554, %v1562
    %v1565 = vtanh.pop %v1564
    %1567 = vrot.lane.b32.xlu0 %v1565, 64
    %v1568 = vpop.permute.xlu0 %1567
    %v1570 = vmul.f32 %v1553, %v1568
    %1572 = vrot.lane.b32.xlu0 %v1570, 32
    %v1573 = vpop.permute.xlu0 %1572
    %1575 = vst.msk [vmem:[#allocation3 + $0x10] sm:$0xff] %vm239, %v1573
    %v1576 = vsel %vm239, %v1573, 0
    %1578 = vmatprep.subr.mxu0 %v1268
    %1579 = vmatpush1.msra.mxu0 %v1267
    %1580 = vmatprep.subr.mxu0 %v1270
    %1581 = vmatpush1.msra.mxu0 %v1269
    %1582 = vmatprep.subr.mxu0 %v1272
    %1583 = vmatpush1.msra.mxu0 %v1271
    %1584 = vmatprep.subr.mxu0 %v1274
    %1585 = vmatpush1.msra.mxu0 %v1273
    %1586 = vmatprep.subr.mxu0 0.0
    %1587 = vmatpush1.msra.mxu0 0.0
    %1588 = vmatprep.subr.mxu0 0.0
    %1589 = vmatpush1.msra.mxu0 0.0
    %1590 = vmatprep.subr.mxu0 0.0
    %1591 = vmatpush1.msra.mxu0 0.0
    %1592 = vmatprep.subr.mxu0 0.0
    %1593 = vmatpush1.msra.mxu0 0.0
    %1594 = vmatprep.subr.mxu0 0.0
    %1595 = vmatpush1.msra.mxu0 0.0
    %1596 = vmatprep.subr.mxu0 0.0
    %1597 = vmatpush1.msra.mxu0 0.0
    %1598 = vmatprep.subr.mxu0 0.0
    %1599 = vmatpush1.msra.mxu0 0.0
    %1600 = vmatprep.subr.mxu0 0.0
    %1601 = vmatpush1.msra.mxu0 0.0
    %1602 = vmatprep.subr.mxu0 0.0
    %1603 = vmatpush1.msra.mxu0 0.0
    %1604 = vmatprep.subr.mxu0 0.0
    %1605 = vmatpush1.msra.mxu0 0.0
    %1606 = vmatprep.subr.mxu0 0.0
    %1607 = vmatpush1.msra.mxu0 0.0
    %1608 = vmatprep.subr.mxu0 0.0
    %1609 = vmatpush1.msra.mxu0 0.0
    %1610 = vmatprep.subr.mxu0 0.0
    %1611 = vmatpush1.msra.mxu0 0.0
    %1612 = vmatprep.subr.mxu0 0.0
    %1613 = vmatpush1.msra.mxu0 0.0
    %1614 = vmatprep.subr.mxu0 0.0
    %1615 = vmatpush1.msra.mxu0 0.0
    %1616 = vmatprep.subr.mxu0 0.0
    %1617 = vmatpush1.msra.mxu0 0.0
    %1618 = vmatprep.subr.mxu0 0.0
    %1619 = vmatpush1.msra.mxu0 0.0
    %1620 = vmatprep.subr.mxu0 0.0
    %1621 = vmatpush1.msra.mxu0 0.0
    %1622 = vmatprep.subr.mxu0 0.0
    %1623 = vmatpush1.msra.mxu0 0.0
    %1624 = vmatprep.subr.mxu0 0.0
    %1625 = vmatpush1.msra.mxu0 0.0
    %1626 = vmatprep.subr.mxu0 0.0
    %1627 = vmatpush1.msra.mxu0 0.0
    %1628 = vmatprep.subr.mxu0 0.0
    %1629 = vmatpush1.msra.mxu0 0.0
    %1630 = vmatprep.subr.mxu0 0.0
    %1631 = vmatpush1.msra.mxu0 0.0
    %1632 = vmatprep.subr.mxu0 0.0
    %1633 = vmatpush1.msra.mxu0 0.0
    %1634 = vmatprep.subr.mxu0 0.0
    %1635 = vmatpush1.msra.mxu0 0.0
    %1636 = vmatprep.subr.mxu0 0.0
    %1637 = vmatpush1.msra.mxu0 0.0
    %1638 = vmatprep.subr.mxu0 0.0
    %1639 = vmatpush1.msra.mxu0 0.0
    %1640 = vmatprep.subr.mxu0 0.0
    %1641 = vmatpush1.msra.mxu0 0.0
    %1642 = vmatprep.mubr.f32.mxu0 0.0
    %1643 = vmatmul.mubr.f32.gmra.mrb[0].mxu0 %v1576
    %v1644 = vpop.f32.mrb[0].mxu0
    %v1645 = vadd.f32 0.0, %v1644
    %v1646 = vpop.f32.mrb[0].mxu0
    %v1647 = vadd.f32 0.0, %v1646
    %1648 = vdwg.mxu0
    %v1649 = vsel %vm75, %v1645, %v1647
    %v1650 = vld [vmem:[#allocation2 + $0x18] sm:$0xff]
    %v1651 = vadd.f32 %v1650, %v1649
    %v1652 = vtanh.pop %v1651
    %v1653 = vmul.f32 %v1652, %v79
    %v1654 = vadd.f32 %v1653, %v80
    %v1655 = vmul.f32 %v1654, %v1564
    %1657 = vrot.lane.b32.xlu0 %v1654, 64
    %v1658 = vpop.permute.xlu0 %1657
    %v1660 = vmul.f32 %v1654, %v1658
    %1662 = vrot.lane.b32.xlu0 %v1660, 32
    %v1663 = vpop.permute.xlu0 %1662
    %v1665 = vadd.f32 %v1655, %v1663
    %v1666 = vtanh.pop %v1665
    %1668 = vrot.lane.b32.xlu0 %v1666, 64
    %v1669 = vpop.permute.xlu0 %1668
    %v1671 = vmul.f32 %v1654, %v1669
    %1673 = vrot.lane.b32.xlu0 %v1671, 32
    %v1674 = vpop.permute.xlu0 %1673
    %1676 = vst.msk [vmem:[#allocation3 + $0x18] sm:$0xff] %vm239, %v1674
    %v1677 = vsel %vm239, %v1674, 0
    %1679 = vmatprep.subr.mxu0 %v1268
    %1680 = vmatpush1.msra.mxu0 %v1267
    %1681 = vmatprep.subr.mxu0 %v1270
    %1682 = vmatpush1.msra.mxu0 %v1269
    %1683 = vmatprep.subr.mxu0 %v1272
    %1684 = vmatpush1.msra.mxu0 %v1271
    %1685 = vmatprep.subr.mxu0 %v1274
    %1686 = vmatpush1.msra.mxu0 %v1273
    %1687 = vmatprep.subr.mxu0 0.0
    %1688 = vmatpush1.msra.mxu0 0.0
    %1689 = vmatprep.subr.mxu0 0.0
    %1690 = vmatpush1.msra.mxu0 0.0
    %1691 = vmatprep.subr.mxu0 0.0
    %1692 = vmatpush1.msra.mxu0 0.0
    %1693 = vmatprep.subr.mxu0 0.0
    %1694 = vmatpush1.msra.mxu0 0.0
    %1695 = vmatprep.subr.mxu0 0.0
    %1696 = vmatpush1.msra.mxu0 0.0
    %1697 = vmatprep.subr.mxu0 0.0
    %1698 = vmatpush1.msra.mxu0 0.0
    %1699 = vmatprep.subr.mxu0 0.0
    %1700 = vmatpush1.msra.mxu0 0.0
    %1701 = vmatprep.subr.mxu0 0.0
    %1702 = vmatpush1.msra.mxu0 0.0
    %1703 = vmatprep.subr.mxu0 0.0
    %1704 = vmatpush1.msra.mxu0 0.0
    %1705 = vmatprep.subr.mxu0 0.0
    %1706 = vmatpush1.msra.mxu0 0.0
    %1707 = vmatprep.subr.mxu0 0.0
    %1708 = vmatpush1.msra.mxu0 0.0
    %1709 = vmatprep.subr.mxu0 0.0
    %1710 = vmatpush1.msra.mxu0 0.0
    %1711 = vmatprep.subr.mxu0 0.0
    %1712 = vmatpush1.msra.mxu0 0.0
    %1713 = vmatprep.subr.mxu0 0.0
    %1714 = vmatpush1.msra.mxu0 0.0
    %1715 = vmatprep.subr.mxu0 0.0
    %1716 = vmatpush1.msra.mxu0 0.0
    %1717 = vmatprep.subr.mxu0 0.0
    %1718 = vmatpush1.msra.mxu0 0.0
    %1719 = vmatprep.subr.mxu0 0.0
    %1720 = vmatpush1.msra.mxu0 0.0
    %1721 = vmatprep.subr.mxu0 0.0
    %1722 = vmatpush1.msra.mxu0 0.0
    %1723 = vmatprep.subr.mxu0 0.0
    %1724 = vmatpush1.msra.mxu0 0.0
    %1725 = vmatprep.subr.mxu0 0.0
    %1726 = vmatpush1.msra.mxu0 0.0
    %1727 = vmatprep.subr.mxu0 0.0
    %1728 = vmatpush1.msra.mxu0 0.0
    %1729 = vmatprep.subr.mxu0 0.0
    %1730 = vmatpush1.msra.mxu0 0.0
    %1731 = vmatprep.subr.mxu0 0.0
    %1732 = vmatpush1.msra.mxu0 0.0
    %1733 = vmatprep.subr.mxu0 0.0
    %1734 = vmatpush1.msra.mxu0 0.0
    %1735 = vmatprep.subr.mxu0 0.0
    %1736 = vmatpush1.msra.mxu0 0.0
    %1737 = vmatprep.subr.mxu0 0.0
    %1738 = vmatpush1.msra.mxu0 0.0
    %1739 = vmatprep.subr.mxu0 0.0
    %1740 = vmatpush1.msra.mxu0 0.0
    %1741 = vmatprep.subr.mxu0 0.0
    %1742 = vmatpush1.msra.mxu0 0.0
    %1743 = vmatprep.mubr.f32.mxu0 0.0
    %1744 = vmatmul.mubr.f32.gmra.mrb[0].mxu0 %v1677
    %v1745 = vpop.f32.mrb[0].mxu0
    %v1746 = vadd.f32 0.0, %v1745
    %v1747 = vpop.f32.mrb[0].mxu0
    %v1748 = vadd.f32 0.0, %v1747
    %1749 = vdwg.mxu0
    %v1750 = vsel %vm75, %v1746, %v1748
    %v1751 = vld [vmem:[#allocation2 + $0x20] sm:$0xff]
    %v1752 = vadd.f32 %v1751, %v1750
    %v1753 = vtanh.pop %v1752
    %v1754 = vmul.f32 %v1753, %v79
    %v1755 = vadd.f32 %v1754, %v80
    %v1756 = vmul.f32 %v1755, %v1665
    %1758 = vrot.lane.b32.xlu0 %v1755, 64
    %v1759 = vpop.permute.xlu0 %1758
    %v1761 = vmul.f32 %v1755, %v1759
    %1763 = vrot.lane.b32.xlu0 %v1761, 32
    %v1764 = vpop.permute.xlu0 %1763
    %v1766 = vadd.f32 %v1756, %v1764
    %v1767 = vtanh.pop %v1766
    %1769 = vrot.lane.b32.xlu0 %v1767, 64
    %v1770 = vpop.permute.xlu0 %1769
    %v1772 = vmul.f32 %v1755, %v1770
    %1774 = vrot.lane.b32.xlu0 %v1772, 32
    %v1775 = vpop.permute.xlu0 %1774
    %1777 = vst.msk [vmem:[#allocation3 + $0x20] sm:$0xff] %vm239, %v1775
    %v1778 = vsel %vm239, %v1775, 0
    %1780 = vmatprep.subr.mxu0 %v1268
    %1781 = vmatpush1.msra.mxu0 %v1267
    %1782 = vmatprep.subr.mxu0 %v1270
    %1783 = vmatpush1.msra.mxu0 %v1269
    %1784 = vmatprep.subr.mxu0 %v1272
    %1785 = vmatpush1.msra.mxu0 %v1271
    %1786 = vmatprep.subr.mxu0 %v1274
    %1787 = vmatpush1.msra.mxu0 %v1273
    %1788 = vmatprep.subr.mxu0 0.0
    %1789 = vmatpush1.msra.mxu0 0.0
    %1790 = vmatprep.subr.mxu0 0.0
    %1791 = vmatpush1.msra.mxu0 0.0
    %1792 = vmatprep.subr.mxu0 0.0
    %1793 = vmatpush1.msra.mxu0 0.0
    %1794 = vmatprep.subr.mxu0 0.0
    %1795 = vmatpush1.msra.mxu0 0.0
    %1796 = vmatprep.subr.mxu0 0.0
    %1797 = vmatpush1.msra.mxu0 0.0
    %1798 = vmatprep.subr.mxu0 0.0
    %1799 = vmatpush1.msra.mxu0 0.0
    %1800 = vmatprep.subr.mxu0 0.0
    %1801 = vmatpush1.msra.mxu0 0.0
    %1802 = vmatprep.subr.mxu0 0.0
    %1803 = vmatpush1.msra.mxu0 0.0
    %1804 = vmatprep.subr.mxu0 0.0
    %1805 = vmatpush1.msra.mxu0 0.0
    %1806 = vmatprep.subr.mxu0 0.0
    %1807 = vmatpush1.msra.mxu0 0.0
    %1808 = vmatprep.subr.mxu0 0.0
    %1809 = vmatpush1.msra.mxu0 0.0
    %1810 = vmatprep.subr.mxu0 0.0
    %1811 = vmatpush1.msra.mxu0 0.0
    %1812 = vmatprep.subr.mxu0 0.0
    %1813 = vmatpush1.msra.mxu0 0.0
    %1814 = vmatprep.subr.mxu0 0.0
    %1815 = vmatpush1.msra.mxu0 0.0
    %1816 = vmatprep.subr.mxu0 0.0
    %1817 = vmatpush1.msra.mxu0 0.0
    %1818 = vmatprep.subr.mxu0 0.0
    %1819 = vmatpush1.msra.mxu0 0.0
    %1820 = vmatprep.subr.mxu0 0.0
    %1821 = vmatpush1.msra.mxu0 0.0
    %1822 = vmatprep.subr.mxu0 0.0
    %1823 = vmatpush1.msra.mxu0 0.0
    %1824 = vmatprep.subr.mxu0 0.0
    %1825 = vmatpush1.msra.mxu0 0.0
    %1826 = vmatprep.subr.mxu0 0.0
    %1827 = vmatpush1.msra.mxu0 0.0
    %1828 = vmatprep.subr.mxu0 0.0
    %1829 = vmatpush1.msra.mxu0 0.0
    %1830 = vmatprep.subr.mxu0 0.0
    %1831 = vmatpush1.msra.mxu0 0.0
    %1832 = vmatprep.subr.mxu0 0.0
    %1833 = vmatpush1.msra.mxu0 0.0
    %1834 = vmatprep.subr.mxu0 0.0
    %1835 = vmatpush1.msra.mxu0 0.0
    %1836 = vmatprep.subr.mxu0 0.0
    %1837 = vmatpush1.msra.mxu0 0.0
    %1838 = vmatprep.subr.mxu0 0.0
    %1839 = vmatpush1.msra.mxu0 0.0
    %1840 = vmatprep.subr.mxu0 0.0
    %1841 = vmatpush1.msra.mxu0 0.0
    %1842 = vmatprep.subr.mxu0 0.0
    %1843 = vmatpush1.msra.mxu0 0.0
    %1844 = vmatprep.mubr.f32.mxu0 0.0
    %1845 = vmatmul.mubr.f32.gmra.mrb[0].mxu0 %v1778
    %v1846 = vpop.f32.mrb[0].mxu0
    %v1847 = vadd.f32 0.0, %v1846
    %v1848 = vpop.f32.mrb[0].mxu0
    %v1849 = vadd.f32 0.0, %v1848
    %1850 = vdwg.mxu0
    %v1851 = vsel %vm75, %v1847, %v1849
    %v1852 = vld [vmem:[#allocation2 + $0x28] sm:$0xff]
    %v1853 = vadd.f32 %v1852, %v1851
    %v1854 = vtanh.pop %v1853
    %v1855 = vmul.f32 %v1854, %v79
    %v1856 = vadd.f32 %v1855, %v80
    %v1857 = vmul.f32 %v1856, %v1766
    %1859 = vrot.lane.b32.xlu0 %v1856, 64
    %v1860 = vpop.permute.xlu0 %1859
    %v1862 = vmul.f32 %v1856, %v1860
    %1864 = vrot.lane.b32.xlu0 %v1862, 32
    %v1865 = vpop.permute.xlu0 %1864
    %v1867 = vadd.f32 %v1857, %v1865
    %v1868 = vtanh.pop %v1867
    %1870 = vrot.lane.b32.xlu0 %v1868, 64
    %v1871 = vpop.permute.xlu0 %1870
    %v1873 = vmul.f32 %v1856, %v1871
    %1875 = vrot.lane.b32.xlu0 %v1873, 32
    %v1876 = vpop.permute.xlu0 %1875
    %1878 = vst.msk [vmem:[#allocation3 + $0x28] sm:$0xff] %vm239, %v1876
    %v1879 = vsel %vm239, %v1876, 0
    %1881 = vmatprep.subr.mxu0 %v1268
    %1882 = vmatpush1.msra.mxu0 %v1267
    %1883 = vmatprep.subr.mxu0 %v1270
    %1884 = vmatpush1.msra.mxu0 %v1269
    %1885 = vmatprep.subr.mxu0 %v1272
    %1886 = vmatpush1.msra.mxu0 %v1271
    %1887 = vmatprep.subr.mxu0 %v1274
    %1888 = vmatpush1.msra.mxu0 %v1273
    %1889 = vmatprep.subr.mxu0 0.0
    %1890 = vmatpush1.msra.mxu0 0.0
    %1891 = vmatprep.subr.mxu0 0.0
    %1892 = vmatpush1.msra.mxu0 0.0
    %1893 = vmatprep.subr.mxu0 0.0
    %1894 = vmatpush1.msra.mxu0 0.0
    %1895 = vmatprep.subr.mxu0 0.0
    %1896 = vmatpush1.msra.mxu0 0.0
    %1897 = vmatprep.subr.mxu0 0.0
    %1898 = vmatpush1.msra.mxu0 0.0
    %1899 = vmatprep.subr.mxu0 0.0
    %1900 = vmatpush1.msra.mxu0 0.0
    %1901 = vmatprep.subr.mxu0 0.0
    %1902 = vmatpush1.msra.mxu0 0.0
    %1903 = vmatprep.subr.mxu0 0.0
    %1904 = vmatpush1.msra.mxu0 0.0
    %1905 = vmatprep.subr.mxu0 0.0
    %1906 = vmatpush1.msra.mxu0 0.0
    %1907 = vmatprep.subr.mxu0 0.0
    %1908 = vmatpush1.msra.mxu0 0.0
    %1909 = vmatprep.subr.mxu0 0.0
    %1910 = vmatpush1.msra.mxu0 0.0
    %1911 = vmatprep.subr.mxu0 0.0
    %1912 = vmatpush1.msra.mxu0 0.0
    %1913 = vmatprep.subr.mxu0 0.0
    %1914 = vmatpush1.msra.mxu0 0.0
    %1915 = vmatprep.subr.mxu0 0.0
    %1916 = vmatpush1.msra.mxu0 0.0
    %1917 = vmatprep.subr.mxu0 0.0
    %1918 = vmatpush1.msra.mxu0 0.0
    %1919 = vmatprep.subr.mxu0 0.0
    %1920 = vmatpush1.msra.mxu0 0.0
    %1921 = vmatprep.subr.mxu0 0.0
    %1922 = vmatpush1.msra.mxu0 0.0
    %1923 = vmatprep.subr.mxu0 0.0
    %1924 = vmatpush1.msra.mxu0 0.0
    %1925 = vmatprep.subr.mxu0 0.0
    %1926 = vmatpush1.msra.mxu0 0.0
    %1927 = vmatprep.subr.mxu0 0.0
    %1928 = vmatpush1.msra.mxu0 0.0
    %1929 = vmatprep.subr.mxu0 0.0
    %1930 = vmatpush1.msra.mxu0 0.0
    %1931 = vmatprep.subr.mxu0 0.0
    %1932 = vmatpush1.msra.mxu0 0.0
    %1933 = vmatprep.subr.mxu0 0.0
    %1934 = vmatpush1.msra.mxu0 0.0
    %1935 = vmatprep.subr.mxu0 0.0
    %1936 = vmatpush1.msra.mxu0 0.0
    %1937 = vmatprep.subr.mxu0 0.0
    %1938 = vmatpush1.msra.mxu0 0.0
    %1939 = vmatprep.subr.mxu0 0.0
    %1940 = vmatpush1.msra.mxu0 0.0
    %1941 = vmatprep.subr.mxu0 0.0
    %1942 = vmatpush1.msra.mxu0 0.0
    %1943 = vmatprep.subr.mxu0 0.0
    %1944 = vmatpush1.msra.mxu0 0.0
    %1945 = vmatprep.mubr.f32.mxu0 0.0
    %1946 = vmatmul.mubr.f32.gmra.mrb[0].mxu0 %v1879
    %v1947 = vpop.f32.mrb[0].mxu0
    %v1948 = vadd.f32 0.0, %v1947
    %v1949 = vpop.f32.mrb[0].mxu0
    %v1950 = vadd.f32 0.0, %v1949
    %1951 = vdwg.mxu0
    %v1952 = vsel %vm75, %v1948, %v1950
    %v1953 = vld [vmem:[#allocation2 + $0x30] sm:$0xff]
    %v1954 = vadd.f32 %v1953, %v1952
    %v1955 = vtanh.pop %v1954
    %v1956 = vmul.f32 %v1955, %v79
    %v1957 = vadd.f32 %v1956, %v80
    %v1958 = vmul.f32 %v1957, %v1867
    %1960 = vrot.lane.b32.xlu0 %v1957, 64
    %v1961 = vpop.permute.xlu0 %1960
    %v1963 = vmul.f32 %v1957, %v1961
    %1965 = vrot.lane.b32.xlu0 %v1963, 32
    %v1966 = vpop.permute.xlu0 %1965
    %v1968 = vadd.f32 %v1958, %v1966
    %v1969 = vtanh.pop %v1968
    %1971 = vrot.lane.b32.xlu0 %v1969, 64
    %v1972 = vpop.permute.xlu0 %1971
    %v1974 = vmul.f32 %v1957, %v1972
    %1976 = vrot.lane.b32.xlu0 %v1974, 32
    %v1977 = vpop.permute.xlu0 %1976
    %1979 = vst.msk [vmem:[#allocation3 + $0x30] sm:$0xff] %vm239, %v1977
    %v1980 = vsel %vm239, %v1977, 0
    %1982 = vmatprep.subr.mxu0 %v1268
    %1983 = vmatpush1.msra.mxu0 %v1267
    %1984 = vmatprep.subr.mxu0 %v1270
    %1985 = vmatpush1.msra.mxu0 %v1269
    %1986 = vmatprep.subr.mxu0 %v1272
    %1987 = vmatpush1.msra.mxu0 %v1271
    %1988 = vmatprep.subr.mxu0 %v1274
    %1989 = vmatpush1.msra.mxu0 %v1273
    %1990 = vmatprep.subr.mxu0 0.0
    %1991 = vmatpush1.msra.mxu0 0.0
    %1992 = vmatprep.subr.mxu0 0.0
    %1993 = vmatpush1.msra.mxu0 0.0
    %1994 = vmatprep.subr.mxu0 0.0
    %1995 = vmatpush1.msra.mxu0 0.0
    %1996 = vmatprep.subr.mxu0 0.0
    %1997 = vmatpush1.msra.mxu0 0.0
    %1998 = vmatprep.subr.mxu0 0.0
    %1999 = vmatpush1.msra.mxu0 0.0
    %2000 = vmatprep.subr.mxu0 0.0
    %2001 = vmatpush1.msra.mxu0 0.0
    %2002 = vmatprep.subr.mxu0 0.0
    %2003 = vmatpush1.msra.mxu0 0.0
    %2004 = vmatprep.subr.mxu0 0.0
    %2005 = vmatpush1.msra.mxu0 0.0
    %2006 = vmatprep.subr.mxu0 0.0
    %2007 = vmatpush1.msra.mxu0 0.0
    %2008 = vmatprep.subr.mxu0 0.0
    %2009 = vmatpush1.msra.mxu0 0.0
    %2010 = vmatprep.subr.mxu0 0.0
    %2011 = vmatpush1.msra.mxu0 0.0
    %2012 = vmatprep.subr.mxu0 0.0
    %2013 = vmatpush1.msra.mxu0 0.0
    %2014 = vmatprep.subr.mxu0 0.0
    %2015 = vmatpush1.msra.mxu0 0.0
    %2016 = vmatprep.subr.mxu0 0.0
    %2017 = vmatpush1.msra.mxu0 0.0
    %2018 = vmatprep.subr.mxu0 0.0
    %2019 = vmatpush1.msra.mxu0 0.0
    %2020 = vmatprep.subr.mxu0 0.0
    %2021 = vmatpush1.msra.mxu0 0.0
    %2022 = vmatprep.subr.mxu0 0.0
    %2023 = vmatpush1.msra.mxu0 0.0
    %2024 = vmatprep.subr.mxu0 0.0
    %2025 = vmatpush1.msra.mxu0 0.0
    %2026 = vmatprep.subr.mxu0 0.0
    %2027 = vmatpush1.msra.mxu0 0.0
    %2028 = vmatprep.subr.mxu0 0.0
    %2029 = vmatpush1.msra.mxu0 0.0
    %2030 = vmatprep.subr.mxu0 0.0
    %2031 = vmatpush1.msra.mxu0 0.0
    %2032 = vmatprep.subr.mxu0 0.0
    %2033 = vmatpush1.msra.mxu0 0.0
    %2034 = vmatprep.subr.mxu0 0.0
    %2035 = vmatpush1.msra.mxu0 0.0
    %2036 = vmatprep.subr.mxu0 0.0
    %2037 = vmatpush1.msra.mxu0 0.0
    %2038 = vmatprep.subr.mxu0 0.0
    %2039 = vmatpush1.msra.mxu0 0.0
    %2040 = vmatprep.subr.mxu0 0.0
    %2041 = vmatpush1.msra.mxu0 0.0
    %2042 = vmatprep.subr.mxu0 0.0
    %2043 = vmatpush1.msra.mxu0 0.0
    %2044 = vmatprep.subr.mxu0 0.0
    %2045 = vmatpush1.msra.mxu0 0.0
    %2046 = vmatprep.mubr.f32.mxu0 0.0
    %2047 = vmatmul.mubr.f32.gmra.mrb[0].mxu0 %v1980
    %v2048 = vpop.f32.mrb[0].mxu0
    %v2049 = vadd.f32 0.0, %v2048
    %v2050 = vpop.f32.mrb[0].mxu0
    %v2051 = vadd.f32 0.0, %v2050
    %2052 = vdwg.mxu0
    %v2053 = vsel %vm75, %v2049, %v2051
    %v2054 = vld [vmem:[#allocation2 + $0x38] sm:$0xff]
    %v2055 = vadd.f32 %v2054, %v2053
    %v2056 = vtanh.pop %v2055
    %v2057 = vmul.f32 %v2056, %v79
    %v2058 = vadd.f32 %v2057, %v80
    %v2059 = vmul.f32 %v2058, %v1968
    %2061 = vrot.lane.b32.xlu0 %v2058, 64
    %v2062 = vpop.permute.xlu0 %2061
    %v2064 = vmul.f32 %v2058, %v2062
    %2066 = vrot.lane.b32.xlu0 %v2064, 32
    %v2067 = vpop.permute.xlu0 %2066
    %v2069 = vadd.f32 %v2059, %v2067
    %v2070 = vtanh.pop %v2069
    %2072 = vrot.lane.b32.xlu0 %v2070, 64
    %v2073 = vpop.permute.xlu0 %2072
    %v2075 = vmul.f32 %v2058, %v2073
    %2077 = vrot.lane.b32.xlu0 %v2075, 32
    %v2078 = vpop.permute.xlu0 %2077
    %2080 = vst.msk [vmem:[#allocation3 + $0x38] sm:$0xff] %vm239, %v2078
    %v2081 = vld [vmem:[#allocation3] sm:$0xf]
    %2082 = vst.msk [vmem:[#allocation4] sm:$0xf] %vm1050, %v2081
    %v2083 = vld [vmem:[#allocation3 + $0x3c] sm:$0xf]
    %2085 = vrot.lane.b32.xlu0 %v2083, 32
    %v2086 = vpop.permute.xlu0 %2085
    %2088 = vst.msk [vmem:[#allocation4] sm:$0xf] %vm1057, %v2086
    %v2089 = vld [vmem:[#allocation3 + $0x8] sm:$0xf]
    %2090 = vst.msk [vmem:[#allocation4 + $0x4] sm:$0xf] %vm1050, %v2089
    %v2091 = vld [vmem:[#allocation3 + $0x34] sm:$0xf]
    %2093 = vrot.lane.b32.xlu0 %v2091, 32
    %v2094 = vpop.permute.xlu0 %2093
    %2096 = vst.msk [vmem:[#allocation4 + $0x4] sm:$0xf] %vm1057, %v2094
    %v2097 = vld [vmem:[#allocation3 + $0x10] sm:$0xf]
    %2098 = vst.msk [vmem:[#allocation4 + $0x8] sm:$0xf] %vm1050, %v2097
    %v2099 = vld [vmem:[#allocation3 + $0x2c] sm:$0xf]
    %2101 = vrot.lane.b32.xlu0 %v2099, 32
    %v2102 = vpop.permute.xlu0 %2101
    %2104 = vst.msk [vmem:[#allocation4 + $0x8] sm:$0xf] %vm1057, %v2102
    %v2105 = vld [vmem:[#allocation3 + $0x18] sm:$0xf]
    %2106 = vst.msk [vmem:[#allocation4 + $0xc] sm:$0xf] %vm1050, %v2105
    %v2107 = vld [vmem:[#allocation3 + $0x24] sm:$0xf]
    %2109 = vrot.lane.b32.xlu0 %v2107, 32
    %v2110 = vpop.permute.xlu0 %2109
    %2112 = vst.msk [vmem:[#allocation4 + $0xc] sm:$0xf] %vm1057, %v2110
    %v2113 = vld [vmem:[#allocation3 + $0x20] sm:$0xf]
    %2114 = vst.msk [vmem:[#allocation4 + $0x10] sm:$0xf] %vm1050, %v2113
    %v2115 = vld [vmem:[#allocation3 + $0x1c] sm:$0xf]
    %2117 = vrot.lane.b32.xlu0 %v2115, 32
    %v2118 = vpop.permute.xlu0 %2117
    %2120 = vst.msk [vmem:[#allocation4 + $0x10] sm:$0xf] %vm1057, %v2118
    %v2121 = vld [vmem:[#allocation3 + $0x28] sm:$0xf]
    %2122 = vst.msk [vmem:[#allocation4 + $0x14] sm:$0xf] %vm1050, %v2121
    %v2123 = vld [vmem:[#allocation3 + $0x14] sm:$0xf]
    %2125 = vrot.lane.b32.xlu0 %v2123, 32
    %v2126 = vpop.permute.xlu0 %2125
    %2128 = vst.msk [vmem:[#allocation4 + $0x14] sm:$0xf] %vm1057, %v2126
    %v2129 = vld [vmem:[#allocation3 + $0x30] sm:$0xf]
    %2130 = vst.msk [vmem:[#allocation4 + $0x18] sm:$0xf] %vm1050, %v2129
    %v2131 = vld [vmem:[#allocation3 + $0xc] sm:$0xf]
    %2133 = vrot.lane.b32.xlu0 %v2131, 32
    %v2134 = vpop.permute.xlu0 %2133
    %2136 = vst.msk [vmem:[#allocation4 + $0x18] sm:$0xf] %vm1057, %v2134
    %v2137 = vld [vmem:[#allocation3 + $0x38] sm:$0xf]
    %2138 = vst.msk [vmem:[#allocation4 + $0x1c] sm:$0xf] %vm1050, %v2137
    %v2139 = vld [vmem:[#allocation3 + $0x4] sm:$0xf]
    %2141 = vrot.lane.b32.xlu0 %v2139, 32
    %v2142 = vpop.permute.xlu0 %2141
    %2144 = vst.msk [vmem:[#allocation4 + $0x1c] sm:$0xf] %vm1057, %v2142
    %v2145 = vld [vmem:[#allocation4] sm:$0xff]
    %v2146 = vld [vmem:[#allocation4 + $0x8] sm:$0xff]
    %v2147 = vld [vmem:[#allocation4 + $0x10] sm:$0xff]
    %v2148 = vld [vmem:[#allocation4 + $0x18] sm:$0xff]
    %s2149 = scalar_lea.vmem [#allocation7], 256
    %v2150 = vld [vmem:[%s2149] sm:$0xff]
    %v2151 = vld [vmem:[%s2149 + $0x8] sm:$0xff]
    %v2152 = vld [vmem:[%s2149 + $0x10] sm:$0xff]
    %v2153 = vld [vmem:[%s2149 + $0x18] sm:$0xff]
    %v2154 = vld [vmem:[%s2149 + $0x20] sm:$0xff]
    %v2155 = vld [vmem:[%s2149 + $0x28] sm:$0xff]
    %v2156 = vld [vmem:[%s2149 + $0x30] sm:$0xff]
    %v2157 = vld [vmem:[%s2149 + $0x38] sm:$0xff]
    %v2158 = vld [vmem:[%s2149 + $0x40] sm:$0xff]
    %v2159 = vld [vmem:[%s2149 + $0x48] sm:$0xff]
    %v2160 = vld [vmem:[%s2149 + $0x50] sm:$0xff]
    %v2161 = vld [vmem:[%s2149 + $0x58] sm:$0xff]
    %v2162 = vld [vmem:[%s2149 + $0x60] sm:$0xff]
    %v2163 = vld [vmem:[%s2149 + $0x68] sm:$0xff]
    %v2164 = vld [vmem:[%s2149 + $0x70] sm:$0xff]
    %v2165 = vld [vmem:[%s2149 + $0x78] sm:$0xff]
    %s2166 = scalar_lea.vmem %s3, 4
    %v2167 = vld [vmem:[%s2166] sm:$0x3]
    %v2169 = vlaneseq
    %v2170 = vshrl.u32 %v2169, 7
    %v2171 = vsub.s32 0, %v2170
    %v2172 = vrot.slane %v2167, %v2171
    %v2173 = vlaneseq
    %v2174 = vshrl.u32 %v2173, 7
    %v2175 = vsub.s32 1, %v2174
    %v2176 = vrot.slane %v2167, %v2175
    %v2180 = vsel %vm113, %v2145, 0
    %v2183 = vsel %vm113, %v2146, 0
    %v2186 = vsel %vm113, %v2147, 0
    %v2189 = vsel %vm113, %v2148, 0
    %2191 = vmatprep.subr.mxu0 %v2151
    %2192 = vmatpush1.msra.mxu0 %v2150
    %2193 = vmatprep.subr.mxu0 %v2153
    %2194 = vmatpush1.msra.mxu0 %v2152
    %2195 = vmatprep.subr.mxu0 %v2155
    %2196 = vmatpush1.msra.mxu0 %v2154
    %2197 = vmatprep.subr.mxu0 %v2157
    %2198 = vmatpush1.msra.mxu0 %v2156
    %2199 = vmatprep.subr.mxu0 %v2159
    %2200 = vmatpush1.msra.mxu0 %v2158
    %2201 = vmatprep.subr.mxu0 %v2161
    %2202 = vmatpush1.msra.mxu0 %v2160
    %2203 = vmatprep.subr.mxu0 %v2163
    %2204 = vmatpush1.msra.mxu0 %v2162
    %2205 = vmatprep.subr.mxu0 %v2165
    %2206 = vmatpush1.msra.mxu0 %v2164
    %2207 = vmatprep.subr.mxu0 0.0
    %2208 = vmatpush1.msra.mxu0 0.0
    %2209 = vmatprep.subr.mxu0 0.0
    %2210 = vmatpush1.msra.mxu0 0.0
    %2211 = vmatprep.subr.mxu0 0.0
    %2212 = vmatpush1.msra.mxu0 0.0
    %2213 = vmatprep.subr.mxu0 0.0
    %2214 = vmatpush1.msra.mxu0 0.0
    %2215 = vmatprep.subr.mxu0 0.0
    %2216 = vmatpush1.msra.mxu0 0.0
    %2217 = vmatprep.subr.mxu0 0.0
    %2218 = vmatpush1.msra.mxu0 0.0
    %2219 = vmatprep.subr.mxu0 0.0
    %2220 = vmatpush1.msra.mxu0 0.0
    %2221 = vmatprep.subr.mxu0 0.0
    %2222 = vmatpush1.msra.mxu0 0.0
    %2223 = vmatprep.subr.mxu0 0.0
    %2224 = vmatpush1.msra.mxu0 0.0
    %2225 = vmatprep.subr.mxu0 0.0
    %2226 = vmatpush1.msra.mxu0 0.0
    %2227 = vmatprep.subr.mxu0 0.0
    %2228 = vmatpush1.msra.mxu0 0.0
    %2229 = vmatprep.subr.mxu0 0.0
    %2230 = vmatpush1.msra.mxu0 0.0
    %2231 = vmatprep.subr.mxu0 0.0
    %2232 = vmatpush1.msra.mxu0 0.0
    %2233 = vmatprep.subr.mxu0 0.0
    %2234 = vmatpush1.msra.mxu0 0.0
    %2235 = vmatprep.subr.mxu0 0.0
    %2236 = vmatpush1.msra.mxu0 0.0
    %2237 = vmatprep.subr.mxu0 0.0
    %2238 = vmatpush1.msra.mxu0 0.0
    %2239 = vmatprep.subr.mxu0 0.0
    %2240 = vmatpush1.msra.mxu0 0.0
    %2241 = vmatprep.subr.mxu0 0.0
    %2242 = vmatpush1.msra.mxu0 0.0
    %2243 = vmatprep.subr.mxu0 0.0
    %2244 = vmatpush1.msra.mxu0 0.0
    %2245 = vmatprep.subr.mxu0 0.0
    %2246 = vmatpush1.msra.mxu0 0.0
    %2247 = vmatprep.subr.mxu0 0.0
    %2248 = vmatpush1.msra.mxu0 0.0
    %2249 = vmatprep.subr.mxu0 0.0
    %2250 = vmatpush1.msra.mxu0 0.0
    %2251 = vmatprep.subr.mxu0 0.0
    %2252 = vmatpush1.msra.mxu0 0.0
    %2253 = vmatprep.subr.mxu0 0.0
    %2254 = vmatpush1.msra.mxu0 0.0
    %2255 = vmatprep.mubr.f32.mxu0 0.0
    %2256 = vmatmul.mubr.f32.gmra.mrb[0].mxu0 %v2180
    %v2257 = vpop.f32.mrb[0].mxu0
    %v2258 = vadd.f32 %v2172, %v2257
    %v2259 = vpop.f32.mrb[0].mxu0
    %v2260 = vadd.f32 %v2176, %v2259
    %2261 = vmatprep.mubr.f32.mxu0 0.0
    %2262 = vmatmul.mubr.f32.gmra.mrb[0].mxu0 %v2183
    %v2263 = vpop.f32.mrb[0].mxu0
    %v2264 = vadd.f32 %v2172, %v2263
    %v2265 = vpop.f32.mrb[0].mxu0
    %v2266 = vadd.f32 %v2176, %v2265
    %2267 = vmatprep.mubr.f32.mxu0 0.0
    %2268 = vmatmul.mubr.f32.gmra.mrb[0].mxu0 %v2186
    %v2269 = vpop.f32.mrb[0].mxu0
    %v2270 = vadd.f32 %v2172, %v2269
    %v2271 = vpop.f32.mrb[0].mxu0
    %v2272 = vadd.f32 %v2176, %v2271
    %2273 = vmatprep.mubr.f32.mxu0 0.0
    %2274 = vmatmul.mubr.f32.gmra.mrb[0].mxu0 %v2189
    %v2275 = vpop.f32.mrb[0].mxu0
    %v2276 = vadd.f32 %v2172, %v2275
    %v2277 = vpop.f32.mrb[0].mxu0
    %v2278 = vadd.f32 %v2176, %v2277
    %2279 = vdwg.mxu0
    %2280 = vst [vmem:[#allocation2] sm:$0xf] %v2258
    %2281 = vst [vmem:[#allocation2] sm:$0xf0] %v2278
    %2282 = vst [vmem:[#allocation2 + $0x4] sm:$0xf0] %v2258
    %2283 = vst [vmem:[#allocation2 + $0xc] sm:$0xf] %v2278
    %2284 = vst [vmem:[#allocation2 + $0x10] sm:$0xf] %v2264
    %2285 = vst [vmem:[#allocation2 + $0x10] sm:$0xf0] %v2272
    %2286 = vst [vmem:[#allocation2 + $0x14] sm:$0xf0] %v2264
    %2287 = vst [vmem:[#allocation2 + $0x1c] sm:$0xf] %v2272
    %2288 = vst [vmem:[#allocation2 + $0x20] sm:$0xf] %v2270
    %2289 = vst [vmem:[#allocation2 + $0x20] sm:$0xf0] %v2266
    %2290 = vst [vmem:[#allocation2 + $0x24] sm:$0xf0] %v2270
    %2291 = vst [vmem:[#allocation2 + $0x2c] sm:$0xf] %v2266
    %2292 = vst [vmem:[#allocation2 + $0x30] sm:$0xf] %v2276
    %2293 = vst [vmem:[#allocation2 + $0x30] sm:$0xf0] %v2260
    %2294 = vst [vmem:[#allocation2 + $0x34] sm:$0xf0] %v2276
    %2295 = vst [vmem:[#allocation2 + $0x3c] sm:$0xf] %v2260
    %s2296 = scalar_lea.vmem %s2, 128
    %v2297 = vld [vmem:[%s2296] sm:$0xff]
    %v2298 = vld [vmem:[%s2296 + $0x8] sm:$0xff]
    %v2299 = vld [vmem:[%s2296 + $0x10] sm:$0xff]
    %v2300 = vld [vmem:[%s2296 + $0x18] sm:$0xff]
    %v2301 = vld [vmem:[%s2296 + $0x20] sm:$0xff]
    %v2302 = vld [vmem:[%s2296 + $0x28] sm:$0xff]
    %v2303 = vld [vmem:[%s2296 + $0x30] sm:$0xff]
    %v2304 = vld [vmem:[%s2296 + $0x38] sm:$0xff]
    %2305 = vmatprep.subr.mxu0 %v2298
    %2306 = vmatpush1.msra.mxu0 %v2297
    %2307 = vmatprep.subr.mxu0 %v2300
    %2308 = vmatpush1.msra.mxu0 %v2299
    %2309 = vmatprep.subr.mxu0 %v2302
    %2310 = vmatpush1.msra.mxu0 %v2301
    %2311 = vmatprep.subr.mxu0 %v2304
    %2312 = vmatpush1.msra.mxu0 %v2303
    %2313 = vmatprep.subr.mxu0 0.0
    %2314 = vmatpush1.msra.mxu0 0.0
    %2315 = vmatprep.subr.mxu0 0.0
    %2316 = vmatpush1.msra.mxu0 0.0
    %2317 = vmatprep.subr.mxu0 0.0
    %2318 = vmatpush1.msra.mxu0 0.0
    %2319 = vmatprep.subr.mxu0 0.0
    %2320 = vmatpush1.msra.mxu0 0.0
    %2321 = vmatprep.subr.mxu0 0.0
    %2322 = vmatpush1.msra.mxu0 0.0
    %2323 = vmatprep.subr.mxu0 0.0
    %2324 = vmatpush1.msra.mxu0 0.0
    %2325 = vmatprep.subr.mxu0 0.0
    %2326 = vmatpush1.msra.mxu0 0.0
    %2327 = vmatprep.subr.mxu0 0.0
    %2328 = vmatpush1.msra.mxu0 0.0
    %2329 = vmatprep.subr.mxu0 0.0
    %2330 = vmatpush1.msra.mxu0 0.0
    %2331 = vmatprep.subr.mxu0 0.0
    %2332 = vmatpush1.msra.mxu0 0.0
    %2333 = vmatprep.subr.mxu0 0.0
    %2334 = vmatpush1.msra.mxu0 0.0
    %2335 = vmatprep.subr.mxu0 0.0
    %2336 = vmatpush1.msra.mxu0 0.0
    %2337 = vmatprep.subr.mxu0 0.0
    %2338 = vmatpush1.msra.mxu0 0.0
    %2339 = vmatprep.subr.mxu0 0.0
    %2340 = vmatpush1.msra.mxu0 0.0
    %2341 = vmatprep.subr.mxu0 0.0
    %2342 = vmatpush1.msra.mxu0 0.0
    %2343 = vmatprep.subr.mxu0 0.0
    %2344 = vmatpush1.msra.mxu0 0.0
    %2345 = vmatprep.subr.mxu0 0.0
    %2346 = vmatpush1.msra.mxu0 0.0
    %2347 = vmatprep.subr.mxu0 0.0
    %2348 = vmatpush1.msra.mxu0 0.0
    %2349 = vmatprep.subr.mxu0 0.0
    %2350 = vmatpush1.msra.mxu0 0.0
    %2351 = vmatprep.subr.mxu0 0.0
    %2352 = vmatpush1.msra.mxu0 0.0
    %2353 = vmatprep.subr.mxu0 0.0
    %2354 = vmatpush1.msra.mxu0 0.0
    %2355 = vmatprep.subr.mxu0 0.0
    %2356 = vmatpush1.msra.mxu0 0.0
    %2357 = vmatprep.subr.mxu0 0.0
    %2358 = vmatpush1.msra.mxu0 0.0
    %2359 = vmatprep.subr.mxu0 0.0
    %2360 = vmatpush1.msra.mxu0 0.0
    %2361 = vmatprep.subr.mxu0 0.0
    %2362 = vmatpush1.msra.mxu0 0.0
    %2363 = vmatprep.subr.mxu0 0.0
    %2364 = vmatpush1.msra.mxu0 0.0
    %2365 = vmatprep.subr.mxu0 0.0
    %2366 = vmatpush1.msra.mxu0 0.0
    %2367 = vmatprep.subr.mxu0 0.0
    %2368 = vmatpush1.msra.mxu0 0.0
    %2369 = vmatprep.mubr.f32.mxu0 0.0
    %2370 = vmatmul.mubr.f32.gmra.mrb[0].mxu0 %v241
    %v2371 = vpop.f32.mrb[0].mxu0
    %v2372 = vadd.f32 0.0, %v2371
    %v2373 = vpop.f32.mrb[0].mxu0
    %v2374 = vadd.f32 0.0, %v2373
    %2375 = vdwg.mxu0
    %v2376 = vsel %vm75, %v2372, %v2374
    %v2377 = vld [vmem:[#allocation2] sm:$0xff]
    %v2378 = vadd.f32 %v2377, %v2376
    %v2379 = vtanh.pop %v2378
    %v2380 = vmul.f32 %v2379, %v79
    %v2381 = vadd.f32 %v2380, %v80
    %v2382 = vmul.f32 %v2381, 0.0
    %2384 = vrot.lane.b32.xlu0 %v2381, 64
    %v2385 = vpop.permute.xlu0 %2384
    %v2387 = vmul.f32 %v2381, %v2385
    %2389 = vrot.lane.b32.xlu0 %v2387, 32
    %v2390 = vpop.permute.xlu0 %2389
    %v2392 = vadd.f32 %v2382, %v2390
    %v2393 = vtanh.pop %v2392
    %2395 = vrot.lane.b32.xlu0 %v2393, 64
    %v2396 = vpop.permute.xlu0 %2395
    %v2398 = vmul.f32 %v2381, %v2396
    %2400 = vrot.lane.b32.xlu0 %v2398, 32
    %v2401 = vpop.permute.xlu0 %2400
    %2403 = vst.msk [vmem:[#allocation3] sm:$0xff] %vm239, %v2401
    %v2404 = vsel %vm239, %v2401, 0
    %2406 = vmatprep.subr.mxu0 %v2298
    %2407 = vmatpush1.msra.mxu0 %v2297
    %2408 = vmatprep.subr.mxu0 %v2300
    %2409 = vmatpush1.msra.mxu0 %v2299
    %2410 = vmatprep.subr.mxu0 %v2302
    %2411 = vmatpush1.msra.mxu0 %v2301
    %2412 = vmatprep.subr.mxu0 %v2304
    %2413 = vmatpush1.msra.mxu0 %v2303
    %2414 = vmatprep.subr.mxu0 0.0
    %2415 = vmatpush1.msra.mxu0 0.0
    %2416 = vmatprep.subr.mxu0 0.0
    %2417 = vmatpush1.msra.mxu0 0.0
    %2418 = vmatprep.subr.mxu0 0.0
    %2419 = vmatpush1.msra.mxu0 0.0
    %2420 = vmatprep.subr.mxu0 0.0
    %2421 = vmatpush1.msra.mxu0 0.0
    %2422 = vmatprep.subr.mxu0 0.0
    %2423 = vmatpush1.msra.mxu0 0.0
    %2424 = vmatprep.subr.mxu0 0.0
    %2425 = vmatpush1.msra.mxu0 0.0
    %2426 = vmatprep.subr.mxu0 0.0
    %2427 = vmatpush1.msra.mxu0 0.0
    %2428 = vmatprep.subr.mxu0 0.0
    %2429 = vmatpush1.msra.mxu0 0.0
    %2430 = vmatprep.subr.mxu0 0.0
    %2431 = vmatpush1.msra.mxu0 0.0
    %2432 = vmatprep.subr.mxu0 0.0
    %2433 = vmatpush1.msra.mxu0 0.0
    %2434 = vmatprep.subr.mxu0 0.0
    %2435 = vmatpush1.msra.mxu0 0.0
    %2436 = vmatprep.subr.mxu0 0.0
    %2437 = vmatpush1.msra.mxu0 0.0
    %2438 = vmatprep.subr.mxu0 0.0
    %2439 = vmatpush1.msra.mxu0 0.0
    %2440 = vmatprep.subr.mxu0 0.0
    %2441 = vmatpush1.msra.mxu0 0.0
    %2442 = vmatprep.subr.mxu0 0.0
    %2443 = vmatpush1.msra.mxu0 0.0
    %2444 = vmatprep.subr.mxu0 0.0
    %2445 = vmatpush1.msra.mxu0 0.0
    %2446 = vmatprep.subr.mxu0 0.0
    %2447 = vmatpush1.msra.mxu0 0.0
    %2448 = vmatprep.subr.mxu0 0.0
    %2449 = vmatpush1.msra.mxu0 0.0
    %2450 = vmatprep.subr.mxu0 0.0
    %2451 = vmatpush1.msra.mxu0 0.0
    %2452 = vmatprep.subr.mxu0 0.0
    %2453 = vmatpush1.msra.mxu0 0.0
    %2454 = vmatprep.subr.mxu0 0.0
    %2455 = vmatpush1.msra.mxu0 0.0
    %2456 = vmatprep.subr.mxu0 0.0
    %2457 = vmatpush1.msra.mxu0 0.0
    %2458 = vmatprep.subr.mxu0 0.0
    %2459 = vmatpush1.msra.mxu0 0.0
    %2460 = vmatprep.subr.mxu0 0.0
    %2461 = vmatpush1.msra.mxu0 0.0
    %2462 = vmatprep.subr.mxu0 0.0
    %2463 = vmatpush1.msra.mxu0 0.0
    %2464 = vmatprep.subr.mxu0 0.0
    %2465 = vmatpush1.msra.mxu0 0.0
    %2466 = vmatprep.subr.mxu0 0.0
    %2467 = vmatpush1.msra.mxu0 0.0
    %2468 = vmatprep.subr.mxu0 0.0
    %2469 = vmatpush1.msra.mxu0 0.0
    %2470 = vmatprep.mubr.f32.mxu0 0.0
    %2471 = vmatmul.mubr.f32.gmra.mrb[0].mxu0 %v2404
    %v2472 = vpop.f32.mrb[0].mxu0
    %v2473 = vadd.f32 0.0, %v2472
    %v2474 = vpop.f32.mrb[0].mxu0
    %v2475 = vadd.f32 0.0, %v2474
    %2476 = vdwg.mxu0
    %v2477 = vsel %vm75, %v2473, %v2475
    %v2478 = vld [vmem:[#allocation2 + $0x8] sm:$0xff]
    %v2479 = vadd.f32 %v2478, %v2477
    %v2480 = vtanh.pop %v2479
    %v2481 = vmul.f32 %v2480, %v79
    %v2482 = vadd.f32 %v2481, %v80
    %v2483 = vmul.f32 %v2482, %v2392
    %2485 = vrot.lane.b32.xlu0 %v2482, 64
    %v2486 = vpop.permute.xlu0 %2485
    %v2488 = vmul.f32 %v2482, %v2486
    %2490 = vrot.lane.b32.xlu0 %v2488, 32
    %v2491 = vpop.permute.xlu0 %2490
    %v2493 = vadd.f32 %v2483, %v2491
    %v2494 = vtanh.pop %v2493
    %2496 = vrot.lane.b32.xlu0 %v2494, 64
    %v2497 = vpop.permute.xlu0 %2496
    %v2499 = vmul.f32 %v2482, %v2497
    %2501 = vrot.lane.b32.xlu0 %v2499, 32
    %v2502 = vpop.permute.xlu0 %2501
    %2504 = vst.msk [vmem:[#allocation3 + $0x8] sm:$0xff] %vm239, %v2502
    %v2505 = vsel %vm239, %v2502, 0
    %2507 = vmatprep.subr.mxu0 %v2298
    %2508 = vmatpush1.msra.mxu0 %v2297
    %2509 = vmatprep.subr.mxu0 %v2300
    %2510 = vmatpush1.msra.mxu0 %v2299
    %2511 = vmatprep.subr.mxu0 %v2302
    %2512 = vmatpush1.msra.mxu0 %v2301
    %2513 = vmatprep.subr.mxu0 %v2304
    %2514 = vmatpush1.msra.mxu0 %v2303
    %2515 = vmatprep.subr.mxu0 0.0
    %2516 = vmatpush1.msra.mxu0 0.0
    %2517 = vmatprep.subr.mxu0 0.0
    %2518 = vmatpush1.msra.mxu0 0.0
    %2519 = vmatprep.subr.mxu0 0.0
    %2520 = vmatpush1.msra.mxu0 0.0
    %2521 = vmatprep.subr.mxu0 0.0
    %2522 = vmatpush1.msra.mxu0 0.0
    %2523 = vmatprep.subr.mxu0 0.0
    %2524 = vmatpush1.msra.mxu0 0.0
    %2525 = vmatprep.subr.mxu0 0.0
    %2526 = vmatpush1.msra.mxu0 0.0
    %2527 = vmatprep.subr.mxu0 0.0
    %2528 = vmatpush1.msra.mxu0 0.0
    %2529 = vmatprep.subr.mxu0 0.0
    %2530 = vmatpush1.msra.mxu0 0.0
    %2531 = vmatprep.subr.mxu0 0.0
    %2532 = vmatpush1.msra.mxu0 0.0
    %2533 = vmatprep.subr.mxu0 0.0
    %2534 = vmatpush1.msra.mxu0 0.0
    %2535 = vmatprep.subr.mxu0 0.0
    %2536 = vmatpush1.msra.mxu0 0.0
    %2537 = vmatprep.subr.mxu0 0.0
    %2538 = vmatpush1.msra.mxu0 0.0
    %2539 = vmatprep.subr.mxu0 0.0
    %2540 = vmatpush1.msra.mxu0 0.0
    %2541 = vmatprep.subr.mxu0 0.0
    %2542 = vmatpush1.msra.mxu0 0.0
    %2543 = vmatprep.subr.mxu0 0.0
    %2544 = vmatpush1.msra.mxu0 0.0
    %2545 = vmatprep.subr.mxu0 0.0
    %2546 = vmatpush1.msra.mxu0 0.0
    %2547 = vmatprep.subr.mxu0 0.0
    %2548 = vmatpush1.msra.mxu0 0.0
    %2549 = vmatprep.subr.mxu0 0.0
    %2550 = vmatpush1.msra.mxu0 0.0
    %2551 = vmatprep.subr.mxu0 0.0
    %2552 = vmatpush1.msra.mxu0 0.0
    %2553 = vmatprep.subr.mxu0 0.0
    %2554 = vmatpush1.msra.mxu0 0.0
    %2555 = vmatprep.subr.mxu0 0.0
    %2556 = vmatpush1.msra.mxu0 0.0
    %2557 = vmatprep.subr.mxu0 0.0
    %2558 = vmatpush1.msra.mxu0 0.0
    %2559 = vmatprep.subr.mxu0 0.0
    %2560 = vmatpush1.msra.mxu0 0.0
    %2561 = vmatprep.subr.mxu0 0.0
    %2562 = vmatpush1.msra.mxu0 0.0
    %2563 = vmatprep.subr.mxu0 0.0
    %2564 = vmatpush1.msra.mxu0 0.0
    %2565 = vmatprep.subr.mxu0 0.0
    %2566 = vmatpush1.msra.mxu0 0.0
    %2567 = vmatprep.subr.mxu0 0.0
    %2568 = vmatpush1.msra.mxu0 0.0
    %2569 = vmatprep.subr.mxu0 0.0
    %2570 = vmatpush1.msra.mxu0 0.0
    %2571 = vmatprep.mubr.f32.mxu0 0.0
    %2572 = vmatmul.mubr.f32.gmra.mrb[0].mxu0 %v2505
    %v2573 = vpop.f32.mrb[0].mxu0
    %v2574 = vadd.f32 0.0, %v2573
    %v2575 = vpop.f32.mrb[0].mxu0
    %v2576 = vadd.f32 0.0, %v2575
    %2577 = vdwg.mxu0
    %v2578 = vsel %vm75, %v2574, %v2576
    %v2579 = vld [vmem:[#allocation2 + $0x10] sm:$0xff]
    %v2580 = vadd.f32 %v2579, %v2578
    %v2581 = vtanh.pop %v2580
    %v2582 = vmul.f32 %v2581, %v79
    %v2583 = vadd.f32 %v2582, %v80
    %v2584 = vmul.f32 %v2583, %v2493
    %2586 = vrot.lane.b32.xlu0 %v2583, 64
    %v2587 = vpop.permute.xlu0 %2586
    %v2589 = vmul.f32 %v2583, %v2587
    %2591 = vrot.lane.b32.xlu0 %v2589, 32
    %v2592 = vpop.permute.xlu0 %2591
    %v2594 = vadd.f32 %v2584, %v2592
    %v2595 = vtanh.pop %v2594
    %2597 = vrot.lane.b32.xlu0 %v2595, 64
    %v2598 = vpop.permute.xlu0 %2597
    %v2600 = vmul.f32 %v2583, %v2598
    %2602 = vrot.lane.b32.xlu0 %v2600, 32
    %v2603 = vpop.permute.xlu0 %2602
    %2605 = vst.msk [vmem:[#allocation3 + $0x10] sm:$0xff] %vm239, %v2603
    %v2606 = vsel %vm239, %v2603, 0
    %2608 = vmatprep.subr.mxu0 %v2298
    %2609 = vmatpush1.msra.mxu0 %v2297
    %2610 = vmatprep.subr.mxu0 %v2300
    %2611 = vmatpush1.msra.mxu0 %v2299
    %2612 = vmatprep.subr.mxu0 %v2302
    %2613 = vmatpush1.msra.mxu0 %v2301
    %2614 = vmatprep.subr.mxu0 %v2304
    %2615 = vmatpush1.msra.mxu0 %v2303
    %2616 = vmatprep.subr.mxu0 0.0
    %2617 = vmatpush1.msra.mxu0 0.0
    %2618 = vmatprep.subr.mxu0 0.0
    %2619 = vmatpush1.msra.mxu0 0.0
    %2620 = vmatprep.subr.mxu0 0.0
    %2621 = vmatpush1.msra.mxu0 0.0
    %2622 = vmatprep.subr.mxu0 0.0
    %2623 = vmatpush1.msra.mxu0 0.0
    %2624 = vmatprep.subr.mxu0 0.0
    %2625 = vmatpush1.msra.mxu0 0.0
    %2626 = vmatprep.subr.mxu0 0.0
    %2627 = vmatpush1.msra.mxu0 0.0
    %2628 = vmatprep.subr.mxu0 0.0
    %2629 = vmatpush1.msra.mxu0 0.0
    %2630 = vmatprep.subr.mxu0 0.0
    %2631 = vmatpush1.msra.mxu0 0.0
    %2632 = vmatprep.subr.mxu0 0.0
    %2633 = vmatpush1.msra.mxu0 0.0
    %2634 = vmatprep.subr.mxu0 0.0
    %2635 = vmatpush1.msra.mxu0 0.0
    %2636 = vmatprep.subr.mxu0 0.0
    %2637 = vmatpush1.msra.mxu0 0.0
    %2638 = vmatprep.subr.mxu0 0.0
    %2639 = vmatpush1.msra.mxu0 0.0
    %2640 = vmatprep.subr.mxu0 0.0
    %2641 = vmatpush1.msra.mxu0 0.0
    %2642 = vmatprep.subr.mxu0 0.0
    %2643 = vmatpush1.msra.mxu0 0.0
    %2644 = vmatprep.subr.mxu0 0.0
    %2645 = vmatpush1.msra.mxu0 0.0
    %2646 = vmatprep.subr.mxu0 0.0
    %2647 = vmatpush1.msra.mxu0 0.0
    %2648 = vmatprep.subr.mxu0 0.0
    %2649 = vmatpush1.msra.mxu0 0.0
    %2650 = vmatprep.subr.mxu0 0.0
    %2651 = vmatpush1.msra.mxu0 0.0
    %2652 = vmatprep.subr.mxu0 0.0
    %2653 = vmatpush1.msra.mxu0 0.0
    %2654 = vmatprep.subr.mxu0 0.0
    %2655 = vmatpush1.msra.mxu0 0.0
    %2656 = vmatprep.subr.mxu0 0.0
    %2657 = vmatpush1.msra.mxu0 0.0
    %2658 = vmatprep.subr.mxu0 0.0
    %2659 = vmatpush1.msra.mxu0 0.0
    %2660 = vmatprep.subr.mxu0 0.0
    %2661 = vmatpush1.msra.mxu0 0.0
    %2662 = vmatprep.subr.mxu0 0.0
    %2663 = vmatpush1.msra.mxu0 0.0
    %2664 = vmatprep.subr.mxu0 0.0
    %2665 = vmatpush1.msra.mxu0 0.0
    %2666 = vmatprep.subr.mxu0 0.0
    %2667 = vmatpush1.msra.mxu0 0.0
    %2668 = vmatprep.subr.mxu0 0.0
    %2669 = vmatpush1.msra.mxu0 0.0
    %2670 = vmatprep.subr.mxu0 0.0
    %2671 = vmatpush1.msra.mxu0 0.0
    %2672 = vmatprep.mubr.f32.mxu0 0.0
    %2673 = vmatmul.mubr.f32.gmra.mrb[0].mxu0 %v2606
    %v2674 = vpop.f32.mrb[0].mxu0
    %v2675 = vadd.f32 0.0, %v2674
    %v2676 = vpop.f32.mrb[0].mxu0
    %v2677 = vadd.f32 0.0, %v2676
    %2678 = vdwg.mxu0
    %v2679 = vsel %vm75, %v2675, %v2677
    %v2680 = vld [vmem:[#allocation2 + $0x18] sm:$0xff]
    %v2681 = vadd.f32 %v2680, %v2679
    %v2682 = vtanh.pop %v2681
    %v2683 = vmul.f32 %v2682, %v79
    %v2684 = vadd.f32 %v2683, %v80
    %v2685 = vmul.f32 %v2684, %v2594
    %2687 = vrot.lane.b32.xlu0 %v2684, 64
    %v2688 = vpop.permute.xlu0 %2687
    %v2690 = vmul.f32 %v2684, %v2688
    %2692 = vrot.lane.b32.xlu0 %v2690, 32
    %v2693 = vpop.permute.xlu0 %2692
    %v2695 = vadd.f32 %v2685, %v2693
    %v2696 = vtanh.pop %v2695
    %2698 = vrot.lane.b32.xlu0 %v2696, 64
    %v2699 = vpop.permute.xlu0 %2698
    %v2701 = vmul.f32 %v2684, %v2699
    %2703 = vrot.lane.b32.xlu0 %v2701, 32
    %v2704 = vpop.permute.xlu0 %2703
    %2706 = vst.msk [vmem:[#allocation3 + $0x18] sm:$0xff] %vm239, %v2704
    %v2707 = vsel %vm239, %v2704, 0
    %2709 = vmatprep.subr.mxu0 %v2298
    %2710 = vmatpush1.msra.mxu0 %v2297
    %2711 = vmatprep.subr.mxu0 %v2300
    %2712 = vmatpush1.msra.mxu0 %v2299
    %2713 = vmatprep.subr.mxu0 %v2302
    %2714 = vmatpush1.msra.mxu0 %v2301
    %2715 = vmatprep.subr.mxu0 %v2304
    %2716 = vmatpush1.msra.mxu0 %v2303
    %2717 = vmatprep.subr.mxu0 0.0
    %2718 = vmatpush1.msra.mxu0 0.0
    %2719 = vmatprep.subr.mxu0 0.0
    %2720 = vmatpush1.msra.mxu0 0.0
    %2721 = vmatprep.subr.mxu0 0.0
    %2722 = vmatpush1.msra.mxu0 0.0
    %2723 = vmatprep.subr.mxu0 0.0
    %2724 = vmatpush1.msra.mxu0 0.0
    %2725 = vmatprep.subr.mxu0 0.0
    %2726 = vmatpush1.msra.mxu0 0.0
    %2727 = vmatprep.subr.mxu0 0.0
    %2728 = vmatpush1.msra.mxu0 0.0
    %2729 = vmatprep.subr.mxu0 0.0
    %2730 = vmatpush1.msra.mxu0 0.0
    %2731 = vmatprep.subr.mxu0 0.0
    %2732 = vmatpush1.msra.mxu0 0.0
    %2733 = vmatprep.subr.mxu0 0.0
    %2734 = vmatpush1.msra.mxu0 0.0
    %2735 = vmatprep.subr.mxu0 0.0
    %2736 = vmatpush1.msra.mxu0 0.0
    %2737 = vmatprep.subr.mxu0 0.0
    %2738 = vmatpush1.msra.mxu0 0.0
    %2739 = vmatprep.subr.mxu0 0.0
    %2740 = vmatpush1.msra.mxu0 0.0
    %2741 = vmatprep.subr.mxu0 0.0
    %2742 = vmatpush1.msra.mxu0 0.0
    %2743 = vmatprep.subr.mxu0 0.0
    %2744 = vmatpush1.msra.mxu0 0.0
    %2745 = vmatprep.subr.mxu0 0.0
    %2746 = vmatpush1.msra.mxu0 0.0
    %2747 = vmatprep.subr.mxu0 0.0
    %2748 = vmatpush1.msra.mxu0 0.0
    %2749 = vmatprep.subr.mxu0 0.0
    %2750 = vmatpush1.msra.mxu0 0.0
    %2751 = vmatprep.subr.mxu0 0.0
    %2752 = vmatpush1.msra.mxu0 0.0
    %2753 = vmatprep.subr.mxu0 0.0
    %2754 = vmatpush1.msra.mxu0 0.0
    %2755 = vmatprep.subr.mxu0 0.0
    %2756 = vmatpush1.msra.mxu0 0.0
    %2757 = vmatprep.subr.mxu0 0.0
    %2758 = vmatpush1.msra.mxu0 0.0
    %2759 = vmatprep.subr.mxu0 0.0
    %2760 = vmatpush1.msra.mxu0 0.0
    %2761 = vmatprep.subr.mxu0 0.0
    %2762 = vmatpush1.msra.mxu0 0.0
    %2763 = vmatprep.subr.mxu0 0.0
    %2764 = vmatpush1.msra.mxu0 0.0
    %2765 = vmatprep.subr.mxu0 0.0
    %2766 = vmatpush1.msra.mxu0 0.0
    %2767 = vmatprep.subr.mxu0 0.0
    %2768 = vmatpush1.msra.mxu0 0.0
    %2769 = vmatprep.subr.mxu0 0.0
    %2770 = vmatpush1.msra.mxu0 0.0
    %2771 = vmatprep.subr.mxu0 0.0
    %2772 = vmatpush1.msra.mxu0 0.0
    %2773 = vmatprep.mubr.f32.mxu0 0.0
    %2774 = vmatmul.mubr.f32.gmra.mrb[0].mxu0 %v2707
    %v2775 = vpop.f32.mrb[0].mxu0
    %v2776 = vadd.f32 0.0, %v2775
    %v2777 = vpop.f32.mrb[0].mxu0
    %v2778 = vadd.f32 0.0, %v2777
    %2779 = vdwg.mxu0
    %v2780 = vsel %vm75, %v2776, %v2778
    %v2781 = vld [vmem:[#allocation2 + $0x20] sm:$0xff]
    %v2782 = vadd.f32 %v2781, %v2780
    %v2783 = vtanh.pop %v2782
    %v2784 = vmul.f32 %v2783, %v79
    %v2785 = vadd.f32 %v2784, %v80
    %v2786 = vmul.f32 %v2785, %v2695
    %2788 = vrot.lane.b32.xlu0 %v2785, 64
    %v2789 = vpop.permute.xlu0 %2788
    %v2791 = vmul.f32 %v2785, %v2789
    %2793 = vrot.lane.b32.xlu0 %v2791, 32
    %v2794 = vpop.permute.xlu0 %2793
    %v2796 = vadd.f32 %v2786, %v2794
    %v2797 = vtanh.pop %v2796
    %2799 = vrot.lane.b32.xlu0 %v2797, 64
    %v2800 = vpop.permute.xlu0 %2799
    %v2802 = vmul.f32 %v2785, %v2800
    %2804 = vrot.lane.b32.xlu0 %v2802, 32
    %v2805 = vpop.permute.xlu0 %2804
    %2807 = vst.msk [vmem:[#allocation3 + $0x20] sm:$0xff] %vm239, %v2805
    %v2808 = vsel %vm239, %v2805, 0
    %2810 = vmatprep.subr.mxu0 %v2298
    %2811 = vmatpush1.msra.mxu0 %v2297
    %2812 = vmatprep.subr.mxu0 %v2300
    %2813 = vmatpush1.msra.mxu0 %v2299
    %2814 = vmatprep.subr.mxu0 %v2302
    %2815 = vmatpush1.msra.mxu0 %v2301
    %2816 = vmatprep.subr.mxu0 %v2304
    %2817 = vmatpush1.msra.mxu0 %v2303
    %2818 = vmatprep.subr.mxu0 0.0
    %2819 = vmatpush1.msra.mxu0 0.0
    %2820 = vmatprep.subr.mxu0 0.0
    %2821 = vmatpush1.msra.mxu0 0.0
    %2822 = vmatprep.subr.mxu0 0.0
    %2823 = vmatpush1.msra.mxu0 0.0
    %2824 = vmatprep.subr.mxu0 0.0
    %2825 = vmatpush1.msra.mxu0 0.0
    %2826 = vmatprep.subr.mxu0 0.0
    %2827 = vmatpush1.msra.mxu0 0.0
    %2828 = vmatprep.subr.mxu0 0.0
    %2829 = vmatpush1.msra.mxu0 0.0
    %2830 = vmatprep.subr.mxu0 0.0
    %2831 = vmatpush1.msra.mxu0 0.0
    %2832 = vmatprep.subr.mxu0 0.0
    %2833 = vmatpush1.msra.mxu0 0.0
    %2834 = vmatprep.subr.mxu0 0.0
    %2835 = vmatpush1.msra.mxu0 0.0
    %2836 = vmatprep.subr.mxu0 0.0
    %2837 = vmatpush1.msra.mxu0 0.0
    %2838 = vmatprep.subr.mxu0 0.0
    %2839 = vmatpush1.msra.mxu0 0.0
    %2840 = vmatprep.subr.mxu0 0.0
    %2841 = vmatpush1.msra.mxu0 0.0
    %2842 = vmatprep.subr.mxu0 0.0
    %2843 = vmatpush1.msra.mxu0 0.0
    %2844 = vmatprep.subr.mxu0 0.0
    %2845 = vmatpush1.msra.mxu0 0.0
    %2846 = vmatprep.subr.mxu0 0.0
    %2847 = vmatpush1.msra.mxu0 0.0
    %2848 = vmatprep.subr.mxu0 0.0
    %2849 = vmatpush1.msra.mxu0 0.0
    %2850 = vmatprep.subr.mxu0 0.0
    %2851 = vmatpush1.msra.mxu0 0.0
    %2852 = vmatprep.subr.mxu0 0.0
    %2853 = vmatpush1.msra.mxu0 0.0
    %2854 = vmatprep.subr.mxu0 0.0
    %2855 = vmatpush1.msra.mxu0 0.0
    %2856 = vmatprep.subr.mxu0 0.0
    %2857 = vmatpush1.msra.mxu0 0.0
    %2858 = vmatprep.subr.mxu0 0.0
    %2859 = vmatpush1.msra.mxu0 0.0
    %2860 = vmatprep.subr.mxu0 0.0
    %2861 = vmatpush1.msra.mxu0 0.0
    %2862 = vmatprep.subr.mxu0 0.0
    %2863 = vmatpush1.msra.mxu0 0.0
    %2864 = vmatprep.subr.mxu0 0.0
    %2865 = vmatpush1.msra.mxu0 0.0
    %2866 = vmatprep.subr.mxu0 0.0
    %2867 = vmatpush1.msra.mxu0 0.0
    %2868 = vmatprep.subr.mxu0 0.0
    %2869 = vmatpush1.msra.mxu0 0.0
    %2870 = vmatprep.subr.mxu0 0.0
    %2871 = vmatpush1.msra.mxu0 0.0
    %2872 = vmatprep.subr.mxu0 0.0
    %2873 = vmatpush1.msra.mxu0 0.0
    %2874 = vmatprep.mubr.f32.mxu0 0.0
    %2875 = vmatmul.mubr.f32.gmra.mrb[0].mxu0 %v2808
    %v2876 = vpop.f32.mrb[0].mxu0
    %v2877 = vadd.f32 0.0, %v2876
    %v2878 = vpop.f32.mrb[0].mxu0
    %v2879 = vadd.f32 0.0, %v2878
    %2880 = vdwg.mxu0
    %v2881 = vsel %vm75, %v2877, %v2879
    %v2882 = vld [vmem:[#allocation2 + $0x28] sm:$0xff]
    %v2883 = vadd.f32 %v2882, %v2881
    %v2884 = vtanh.pop %v2883
    %v2885 = vmul.f32 %v2884, %v79
    %v2886 = vadd.f32 %v2885, %v80
    %v2887 = vmul.f32 %v2886, %v2796
    %2889 = vrot.lane.b32.xlu0 %v2886, 64
    %v2890 = vpop.permute.xlu0 %2889
    %v2892 = vmul.f32 %v2886, %v2890
    %2894 = vrot.lane.b32.xlu0 %v2892, 32
    %v2895 = vpop.permute.xlu0 %2894
    %v2897 = vadd.f32 %v2887, %v2895
    %v2898 = vtanh.pop %v2897
    %2900 = vrot.lane.b32.xlu0 %v2898, 64
    %v2901 = vpop.permute.xlu0 %2900
    %v2903 = vmul.f32 %v2886, %v2901
    %2905 = vrot.lane.b32.xlu0 %v2903, 32
    %v2906 = vpop.permute.xlu0 %2905
    %2908 = vst.msk [vmem:[#allocation3 + $0x28] sm:$0xff] %vm239, %v2906
    %v2909 = vsel %vm239, %v2906, 0
    %2911 = vmatprep.subr.mxu0 %v2298
    %2912 = vmatpush1.msra.mxu0 %v2297
    %2913 = vmatprep.subr.mxu0 %v2300
    %2914 = vmatpush1.msra.mxu0 %v2299
    %2915 = vmatprep.subr.mxu0 %v2302
    %2916 = vmatpush1.msra.mxu0 %v2301
    %2917 = vmatprep.subr.mxu0 %v2304
    %2918 = vmatpush1.msra.mxu0 %v2303
    %2919 = vmatprep.subr.mxu0 0.0
    %2920 = vmatpush1.msra.mxu0 0.0
    %2921 = vmatprep.subr.mxu0 0.0
    %2922 = vmatpush1.msra.mxu0 0.0
    %2923 = vmatprep.subr.mxu0 0.0
    %2924 = vmatpush1.msra.mxu0 0.0
    %2925 = vmatprep.subr.mxu0 0.0
    %2926 = vmatpush1.msra.mxu0 0.0
    %2927 = vmatprep.subr.mxu0 0.0
    %2928 = vmatpush1.msra.mxu0 0.0
    %2929 = vmatprep.subr.mxu0 0.0
    %2930 = vmatpush1.msra.mxu0 0.0
    %2931 = vmatprep.subr.mxu0 0.0
    %2932 = vmatpush1.msra.mxu0 0.0
    %2933 = vmatprep.subr.mxu0 0.0
    %2934 = vmatpush1.msra.mxu0 0.0
    %2935 = vmatprep.subr.mxu0 0.0
    %2936 = vmatpush1.msra.mxu0 0.0
    %2937 = vmatprep.subr.mxu0 0.0
    %2938 = vmatpush1.msra.mxu0 0.0
    %2939 = vmatprep.subr.mxu0 0.0
    %2940 = vmatpush1.msra.mxu0 0.0
    %2941 = vmatprep.subr.mxu0 0.0
    %2942 = vmatpush1.msra.mxu0 0.0
    %2943 = vmatprep.subr.mxu0 0.0
    %2944 = vmatpush1.msra.mxu0 0.0
    %2945 = vmatprep.subr.mxu0 0.0
    %2946 = vmatpush1.msra.mxu0 0.0
    %2947 = vmatprep.subr.mxu0 0.0
    %2948 = vmatpush1.msra.mxu0 0.0
    %2949 = vmatprep.subr.mxu0 0.0
    %2950 = vmatpush1.msra.mxu0 0.0
    %2951 = vmatprep.subr.mxu0 0.0
    %2952 = vmatpush1.msra.mxu0 0.0
    %2953 = vmatprep.subr.mxu0 0.0
    %2954 = vmatpush1.msra.mxu0 0.0
    %2955 = vmatprep.subr.mxu0 0.0
    %2956 = vmatpush1.msra.mxu0 0.0
    %2957 = vmatprep.subr.mxu0 0.0
    %2958 = vmatpush1.msra.mxu0 0.0
    %2959 = vmatprep.subr.mxu0 0.0
    %2960 = vmatpush1.msra.mxu0 0.0
    %2961 = vmatprep.subr.mxu0 0.0
    %2962 = vmatpush1.msra.mxu0 0.0
    %2963 = vmatprep.subr.mxu0 0.0
    %2964 = vmatpush1.msra.mxu0 0.0
    %2965 = vmatprep.subr.mxu0 0.0
    %2966 = vmatpush1.msra.mxu0 0.0
    %2967 = vmatprep.subr.mxu0 0.0
    %2968 = vmatpush1.msra.mxu0 0.0
    %2969 = vmatprep.subr.mxu0 0.0
    %2970 = vmatpush1.msra.mxu0 0.0
    %2971 = vmatprep.subr.mxu0 0.0
    %2972 = vmatpush1.msra.mxu0 0.0
    %2973 = vmatprep.subr.mxu0 0.0
    %2974 = vmatpush1.msra.mxu0 0.0
    %2975 = vmatprep.mubr.f32.mxu0 0.0
    %2976 = vmatmul.mubr.f32.gmra.mrb[0].mxu0 %v2909
    %v2977 = vpop.f32.mrb[0].mxu0
    %v2978 = vadd.f32 0.0, %v2977
    %v2979 = vpop.f32.mrb[0].mxu0
    %v2980 = vadd.f32 0.0, %v2979
    %2981 = vdwg.mxu0
    %v2982 = vsel %vm75, %v2978, %v2980
    %v2983 = vld [vmem:[#allocation2 + $0x30] sm:$0xff]
    %v2984 = vadd.f32 %v2983, %v2982
    %v2985 = vtanh.pop %v2984
    %v2986 = vmul.f32 %v2985, %v79
    %v2987 = vadd.f32 %v2986, %v80
    %v2988 = vmul.f32 %v2987, %v2897
    %2990 = vrot.lane.b32.xlu0 %v2987, 64
    %v2991 = vpop.permute.xlu0 %2990
    %v2993 = vmul.f32 %v2987, %v2991
    %2995 = vrot.lane.b32.xlu0 %v2993, 32
    %v2996 = vpop.permute.xlu0 %2995
    %v2998 = vadd.f32 %v2988, %v2996
    %v2999 = vtanh.pop %v2998
    %3001 = vrot.lane.b32.xlu0 %v2999, 64
    %v3002 = vpop.permute.xlu0 %3001
    %v3004 = vmul.f32 %v2987, %v3002
    %3006 = vrot.lane.b32.xlu0 %v3004, 32
    %v3007 = vpop.permute.xlu0 %3006
    %3009 = vst.msk [vmem:[#allocation3 + $0x30] sm:$0xff] %vm239, %v3007
    %v3010 = vsel %vm239, %v3007, 0
    %3012 = vmatprep.subr.mxu0 %v2298
    %3013 = vmatpush1.msra.mxu0 %v2297
    %3014 = vmatprep.subr.mxu0 %v2300
    %3015 = vmatpush1.msra.mxu0 %v2299
    %3016 = vmatprep.subr.mxu0 %v2302
    %3017 = vmatpush1.msra.mxu0 %v2301
    %3018 = vmatprep.subr.mxu0 %v2304
    %3019 = vmatpush1.msra.mxu0 %v2303
    %3020 = vmatprep.subr.mxu0 0.0
    %3021 = vmatpush1.msra.mxu0 0.0
    %3022 = vmatprep.subr.mxu0 0.0
    %3023 = vmatpush1.msra.mxu0 0.0
    %3024 = vmatprep.subr.mxu0 0.0
    %3025 = vmatpush1.msra.mxu0 0.0
    %3026 = vmatprep.subr.mxu0 0.0
    %3027 = vmatpush1.msra.mxu0 0.0
    %3028 = vmatprep.subr.mxu0 0.0
    %3029 = vmatpush1.msra.mxu0 0.0
    %3030 = vmatprep.subr.mxu0 0.0
    %3031 = vmatpush1.msra.mxu0 0.0
    %3032 = vmatprep.subr.mxu0 0.0
    %3033 = vmatpush1.msra.mxu0 0.0
    %3034 = vmatprep.subr.mxu0 0.0
    %3035 = vmatpush1.msra.mxu0 0.0
    %3036 = vmatprep.subr.mxu0 0.0
    %3037 = vmatpush1.msra.mxu0 0.0
    %3038 = vmatprep.subr.mxu0 0.0
    %3039 = vmatpush1.msra.mxu0 0.0
    %3040 = vmatprep.subr.mxu0 0.0
    %3041 = vmatpush1.msra.mxu0 0.0
    %3042 = vmatprep.subr.mxu0 0.0
    %3043 = vmatpush1.msra.mxu0 0.0
    %3044 = vmatprep.subr.mxu0 0.0
    %3045 = vmatpush1.msra.mxu0 0.0
    %3046 = vmatprep.subr.mxu0 0.0
    %3047 = vmatpush1.msra.mxu0 0.0
    %3048 = vmatprep.subr.mxu0 0.0
    %3049 = vmatpush1.msra.mxu0 0.0
    %3050 = vmatprep.subr.mxu0 0.0
    %3051 = vmatpush1.msra.mxu0 0.0
    %3052 = vmatprep.subr.mxu0 0.0
    %3053 = vmatpush1.msra.mxu0 0.0
    %3054 = vmatprep.subr.mxu0 0.0
    %3055 = vmatpush1.msra.mxu0 0.0
    %3056 = vmatprep.subr.mxu0 0.0
    %3057 = vmatpush1.msra.mxu0 0.0
    %3058 = vmatprep.subr.mxu0 0.0
    %3059 = vmatpush1.msra.mxu0 0.0
    %3060 = vmatprep.subr.mxu0 0.0
    %3061 = vmatpush1.msra.mxu0 0.0
    %3062 = vmatprep.subr.mxu0 0.0
    %3063 = vmatpush1.msra.mxu0 0.0
    %3064 = vmatprep.subr.mxu0 0.0
    %3065 = vmatpush1.msra.mxu0 0.0
    %3066 = vmatprep.subr.mxu0 0.0
    %3067 = vmatpush1.msra.mxu0 0.0
    %3068 = vmatprep.subr.mxu0 0.0
    %3069 = vmatpush1.msra.mxu0 0.0
    %3070 = vmatprep.subr.mxu0 0.0
    %3071 = vmatpush1.msra.mxu0 0.0
    %3072 = vmatprep.subr.mxu0 0.0
    %3073 = vmatpush1.msra.mxu0 0.0
    %3074 = vmatprep.subr.mxu0 0.0
    %3075 = vmatpush1.msra.mxu0 0.0
    %3076 = vmatprep.mubr.f32.mxu0 0.0
    %3077 = vmatmul.mubr.f32.gmra.mrb[0].mxu0 %v3010
    %v3078 = vpop.f32.mrb[0].mxu0
    %v3079 = vadd.f32 0.0, %v3078
    %v3080 = vpop.f32.mrb[0].mxu0
    %v3081 = vadd.f32 0.0, %v3080
    %3082 = vdwg.mxu0
    %v3083 = vsel %vm75, %v3079, %v3081
    %v3084 = vld [vmem:[#allocation2 + $0x38] sm:$0xff]
    %v3085 = vadd.f32 %v3084, %v3083
    %v3086 = vtanh.pop %v3085
    %v3087 = vmul.f32 %v3086, %v79
    %v3088 = vadd.f32 %v3087, %v80
    %v3089 = vmul.f32 %v3088, %v2998
    %3091 = vrot.lane.b32.xlu0 %v3088, 64
    %v3092 = vpop.permute.xlu0 %3091
    %v3094 = vmul.f32 %v3088, %v3092
    %3096 = vrot.lane.b32.xlu0 %v3094, 32
    %v3097 = vpop.permute.xlu0 %3096
    %v3099 = vadd.f32 %v3089, %v3097
    %v3100 = vtanh.pop %v3099
    %3102 = vrot.lane.b32.xlu0 %v3100, 64
    %v3103 = vpop.permute.xlu0 %3102
    %v3105 = vmul.f32 %v3088, %v3103
    %3107 = vrot.lane.b32.xlu0 %v3105, 32
    %v3108 = vpop.permute.xlu0 %3107
    %3110 = vst.msk [vmem:[#allocation3 + $0x38] sm:$0xff] %vm239, %v3108
    %v3111 = vld [vmem:[#allocation3] sm:$0xf]
    %3112 = vst.msk [vmem:[#allocation4] sm:$0xf] %vm1050, %v3111
    %v3113 = vld [vmem:[#allocation3 + $0x3c] sm:$0xf]
    %3115 = vrot.lane.b32.xlu0 %v3113, 32
    %v3116 = vpop.permute.xlu0 %3115
    %3118 = vst.msk [vmem:[#allocation4] sm:$0xf] %vm1057, %v3116
    %v3119 = vld [vmem:[#allocation3 + $0x8] sm:$0xf]
    %3120 = vst.msk [vmem:[#allocation4 + $0x4] sm:$0xf] %vm1050, %v3119
    %v3121 = vld [vmem:[#allocation3 + $0x34] sm:$0xf]
    %3123 = vrot.lane.b32.xlu0 %v3121, 32
    %v3124 = vpop.permute.xlu0 %3123
    %3126 = vst.msk [vmem:[#allocation4 + $0x4] sm:$0xf] %vm1057, %v3124
    %v3127 = vld [vmem:[#allocation3 + $0x10] sm:$0xf]
    %3128 = vst.msk [vmem:[#allocation4 + $0x8] sm:$0xf] %vm1050, %v3127
    %v3129 = vld [vmem:[#allocation3 + $0x2c] sm:$0xf]
    %3131 = vrot.lane.b32.xlu0 %v3129, 32
    %v3132 = vpop.permute.xlu0 %3131
    %3134 = vst.msk [vmem:[#allocation4 + $0x8] sm:$0xf] %vm1057, %v3132
    %v3135 = vld [vmem:[#allocation3 + $0x18] sm:$0xf]
    %3136 = vst.msk [vmem:[#allocation4 + $0xc] sm:$0xf] %vm1050, %v3135
    %v3137 = vld [vmem:[#allocation3 + $0x24] sm:$0xf]
    %3139 = vrot.lane.b32.xlu0 %v3137, 32
    %v3140 = vpop.permute.xlu0 %3139
    %3142 = vst.msk [vmem:[#allocation4 + $0xc] sm:$0xf] %vm1057, %v3140
    %v3143 = vld [vmem:[#allocation3 + $0x20] sm:$0xf]
    %3144 = vst.msk [vmem:[#allocation4 + $0x10] sm:$0xf] %vm1050, %v3143
    %v3145 = vld [vmem:[#allocation3 + $0x1c] sm:$0xf]
    %3147 = vrot.lane.b32.xlu0 %v3145, 32
    %v3148 = vpop.permute.xlu0 %3147
    %3150 = vst.msk [vmem:[#allocation4 + $0x10] sm:$0xf] %vm1057, %v3148
    %v3151 = vld [vmem:[#allocation3 + $0x28] sm:$0xf]
    %3152 = vst.msk [vmem:[#allocation4 + $0x14] sm:$0xf] %vm1050, %v3151
    %v3153 = vld [vmem:[#allocation3 + $0x14] sm:$0xf]
    %3155 = vrot.lane.b32.xlu0 %v3153, 32
    %v3156 = vpop.permute.xlu0 %3155
    %3158 = vst.msk [vmem:[#allocation4 + $0x14] sm:$0xf] %vm1057, %v3156
    %v3159 = vld [vmem:[#allocation3 + $0x30] sm:$0xf]
    %3160 = vst.msk [vmem:[#allocation4 + $0x18] sm:$0xf] %vm1050, %v3159
    %v3161 = vld [vmem:[#allocation3 + $0xc] sm:$0xf]
    %3163 = vrot.lane.b32.xlu0 %v3161, 32
    %v3164 = vpop.permute.xlu0 %3163
    %3166 = vst.msk [vmem:[#allocation4 + $0x18] sm:$0xf] %vm1057, %v3164
    %v3167 = vld [vmem:[#allocation3 + $0x38] sm:$0xf]
    %3168 = vst.msk [vmem:[#allocation4 + $0x1c] sm:$0xf] %vm1050, %v3167
    %v3169 = vld [vmem:[#allocation3 + $0x4] sm:$0xf]
    %3171 = vrot.lane.b32.xlu0 %v3169, 32
    %v3172 = vpop.permute.xlu0 %3171
    %3174 = vst.msk [vmem:[#allocation4 + $0x1c] sm:$0xf] %vm1057, %v3172
    %v3175 = vld [vmem:[#allocation4] sm:$0xff]
    %v3176 = vld [vmem:[#allocation4 + $0x8] sm:$0xff]
    %v3177 = vld [vmem:[#allocation4 + $0x10] sm:$0xff]
    %v3178 = vld [vmem:[#allocation4 + $0x18] sm:$0xff]
    %v3179 = vld [vmem:[%s4] sm:$0x1]
    %v3181 = vlaneseq
    %v3182 = vshrl.u32 %v3181, 7
    %v3183 = vsub.s32 0, %v3182
    %v3184 = vrot.slane %v3179, %v3183
    %v3186 = vmul.f32 %v3175, %v3184
    %v3187 = vmul.f32 %v3176, %v3184
    %v3188 = vmul.f32 %v3177, %v3184
    %v3189 = vmul.f32 %v3178, %v3184
    %v3190 = vsel %vm113, %v3186, 0.0
    %3191 = vadd.xlane.f32.xlu0 %v3190
    %v3192 = vpop.xlane.xlu0 %3191
    %v3193 = vsel %vm113, %v3187, 0.0
    %3194 = vadd.xlane.f32.xlu0 %v3193
    %v3195 = vpop.xlane.xlu0 %3194
    %v3196 = vsel %vm113, %v3188, 0.0
    %3197 = vadd.xlane.f32.xlu0 %v3196
    %v3198 = vpop.xlane.xlu0 %3197
    %v3199 = vsel %vm113, %v3189, 0.0
    %3200 = vadd.xlane.f32.xlu0 %v3199
    %v3201 = vpop.xlane.xlu0 %3200
    %v3202 = vld [vmem:[#allocation5] sm:$0x1]
    %v3204 = vlaneseq
    %v3205 = vshrl.u32 %v3204, 7
    %v3206 = vsub.s32 0, %v3205
    %v3207 = vrot.slane %v3202, %v3206
    %v3209 = vadd.f32 %v3192, %v3207
    %v3210 = vadd.f32 %v3195, %v3207
    %v3211 = vadd.f32 %v3198, %v3207
    %v3212 = vadd.f32 %v3201, %v3207
    %v3214 = vrot.slane %v3209, 4
    %v3216 = vmax.f32 %v3209, %v3214
    %v3217 = vmax.f32 %v3216, %v3210
    %v3219 = vrot.slane %v3210, 4
    %v3221 = vmax.f32 %v3217, %v3219
    %v3222 = vmax.f32 %v3221, %v3211
    %v3224 = vrot.slane %v3211, 4
    %v3226 = vmax.f32 %v3222, %v3224
    %v3227 = vmax.f32 %v3226, %v3212
    %v3229 = vrot.slane %v3212, 4
    %v3231 = vmax.f32 %v3227, %v3229
    %v3232 = vsub.f32 %v3209, %v3231
    %v3233 = vmul.f32 %v3232, 1.442695
    %v3234 = vpow.pop %v3233
    %v3236 = vrot.slane %v3231, 4
    %v3238 = vsub.f32 %v3209, %v3236
    %v3239 = vmul.f32 %v3238, 1.442695
    %v3240 = vpow.pop %v3239
    %v3241 = vsub.f32 %v3210, %v3231
    %v3242 = vmul.f32 %v3241, 1.442695
    %v3243 = vpow.pop %v3242
    %v3244 = vsub.f32 %v3210, %v3236
    %v3245 = vmul.f32 %v3244, 1.442695
    %v3246 = vpow.pop %v3245
    %v3247 = vsub.f32 %v3211, %v3231
    %v3248 = vmul.f32 %v3247, 1.442695
    %v3249 = vpow.pop %v3248
    %v3250 = vsub.f32 %v3211, %v3236
    %v3251 = vmul.f32 %v3250, 1.442695
    %v3252 = vpow.pop %v3251
    %v3253 = vsub.f32 %v3212, %v3231
    %v3254 = vmul.f32 %v3253, 1.442695
    %v3255 = vpow.pop %v3254
    %v3256 = vsub.f32 %v3212, %v3236
    %v3257 = vmul.f32 %v3256, 1.442695
    %v3258 = vpow.pop %v3257
    %v3260 = vrot.slane %v3240, 4
    %v3262 = vadd.f32 %v3234, %v3260
    %v3263 = vadd.f32 %v3262, %v3243
    %v3265 = vrot.slane %v3246, 4
    %v3267 = vadd.f32 %v3263, %v3265
    %v3268 = vadd.f32 %v3267, %v3249
    %v3270 = vrot.slane %v3252, 4
    %v3272 = vadd.f32 %v3268, %v3270
    %v3273 = vadd.f32 %v3272, %v3255
    %v3275 = vrot.slane %v3258, 4
    %v3277 = vadd.f32 %v3273, %v3275
    %3279 = vset.pattern.permute.xlu0 0
    %3280 = vperm.xlu0 %3279, %v3234
    %v3281 = vpop.permute.xlu0 %3280
    %v3283 = vmul.f32 %v3281, %v3175
    %v3284 = vadd.f32 %v3283, 0.0
    %3285 = vset.pattern.permute.xlu0 0
    %3286 = vperm.xlu0 %3285, %v3240
    %v3287 = vpop.permute.xlu0 %3286
    %v3289 = vmul.f32 %v3287, %v3175
    %v3291 = vrot.slane %v3289, 4
    %v3293 = vadd.f32 %v3284, %v3291
    %3295 = vset.pattern.permute.xlu0 0
    %3296 = vperm.xlu0 %3295, %v3243
    %v3297 = vpop.permute.xlu0 %3296
    %v3299 = vmul.f32 %v3297, %v3176
    %v3300 = vadd.f32 %v3293, %v3299
    %3301 = vset.pattern.permute.xlu0 0
    %3302 = vperm.xlu0 %3301, %v3246
    %v3303 = vpop.permute.xlu0 %3302
    %v3305 = vmul.f32 %v3303, %v3176
    %v3307 = vrot.slane %v3305, 4
    %v3309 = vadd.f32 %v3300, %v3307
    %3311 = vset.pattern.permute.xlu0 0
    %3312 = vperm.xlu0 %3311, %v3249
    %v3313 = vpop.permute.xlu0 %3312
    %v3315 = vmul.f32 %v3313, %v3177
    %v3316 = vadd.f32 %v3309, %v3315
    %3317 = vset.pattern.permute.xlu0 0
    %3318 = vperm.xlu0 %3317, %v3252
    %v3319 = vpop.permute.xlu0 %3318
    %v3321 = vmul.f32 %v3319, %v3177
    %v3323 = vrot.slane %v3321, 4
    %v3325 = vadd.f32 %v3316, %v3323
    %3327 = vset.pattern.permute.xlu0 0
    %3328 = vperm.xlu0 %3327, %v3255
    %v3329 = vpop.permute.xlu0 %3328
    %v3331 = vmul.f32 %v3329, %v3178
    %v3332 = vadd.f32 %v3325, %v3331
    %3333 = vset.pattern.permute.xlu0 0
    %3334 = vperm.xlu0 %3333, %v3258
    %v3335 = vpop.permute.xlu0 %3334
    %v3337 = vmul.f32 %v3335, %v3178
    %v3339 = vrot.slane %v3337, 4
    %v3341 = vadd.f32 %v3332, %v3339
    %3343 = vset.pattern.permute.xlu0 0
    %3344 = vperm.xlu0 %3343, %v3277
    %v3345 = vpop.permute.xlu0 %3344
    %v3347 = vrcp.pop %v3345
    %v3348 = vmul.f32 %v3341, %v3347
    %v3349 = vld [vmem:[%s6] sm:$0xff]
    %v3350 = vld [vmem:[%s6 + $0x8] sm:$0xff]
    %v3351 = vld [vmem:[%s6 + $0x10] sm:$0xff]
    %v3352 = vld [vmem:[%s6 + $0x18] sm:$0xff]
    %v3353 = vld [vmem:[%s6 + $0x20] sm:$0xff]
    %v3354 = vld [vmem:[%s6 + $0x28] sm:$0xff]
    %v3355 = vld [vmem:[%s6 + $0x30] sm:$0xff]
    %v3356 = vld [vmem:[%s6 + $0x38] sm:$0xff]
    %v3357 = vld [vmem:[%s7] sm:$0x1]
    %v3359 = vlaneseq
    %v3360 = vshrl.u32 %v3359, 7
    %v3361 = vsub.s32 0, %v3360
    %v3362 = vrot.slane %v3357, %v3361
    %v3365 = vsel %vm113, %v3348, 0
    %3367 = vmatprep.subr.mxu0 0.0
    %3368 = vmatpush1.msra.mxu0 %v3349
    %3369 = vmatprep.subr.mxu0 0.0
    %3370 = vmatpush1.msra.mxu0 %v3350
    %3371 = vmatprep.subr.mxu0 0.0
    %3372 = vmatpush1.msra.mxu0 %v3351
    %3373 = vmatprep.subr.mxu0 0.0
    %3374 = vmatpush1.msra.mxu0 %v3352
    %3375 = vmatprep.subr.mxu0 0.0
    %3376 = vmatpush1.msra.mxu0 %v3353
    %3377 = vmatprep.subr.mxu0 0.0
    %3378 = vmatpush1.msra.mxu0 %v3354
    %3379 = vmatprep.subr.mxu0 0.0
    %3380 = vmatpush1.msra.mxu0 %v3355
    %3381 = vmatprep.subr.mxu0 0.0
    %3382 = vmatpush1.msra.mxu0 %v3356
    %3383 = vmatprep.subr.mxu0 0.0
    %3384 = vmatpush1.msra.mxu0 0.0
    %3385 = vmatprep.subr.mxu0 0.0
    %3386 = vmatpush1.msra.mxu0 0.0
    %3387 = vmatprep.subr.mxu0 0.0
    %3388 = vmatpush1.msra.mxu0 0.0
    %3389 = vmatprep.subr.mxu0 0.0
    %3390 = vmatpush1.msra.mxu0 0.0
    %3391 = vmatprep.subr.mxu0 0.0
    %3392 = vmatpush1.msra.mxu0 0.0
    %3393 = vmatprep.subr.mxu0 0.0
    %3394 = vmatpush1.msra.mxu0 0.0
    %3395 = vmatprep.subr.mxu0 0.0
    %3396 = vmatpush1.msra.mxu0 0.0
    %3397 = vmatprep.subr.mxu0 0.0
    %3398 = vmatpush1.msra.mxu0 0.0
    %3399 = vmatprep.subr.mxu0 0.0
    %3400 = vmatpush1.msra.mxu0 0.0
    %3401 = vmatprep.subr.mxu0 0.0
    %3402 = vmatpush1.msra.mxu0 0.0
    %3403 = vmatprep.subr.mxu0 0.0
    %3404 = vmatpush1.msra.mxu0 0.0
    %3405 = vmatprep.subr.mxu0 0.0
    %3406 = vmatpush1.msra.mxu0 0.0
    %3407 = vmatprep.subr.mxu0 0.0
    %3408 = vmatpush1.msra.mxu0 0.0
    %3409 = vmatprep.subr.mxu0 0.0
    %3410 = vmatpush1.msra.mxu0 0.0
    %3411 = vmatprep.subr.mxu0 0.0
    %3412 = vmatpush1.msra.mxu0 0.0
    %3413 = vmatprep.subr.mxu0 0.0
    %3414 = vmatpush1.msra.mxu0 0.0
    %3415 = vmatprep.subr.mxu0 0.0
    %3416 = vmatpush1.msra.mxu0 0.0
    %3417 = vmatprep.subr.mxu0 0.0
    %3418 = vmatpush1.msra.mxu0 0.0
    %3419 = vmatprep.subr.mxu0 0.0
    %3420 = vmatpush1.msra.mxu0 0.0
    %3421 = vmatprep.subr.mxu0 0.0
    %3422 = vmatpush1.msra.mxu0 0.0
    %3423 = vmatprep.subr.mxu0 0.0
    %3424 = vmatpush1.msra.mxu0 0.0
    %3425 = vmatprep.subr.mxu0 0.0
    %3426 = vmatpush1.msra.mxu0 0.0
    %3427 = vmatprep.subr.mxu0 0.0
    %3428 = vmatpush1.msra.mxu0 0.0
    %3429 = vmatprep.subr.mxu0 0.0
    %3430 = vmatpush1.msra.mxu0 0.0
    %3431 = vmatprep.mubr.f32.mxu0 0.0
    %3432 = vmatmul.mubr.f32.gmra.mrb[0].mxu0 %v3365
    %v3433 = vpop.f32.mrb[0].mxu0
    %v3434 = vadd.f32 %v3362, %v3433
    %v3435 = vpop.f32.mrb[0].mxu0
    %3436 = vdwg.mxu0
    %v3437 = vld [vmem:[%s8] sm:$0x1]
    %v3439 = vlaneseq
    %v3440 = vshrl.u32 %v3439, 7
    %v3441 = vsub.s32 0, %v3440
    %v3442 = vrot.slane %v3437, %v3441
    %v3444 = vmul.f32 %v3434, %v3442
    %v3445 = vld [vmem:[%s9] sm:$0x1]
    %v3447 = vlaneseq
    %v3448 = vshrl.u32 %v3447, 7
    %v3449 = vsub.s32 0, %v3448
    %v3450 = vrot.slane %v3445, %v3449
    %v3452 = vadd.f32 %v3444, %v3450
    %vm3453 = vcmp.ge.f32.partialorder %v3452, 0.0
    %v3454 = vmul.f32 %v3452, 0.01
    %v3455 = vsel %vm3453, %v3452, %v3454
    %v3456 = vld [vmem:[%s10] sm:$0xff]
    %v3457 = vld [vmem:[%s10 + $0x8] sm:$0xff]
    %v3458 = vld [vmem:[%s10 + $0x10] sm:$0xff]
    %v3459 = vld [vmem:[%s10 + $0x18] sm:$0xff]
    %v3460 = vld [vmem:[%s10 + $0x20] sm:$0xff]
    %v3461 = vld [vmem:[%s10 + $0x28] sm:$0xff]
    %v3462 = vld [vmem:[%s10 + $0x30] sm:$0xff]
    %v3463 = vld [vmem:[%s10 + $0x38] sm:$0xff]
    %v3464 = vld [vmem:[%s11] sm:$0x1]
    %v3466 = vlaneseq
    %v3467 = vshrl.u32 %v3466, 7
    %v3468 = vsub.s32 0, %v3467
    %v3469 = vrot.slane %v3464, %v3468
    %v3472 = vsel %vm113, %v3455, 0
    %3474 = vmatprep.subr.mxu0 0.0
    %3475 = vmatpush1.msra.mxu0 %v3456
    %3476 = vmatprep.subr.mxu0 0.0
    %3477 = vmatpush1.msra.mxu0 %v3457
    %3478 = vmatprep.subr.mxu0 0.0
    %3479 = vmatpush1.msra.mxu0 %v3458
    %3480 = vmatprep.subr.mxu0 0.0
    %3481 = vmatpush1.msra.mxu0 %v3459
    %3482 = vmatprep.subr.mxu0 0.0
    %3483 = vmatpush1.msra.mxu0 %v3460
    %3484 = vmatprep.subr.mxu0 0.0
    %3485 = vmatpush1.msra.mxu0 %v3461
    %3486 = vmatprep.subr.mxu0 0.0
    %3487 = vmatpush1.msra.mxu0 %v3462
    %3488 = vmatprep.subr.mxu0 0.0
    %3489 = vmatpush1.msra.mxu0 %v3463
    %3490 = vmatprep.subr.mxu0 0.0
    %3491 = vmatpush1.msra.mxu0 0.0
    %3492 = vmatprep.subr.mxu0 0.0
    %3493 = vmatpush1.msra.mxu0 0.0
    %3494 = vmatprep.subr.mxu0 0.0
    %3495 = vmatpush1.msra.mxu0 0.0
    %3496 = vmatprep.subr.mxu0 0.0
    %3497 = vmatpush1.msra.mxu0 0.0
    %3498 = vmatprep.subr.mxu0 0.0
    %3499 = vmatpush1.msra.mxu0 0.0
    %3500 = vmatprep.subr.mxu0 0.0
    %3501 = vmatpush1.msra.mxu0 0.0
    %3502 = vmatprep.subr.mxu0 0.0
    %3503 = vmatpush1.msra.mxu0 0.0
    %3504 = vmatprep.subr.mxu0 0.0
    %3505 = vmatpush1.msra.mxu0 0.0
    %3506 = vmatprep.subr.mxu0 0.0
    %3507 = vmatpush1.msra.mxu0 0.0
    %3508 = vmatprep.subr.mxu0 0.0
    %3509 = vmatpush1.msra.mxu0 0.0
    %3510 = vmatprep.subr.mxu0 0.0
    %3511 = vmatpush1.msra.mxu0 0.0
    %3512 = vmatprep.subr.mxu0 0.0
    %3513 = vmatpush1.msra.mxu0 0.0
    %3514 = vmatprep.subr.mxu0 0.0
    %3515 = vmatpush1.msra.mxu0 0.0
    %3516 = vmatprep.subr.mxu0 0.0
    %3517 = vmatpush1.msra.mxu0 0.0
    %3518 = vmatprep.subr.mxu0 0.0
    %3519 = vmatpush1.msra.mxu0 0.0
    %3520 = vmatprep.subr.mxu0 0.0
    %3521 = vmatpush1.msra.mxu0 0.0
    %3522 = vmatprep.subr.mxu0 0.0
    %3523 = vmatpush1.msra.mxu0 0.0
    %3524 = vmatprep.subr.mxu0 0.0
    %3525 = vmatpush1.msra.mxu0 0.0
    %3526 = vmatprep.subr.mxu0 0.0
    %3527 = vmatpush1.msra.mxu0 0.0
    %3528 = vmatprep.subr.mxu0 0.0
    %3529 = vmatpush1.msra.mxu0 0.0
    %3530 = vmatprep.subr.mxu0 0.0
    %3531 = vmatpush1.msra.mxu0 0.0
    %3532 = vmatprep.subr.mxu0 0.0
    %3533 = vmatpush1.msra.mxu0 0.0
    %3534 = vmatprep.subr.mxu0 0.0
    %3535 = vmatpush1.msra.mxu0 0.0
    %3536 = vmatprep.subr.mxu0 0.0
    %3537 = vmatpush1.msra.mxu0 0.0
    %3538 = vmatprep.mubr.f32.mxu0 0.0
    %3539 = vmatmul.mubr.f32.gmra.mrb[0].mxu0 %v3472
    %v3540 = vpop.f32.mrb[0].mxu0
    %v3541 = vadd.f32 %v3469, %v3540
    %v3542 = vpop.f32.mrb[0].mxu0
    %3543 = vdwg.mxu0
    %v3544 = vld [vmem:[%s12] sm:$0x1]
    %v3546 = vlaneseq
    %v3547 = vshrl.u32 %v3546, 7
    %v3548 = vsub.s32 0, %v3547
    %v3549 = vrot.slane %v3544, %v3548
    %v3551 = vmul.f32 %v3541, %v3549
    %v3552 = vld [vmem:[%s13] sm:$0x1]
    %v3554 = vlaneseq
    %v3555 = vshrl.u32 %v3554, 7
    %v3556 = vsub.s32 0, %v3555
    %v3557 = vrot.slane %v3552, %v3556
    %v3559 = vadd.f32 %v3551, %v3557
    %vm3560 = vcmp.ge.f32.partialorder %v3559, 0.0
    %v3561 = vmul.f32 %v3559, 0.01
    %v3562 = vsel %vm3560, %v3559, %v3561
    %v3563 = vld [vmem:[%s14] sm:$0xff]
    %v3564 = vld [vmem:[%s14 + $0x8] sm:$0xff]
    %v3565 = vld [vmem:[%s14 + $0x10] sm:$0xff]
    %v3566 = vld [vmem:[%s14 + $0x18] sm:$0xff]
    %v3567 = vld [vmem:[#allocation6] sm:$0x1]
    %v3569 = vlaneseq
    %v3570 = vshrl.u32 %v3569, 7
    %v3571 = vsub.s32 0, %v3570
    %v3572 = vrot.slane %v3567, %v3571
    %v3575 = vsel %vm239, %v3562, 0
    %3577 = vmatprep.subr.mxu0 0.0
    %3578 = vmatpush1.msra.mxu0 %v3563
    %3579 = vmatprep.subr.mxu0 0.0
    %3580 = vmatpush1.msra.mxu0 %v3564
    %3581 = vmatprep.subr.mxu0 0.0
    %3582 = vmatpush1.msra.mxu0 %v3565
    %3583 = vmatprep.subr.mxu0 0.0
    %3584 = vmatpush1.msra.mxu0 %v3566
    %3585 = vmatprep.subr.mxu0 0.0
    %3586 = vmatpush1.msra.mxu0 0.0
    %3587 = vmatprep.subr.mxu0 0.0
    %3588 = vmatpush1.msra.mxu0 0.0
    %3589 = vmatprep.subr.mxu0 0.0
    %3590 = vmatpush1.msra.mxu0 0.0
    %3591 = vmatprep.subr.mxu0 0.0
    %3592 = vmatpush1.msra.mxu0 0.0
    %3593 = vmatprep.subr.mxu0 0.0
    %3594 = vmatpush1.msra.mxu0 0.0
    %3595 = vmatprep.subr.mxu0 0.0
    %3596 = vmatpush1.msra.mxu0 0.0
    %3597 = vmatprep.subr.mxu0 0.0
    %3598 = vmatpush1.msra.mxu0 0.0
    %3599 = vmatprep.subr.mxu0 0.0
    %3600 = vmatpush1.msra.mxu0 0.0
    %3601 = vmatprep.subr.mxu0 0.0
    %3602 = vmatpush1.msra.mxu0 0.0
    %3603 = vmatprep.subr.mxu0 0.0
    %3604 = vmatpush1.msra.mxu0 0.0
    %3605 = vmatprep.subr.mxu0 0.0
    %3606 = vmatpush1.msra.mxu0 0.0
    %3607 = vmatprep.subr.mxu0 0.0
    %3608 = vmatpush1.msra.mxu0 0.0
    %3609 = vmatprep.subr.mxu0 0.0
    %3610 = vmatpush1.msra.mxu0 0.0
    %3611 = vmatprep.subr.mxu0 0.0
    %3612 = vmatpush1.msra.mxu0 0.0
    %3613 = vmatprep.subr.mxu0 0.0
    %3614 = vmatpush1.msra.mxu0 0.0
    %3615 = vmatprep.subr.mxu0 0.0
    %3616 = vmatpush1.msra.mxu0 0.0
    %3617 = vmatprep.subr.mxu0 0.0
    %3618 = vmatpush1.msra.mxu0 0.0
    %3619 = vmatprep.subr.mxu0 0.0
    %3620 = vmatpush1.msra.mxu0 0.0
    %3621 = vmatprep.subr.mxu0 0.0
    %3622 = vmatpush1.msra.mxu0 0.0
    %3623 = vmatprep.subr.mxu0 0.0
    %3624 = vmatpush1.msra.mxu0 0.0
    %3625 = vmatprep.subr.mxu0 0.0
    %3626 = vmatpush1.msra.mxu0 0.0
    %3627 = vmatprep.subr.mxu0 0.0
    %3628 = vmatpush1.msra.mxu0 0.0
    %3629 = vmatprep.subr.mxu0 0.0
    %3630 = vmatpush1.msra.mxu0 0.0
    %3631 = vmatprep.subr.mxu0 0.0
    %3632 = vmatpush1.msra.mxu0 0.0
    %3633 = vmatprep.subr.mxu0 0.0
    %3634 = vmatpush1.msra.mxu0 0.0
    %3635 = vmatprep.subr.mxu0 0.0
    %3636 = vmatpush1.msra.mxu0 0.0
    %3637 = vmatprep.subr.mxu0 0.0
    %3638 = vmatpush1.msra.mxu0 0.0
    %3639 = vmatprep.subr.mxu0 0.0
    %3640 = vmatpush1.msra.mxu0 0.0
    %3641 = vmatprep.mubr.f32.mxu0 0.0
    %3642 = vmatmul.mubr.f32.gmra.mrb[0].mxu0 %v3575
    %v3643 = vpop.f32.mrb[0].mxu0
    %v3644 = vadd.f32 %v3572, %v3643
    %v3645 = vpop.f32.mrb[0].mxu0
    %3646 = vdwg.mxu0
    %vm3647 = vcmask 3072
    %3648 = vst.msk [vmem:[%s16] sm:$0xf] %vm3647, %v3644
    // Predicated region
    $region70: #{enhanced_lstm_predictor.1} parent=1 // pred_check
      _
    $region71: #{enhanced_lstm_predictor.1} parent=1 // pred_check_branch
      %3650 = sbr.rel (0) target = $region73
    $region72: #{enhanced_lstm_predictor.1} parent=1 // pred_region
      _
    $region73: #{enhanced_lstm_predictor.1} parent=1 // pred_fallthru
      _
    // Predicated region
    $region74: #{enhanced_lstm_predictor.1} parent=1 // pred_check
      _
    $region75: #{enhanced_lstm_predictor.1} parent=1 // pred_check_branch
      %3652 = sbr.rel (0) target = $region77
    $region76: #{enhanced_lstm_predictor.1} parent=1 // pred_region
      _
    $region77: #{enhanced_lstm_predictor.1} parent=1 // pred_fallthru
      _
    %3653 = vsyncpa [#allocation8], 1

</llo_original>
